<compile_context>
chip_gen: v7x
topology: tpu7x:2x2x1
jax: 0.10.0
libtpu: 0.0.40
codegen_flags: <defaults>
</compile_context>

<pallas_src>
import functools

import jax
import jax.numpy as jnp
from jax import lax
from jax.experimental import pallas as pl
from jax.experimental.pallas import tpu as pltpu


def _swish(x):
    return x * jax.nn.sigmoid(x)


def _bdot(a, w_ref):
    """bf16 x bf16 MXU matmul with f32 accumulation (w_ref holds bf16 weights)."""
    return jnp.dot(a.astype(jnp.bfloat16), w_ref[...],
                   preferred_element_type=jnp.float32)


def _round_up(x, m):
    return ((x + m - 1) // m) * m


def _pad_rows(a, rows):
    return a if a.shape[0] == rows else jnp.pad(a, ((0, rows - a.shape[0]), (0, 0)))


# -----------------------------------------------------------------------------
# Kernel 1: per-edge pre-triplet compute.
#   x_ji      = swish(x1 @ W_ji + b_ji)
#   x_kj_down = swish((swish(x1 @ W_kj + b_kj) * (rbf0 @ W_rbf12)) @ W_down)
# -----------------------------------------------------------------------------
def edge_pre_kernel(x1_ref, rbf0_ref,
                    w_ji_ref, b_ji_ref, w_kj_ref, b_kj_ref,
                    w_rbf12_ref, w_down_ref,
                    x_ji_out, xkj_down_out):
    x1b = x1_ref[...].astype(jnp.bfloat16)
    x_ji = _swish(jnp.dot(x1b, w_ji_ref[...], preferred_element_type=jnp.float32)
                  + b_ji_ref[...])
    x_kj = _swish(jnp.dot(x1b, w_kj_ref[...], preferred_element_type=jnp.float32)
                  + b_kj_ref[...])
    rbf = _bdot(rbf0_ref[...], w_rbf12_ref)           # folded lin_rbf1 @ lin_rbf2
    x_ji_out[...] = x_ji
    xkj_down_out[...] = _swish(_bdot(x_kj * rbf, w_down_ref))


def edge_pre(x1, rbf0, wb, te):
    Ep, H = x1.shape
    R = rbf0.shape[1]
    I = wb["w_down"].shape[1]
    row = lambda i: (i, 0)
    const = lambda i: (0, 0)
    weights = (wb["w_ji"], wb["b_ji"], wb["w_kj"], wb["b_kj"],
               wb["w_rbf12"], wb["w_down"])
    in_specs = ([pl.BlockSpec((te, H), row), pl.BlockSpec((te, R), row)]
                + [pl.BlockSpec(w.shape, const) for w in weights])
    out_specs = [pl.BlockSpec((te, H), row), pl.BlockSpec((te, I), row)]
    out_shape = (jax.ShapeDtypeStruct((Ep, H), jnp.float32),
                 jax.ShapeDtypeStruct((Ep, I), jnp.float32))
    return pl.pallas_call(
        edge_pre_kernel,
        grid=(Ep // te,),
        in_specs=in_specs,
        out_specs=out_specs,
        out_shape=out_shape,
        compiler_params=pltpu.CompilerParams(dimension_semantics=("parallel",)),
    )(x1, rbf0, *weights)


# -----------------------------------------------------------------------------
# Kernel 2: per-triplet compute (gather already done in the wrapper).
#   prod = x_kj_down[idx_kj] * (sbf @ Wsbf1 @ Wsbf2) * (t @ Wt1 @ Wt2)
# Streams (tt, *) tiles only; no E-sized buffers resident -> fits v7x VMEM and
# the grid axis is fully parallel.
# -----------------------------------------------------------------------------
def triplet_kernel(gath_ref, sbf_ref, t_ref,
                   w_sbf1_ref, w_sbf2_ref, w_t1_ref, w_t2_ref,
                   prod_out):
    sbf_p = _bdot(_bdot(sbf_ref[...], w_sbf1_ref), w_sbf2_ref)
    t_p = _bdot(_bdot(t_ref[...], w_t1_ref), w_t2_ref)
    prod_out[...] = gath_ref[...] * sbf_p * t_p


def triplet(gathered, sbf, t, wb, tt):
    Tp, I = gathered.shape
    row = lambda k: (k, 0)
    const = lambda k: (0, 0)
    weights = (wb["w_sbf1"], wb["w_sbf2"], wb["w_t1"], wb["w_t2"])
    in_specs = ([pl.BlockSpec((tt, I), row),
                 pl.BlockSpec((tt, sbf.shape[1]), row),
                 pl.BlockSpec((tt, t.shape[1]), row)]
                + [pl.BlockSpec(w.shape, const) for w in weights])
    return pl.pallas_call(
        triplet_kernel,
        grid=(Tp // tt,),
        in_specs=in_specs,
        out_specs=pl.BlockSpec((tt, I), row),
        out_shape=jax.ShapeDtypeStruct((Tp, I), jnp.float32),
        compiler_params=pltpu.CompilerParams(dimension_semantics=("parallel",)),
    )(gathered, sbf, t, *weights)


# -----------------------------------------------------------------------------
# Kernel 3: per-edge post-scatter compute (lin_up, residuals, skip, e2).
#   (num_before_skip = num_after_skip = 1)
# rbf_e2 = rbf0 @ W_rbf is computed here (fused) instead of round-tripping (E, H).
# -----------------------------------------------------------------------------
def edge_post_kernel(x_ji_ref, scat_ref, x1_ref, rbf0_ref,
                     w_up_ref,
                     w_b1_ref, b_b1_ref, w_b2_ref, b_b2_ref,
                     w_lin_ref, b_lin_ref,
                     w_a1_ref, b_a1_ref, w_a2_ref, b_a2_ref,
                     w_rbf_ref,
                     e1_out, e2_out):
    x_kj = _swish(_bdot(scat_ref[...], w_up_ref))
    e1 = x_ji_ref[...] + x_kj
    # residual layer before skip
    h = _swish(_bdot(e1, w_b1_ref) + b_b1_ref[...])
    e1 = e1 + _swish(_bdot(h, w_b2_ref) + b_b2_ref[...])
    # skip connection
    e1 = _swish(_bdot(e1, w_lin_ref) + b_lin_ref[...]) + x1_ref[...]
    # residual layer after skip
    h = _swish(_bdot(e1, w_a1_ref) + b_a1_ref[...])
    e1 = e1 + _swish(_bdot(h, w_a2_ref) + b_a2_ref[...])
    e1_out[...] = e1
    e2_out[...] = _bdot(rbf0_ref[...], w_rbf_ref) * e1


def edge_post(x_ji, scattered, x1, rbf0, wb, te):
    Ep, H = x1.shape
    I = scattered.shape[1]
    R = rbf0.shape[1]
    row = lambda i: (i, 0)
    const = lambda i: (0, 0)
    weights = (wb["w_up"],
               wb["w_b1"], wb["b_b1"], wb["w_b2"], wb["b_b2"],
               wb["w_lin"], wb["b_lin"],
               wb["w_a1"], wb["b_a1"], wb["w_a2"], wb["b_a2"],
               wb["w_rbf"])
    in_specs = ([pl.BlockSpec((te, H), row),
                 pl.BlockSpec((te, I), row),
                 pl.BlockSpec((te, H), row),
                 pl.BlockSpec((te, R), row)]
                + [pl.BlockSpec(w.shape, const) for w in weights])
    out_specs = [pl.BlockSpec((te, H), row), pl.BlockSpec((te, H), row)]
    out_shape = (jax.ShapeDtypeStruct((Ep, H), jnp.float32),
                 jax.ShapeDtypeStruct((Ep, H), jnp.float32))
    return pl.pallas_call(
        edge_post_kernel,
        grid=(Ep // te,),
        in_specs=in_specs,
        out_specs=out_specs,
        out_shape=out_shape,
        compiler_params=pltpu.CompilerParams(dimension_semantics=("parallel",)),
    )(x_ji, scattered, x1, rbf0, *weights)


# -----------------------------------------------------------------------------
# Full forward.
# -----------------------------------------------------------------------------
@functools.partial(jax.jit, static_argnames=("te", "tt"))
def update_e_forward(x1, rbf0, sbf, t, idx_kj, idx_ji, params, te=256, tt=256):
    E, _ = x1.shape
    T = sbf.shape[0]
    I = params["w_down"].shape[1]

    # Pre-cast matmul weights to bf16 once (halves weight DMA, doubles MXU rate);
    # biases stay f32.  Fold the tiny rbf basis projection (exact, associative).
    bf = lambda w: w.astype(jnp.bfloat16)
    wb = {
        "w_rbf12": bf(jnp.dot(params["w_rbf1"], params["w_rbf2"],
                              precision=lax.Precision.HIGHEST)),
        "w_rbf": bf(params["w_rbf"]),
        "w_sbf1": bf(params["w_sbf1"]), "w_sbf2": bf(params["w_sbf2"]),
        "w_t1": bf(params["w_t1"]), "w_t2": bf(params["w_t2"]),
        "w_kj": bf(params["w_kj"]), "b_kj": params["b_kj"],
        "w_ji": bf(params["w_ji"]), "b_ji": params["b_ji"],
        "w_down": bf(params["w_down"]), "w_up": bf(params["w_up"]),
        "w_b1": bf(params["w_b1"]), "b_b1": params["b_b1"],
        "w_b2": bf(params["w_b2"]), "b_b2": params["b_b2"],
        "w_lin": bf(params["w_lin"]), "b_lin": params["b_lin"],
        "w_a1": bf(params["w_a1"]), "b_a1": params["b_a1"],
        "w_a2": bf(params["w_a2"]), "b_a2": params["b_a2"],
    }

    # Tile sizes: large (MXU-friendly) but clamped to the array; pad rows so no
    # trailing rows are silently dropped.  Padded rows are mathematically inert
    # (zero inputs -> zero triplet products; padded edge rows are sliced off).
    te_eff = min(te, _round_up(E, 8))
    tt_eff = min(tt, _round_up(T, 8))
    Ep = _round_up(E, te_eff)
    Tp = _round_up(T, tt_eff)

    x1_p = _pad_rows(x1, Ep)
    rbf0_p = _pad_rows(rbf0, Ep)

    # 1) per-edge pre-compute (Pallas)
    x_ji, xkj_down = edge_pre(x1_p, rbf0_p, wb, te_eff)

    # 2) index-driven gather (O(T*I) memory op; no E-resident VMEM buffer needed)
    gathered = jnp.take(xkj_down, idx_kj.astype(jnp.int32), axis=0)

    # 3) per-triplet compute (Pallas)
    prod = triplet(_pad_rows(gathered, Tp), _pad_rows(sbf, Tp),
                   _pad_rows(t, Tp), wb, tt_eff)[:T]

    # 4) scatter-add over idx_ji.
    # TODO(synk): colliding dynamic-index scatter-add has no clean Pallas equivalent
    # without one-hot MXU matmuls (O(T*E*I)) or serialized row updates; left to XLA.
    scattered = jnp.zeros((Ep, I), jnp.float32).at[idx_ji.astype(jnp.int32)].add(prod)

    # 5) per-edge post-compute (Pallas)
    e1, e2 = edge_post(x_ji, scattered, x1_p, rbf0_p, wb, te_eff)
    return e1[:E], e2[:E]


# -----------------------------------------------------------------------------
# Deterministic parameter init (mirrors the module's shapes; biases = 0).
# -----------------------------------------------------------------------------
def init_params(key, H, I, bsd, bsa, bst, S, R):
    keys = jax.random.split(key, 16)

    def lin(k, fin, fout):
        return jax.random.normal(k, (fin, fout), jnp.float32) / jnp.sqrt(
            jnp.float32(fin))

    zb = lambda n: jnp.zeros((1, n), jnp.float32)
    return {
        "w_rbf1": lin(keys[0], R, bsd),
        "w_rbf2": lin(keys[1], bsd, H),
        "w_sbf1": lin(keys[2], S * R, bsa),
        "w_sbf2": lin(keys[3], bsa, I),
        "w_t1": lin(keys[4], S * S * R, bst),
        "w_t2": lin(keys[5], bst, I),
        "w_rbf": lin(keys[6], R, H),
        "w_kj": lin(keys[7], H, H), "b_kj": zb(H),
        "w_ji": lin(keys[8], H, H), "b_ji": zb(H),
        "w_down": lin(keys[9], H, I),
        "w_up": lin(keys[10], I, H),
        "w_b1": lin(keys[11], H, H), "b_b1": zb(H),
        "w_b2": lin(keys[12], H, H), "b_b2": zb(H),
        "w_lin": lin(keys[13], H, H), "b_lin": zb(H),
        "w_a1": lin(keys[14], H, H), "b_a1": zb(H),
        "w_a2": lin(keys[15], H, H), "b_a2": zb(H),
    }


# Pure-JAX reference (matches the PyTorch forward semantics), f32 HIGHEST precision.
def reference(x1, rbf0, sbf, t, idx_kj, idx_ji, p):
    P = lax.Precision.HIGHEST
    d = lambda a, b: jnp.dot(a, b, precision=P)
    E = x1.shape[0]
    x_ji = _swish(d(x1, p["w_ji"]) + p["b_ji"])
    x_kj = _swish(d(x1, p["w_kj"]) + p["b_kj"])
    rbf = d(d(rbf0, p["w_rbf1"]), p["w_rbf2"])
    x_kj = x_kj * rbf
    x_kj = _swish(d(x_kj, p["w_down"]))
    sbf_p = d(d(sbf, p["w_sbf1"]), p["w_sbf2"])
    x_kj = x_kj[idx_kj] * sbf_p
    t_p = d(d(t, p["w_t1"]), p["w_t2"])
    x_kj = x_kj * t_p
    x_kj = jnp.zeros((E, x_kj.shape[1]), jnp.float32).at[idx_ji].add(x_kj)
    x_kj = _swish(d(x_kj, p["w_up"]))
    e1 = x_ji + x_kj
    e1 = e1 + _swish(d(_swish(d(e1, p["w_b1"]) + p["b_b1"]), p["w_b2"]) + p["b_b2"])
    e1 = _swish(d(e1, p["w_lin"]) + p["b_lin"]) + x1
    e1 = e1 + _swish(d(_swish(d(e1, p["w_a1"]) + p["b_a1"]), p["w_a2"]) + p["b_a2"])
    e2 = d(rbf0, p["w_rbf"]) * e1
    return e1, e2


if __name__ == "__main__":
    # small synthetic config (DimeNet++ default widths so outputs are lane-dense)
    H, I = 128, 64                # hidden_channels, int_emb_size
    bsd, bsa, bst = 8, 8, 8       # basis_emb sizes (dist / angle / torsion)
    S, R = 4, 8                   # num_spherical, num_radial
    E, T = 200, 600               # num edges, num triplets (exercise padding)

    key = jax.random.PRNGKey(0)
    k1, k2, k3, k4, k5, k6, kp = jax.random.split(key, 7)
    x1 = jax.random.normal(k1, (E, H), jnp.float32)
    rbf0 = jax.random.normal(k2, (E, R), jnp.float32)
    sbf = jax.random.normal(k3, (T, S * R), jnp.float32)
    t = jax.random.normal(k4, (T, S * S * R), jnp.float32)
    idx_kj = jax.random.randint(k5, (T,), 0, E, jnp.int32)
    idx_ji = jax.random.randint(k6, (T,), 0, E, jnp.int32)
    params = init_params(kp, H, I, bsd, bsa, bst, S, R)

    e1, e2 = update_e_forward(x1, rbf0, sbf, t, idx_kj, idx_ji, params)
    jax.block_until_ready((e1, e2))

    e1_ref, e2_ref = reference(x1, rbf0, sbf, t, idx_kj, idx_ji, params)
    assert e1.shape == (E, H) and e2.shape == (E, H)
    # bf16 MXU operands vs. f32-HIGHEST reference over a ~9-matmul-deep chain.
    assert jnp.allclose(e1, e1_ref, atol=5e-2, rtol=5e-2), "e1 mismatch"
    assert jnp.allclose(e2, e2_ref, atol=5e-2, rtol=5e-2), "e2 mismatch"
    print("KERNEL_OK")
</pallas_src>

<mosaic_0001>
module attributes {stable_mosaic.version = 11 : i64} {
  func.func @edge_pre_kernel(%arg0: i32, %arg1: memref<200x128xf32, #tpu.memory_space<vmem>>, %arg2: memref<200x8xf32, #tpu.memory_space<vmem>>, %arg3: memref<128x128xbf16, #tpu.memory_space<vmem>>, %arg4: memref<1x128xf32, #tpu.memory_space<vmem>>, %arg5: memref<128x128xbf16, #tpu.memory_space<vmem>>, %arg6: memref<1x128xf32, #tpu.memory_space<vmem>>, %arg7: memref<8x128xbf16, #tpu.memory_space<vmem>>, %arg8: memref<128x64xbf16, #tpu.memory_space<vmem>>, %arg9: memref<200x128xf32, #tpu.memory_space<vmem>>, %arg10: memref<200x64xf32, #tpu.memory_space<vmem>>) attributes {dimension_semantics = [#tpu.dimension_semantics<parallel>], iteration_bounds = array<i64: 1>, scalar_prefetch = 0 : i64, scratch_operands = 0 : i64, tpu.core_type = #tpu.core_type<tc>, window_params = [{transform_indices = @transform_0, window_bounds = array<i64: 200, 128>}, {transform_indices = @transform_1, window_bounds = array<i64: 200, 8>}, {pipeline_mode = #tpu.pipeline_mode<synchronous>, transform_indices = @transform_2, window_bounds = array<i64: 128, 128>}, {pipeline_mode = #tpu.pipeline_mode<synchronous>, transform_indices = @transform_3, window_bounds = array<i64: 1, 128>}, {pipeline_mode = #tpu.pipeline_mode<synchronous>, transform_indices = @transform_4, window_bounds = array<i64: 128, 128>}, {pipeline_mode = #tpu.pipeline_mode<synchronous>, transform_indices = @transform_5, window_bounds = array<i64: 1, 128>}, {pipeline_mode = #tpu.pipeline_mode<synchronous>, transform_indices = @transform_6, window_bounds = array<i64: 8, 128>}, {pipeline_mode = #tpu.pipeline_mode<synchronous>, transform_indices = @transform_7, window_bounds = array<i64: 128, 64>}, {transform_indices = @transform_8, window_bounds = array<i64: 200, 128>}, {transform_indices = @transform_9, window_bounds = array<i64: 200, 64>}]} {
    %c0 = arith.constant 0 : index
    %c0_0 = arith.constant 0 : index
    %0 = vector.load %arg1[%c0, %c0_0] : memref<200x128xf32, #tpu.memory_space<vmem>>, vector<200x128xf32>
    %1 = arith.truncf %0 : vector<200x128xf32> to vector<200x128xbf16>
    %c0_1 = arith.constant 0 : index
    %c0_2 = arith.constant 0 : index
    %2 = vector.load %arg3[%c0_1, %c0_2] : memref<128x128xbf16, #tpu.memory_space<vmem>>, vector<128x128xbf16>
    %cst = arith.constant dense<0.000000e+00> : vector<200x128xf32>
    %3 = tpu.matmul %1, %2, %cst {dimension_numbers = #tpu.dot_dimension_numbers<[1], [0], [0], [1], [0, 0, 1, 1], [], []>} : vector<200x128xbf16>, vector<128x128xbf16>, vector<200x128xf32> -> vector<200x128xf32>
    %c0_3 = arith.constant 0 : index
    %c0_4 = arith.constant 0 : index
    %4 = vector.load %arg4[%c0_3, %c0_4] : memref<1x128xf32, #tpu.memory_space<vmem>>, vector<1x128xf32>
    %5 = vector.broadcast %4 : vector<1x128xf32> to vector<200x128xf32>
    %6 = arith.addf %3, %5 : vector<200x128xf32>
    %7 = arith.negf %6 : vector<200x128xf32>
    %8 = math.exp %7 : vector<200x128xf32>
    %cst_5 = arith.constant 1.000000e+00 : f32
    %9 = vector.broadcast %cst_5 : f32 to vector<200x128xf32>
    %10 = arith.addf %9, %8 : vector<200x128xf32>
    %11 = arith.divf %9, %10 : vector<200x128xf32>
    %12 = arith.mulf %6, %11 : vector<200x128xf32>
    %c0_6 = arith.constant 0 : index
    %c0_7 = arith.constant 0 : index
    %13 = vector.load %arg5[%c0_6, %c0_7] : memref<128x128xbf16, #tpu.memory_space<vmem>>, vector<128x128xbf16>
    %cst_8 = arith.constant dense<0.000000e+00> : vector<200x128xf32>
    %14 = tpu.matmul %1, %13, %cst_8 {dimension_numbers = #tpu.dot_dimension_numbers<[1], [0], [0], [1], [0, 0, 1, 1], [], []>} : vector<200x128xbf16>, vector<128x128xbf16>, vector<200x128xf32> -> vector<200x128xf32>
    %c0_9 = arith.constant 0 : index
    %c0_10 = arith.constant 0 : index
    %15 = vector.load %arg6[%c0_9, %c0_10] : memref<1x128xf32, #tpu.memory_space<vmem>>, vector<1x128xf32>
    %16 = vector.broadcast %15 : vector<1x128xf32> to vector<200x128xf32>
    %17 = arith.addf %14, %16 : vector<200x128xf32>
    %18 = arith.negf %17 : vector<200x128xf32>
    %19 = math.exp %18 : vector<200x128xf32>
    %cst_11 = arith.constant 1.000000e+00 : f32
    %20 = vector.broadcast %cst_11 : f32 to vector<200x128xf32>
    %21 = arith.addf %20, %19 : vector<200x128xf32>
    %22 = arith.divf %20, %21 : vector<200x128xf32>
    %23 = arith.mulf %17, %22 : vector<200x128xf32>
    %c0_12 = arith.constant 0 : index
    %c0_13 = arith.constant 0 : index
    %24 = vector.load %arg2[%c0_12, %c0_13] : memref<200x8xf32, #tpu.memory_space<vmem>>, vector<200x8xf32>
    %25 = arith.truncf %24 : vector<200x8xf32> to vector<200x8xbf16>
    %c0_14 = arith.constant 0 : index
    %c0_15 = arith.constant 0 : index
    %26 = vector.load %arg7[%c0_14, %c0_15] : memref<8x128xbf16, #tpu.memory_space<vmem>>, vector<8x128xbf16>
    %cst_16 = arith.constant dense<0.000000e+00> : vector<200x128xf32>
    %27 = tpu.matmul %25, %26, %cst_16 {dimension_numbers = #tpu.dot_dimension_numbers<[1], [0], [0], [1], [0, 0, 1, 1], [], []>} : vector<200x8xbf16>, vector<8x128xbf16>, vector<200x128xf32> -> vector<200x128xf32>
    %c0_17 = arith.constant 0 : index
    %c0_18 = arith.constant 0 : index
    %28 = vector.load %arg9[%c0_17, %c0_18] : memref<200x128xf32, #tpu.memory_space<vmem>>, vector<200x128xf32>
    tpu.vector_store %arg9[%c0_17, %c0_18], %12 {strides = array<i32>} : memref<200x128xf32, #tpu.memory_space<vmem>>, vector<200x128xf32>,
    %29 = arith.mulf %23, %27 : vector<200x128xf32>
    %30 = arith.truncf %29 : vector<200x128xf32> to vector<200x128xbf16>
    %c0_19 = arith.constant 0 : index
    %c0_20 = arith.constant 0 : index
    %31 = vector.load %arg8[%c0_19, %c0_20] : memref<128x64xbf16, #tpu.memory_space<vmem>>, vector<128x64xbf16>
    %cst_21 = arith.constant dense<0.000000e+00> : vector<200x64xf32>
    %32 = tpu.matmul %30, %31, %cst_21 {dimension_numbers = #tpu.dot_dimension_numbers<[1], [0], [0], [1], [0, 0, 1, 1], [], []>} : vector<200x128xbf16>, vector<128x64xbf16>, vector<200x64xf32> -> vector<200x64xf32>
    %33 = arith.negf %32 : vector<200x64xf32>
    %34 = math.exp %33 : vector<200x64xf32>
    %cst_22 = arith.constant 1.000000e+00 : f32
    %35 = vector.broadcast %cst_22 : f32 to vector<200x64xf32>
    %36 = arith.addf %35, %34 : vector<200x64xf32>
    %37 = arith.divf %35, %36 : vector<200x64xf32>
    %38 = arith.mulf %32, %37 : vector<200x64xf32>
    %c0_23 = arith.constant 0 : index
    %c0_24 = arith.constant 0 : index
    %39 = vector.load %arg10[%c0_23, %c0_24] : memref<200x64xf32, #tpu.memory_space<vmem>>, vector<200x64xf32>
    tpu.vector_store %arg10[%c0_23, %c0_24], %38 {strides = array<i32>} : memref<200x64xf32, #tpu.memory_space<vmem>>, vector<200x64xf32>,
    return
  }
  func.func @transform_0(%arg0: i32) -> (i32, i32) {
    %c0_i32 = arith.constant 0 : i32
    %c0_i32_0 = arith.constant 0 : i32
    return %arg0, %c0_i32 : i32, i32
  }
  func.func @transform_1(%arg0: i32) -> (i32, i32) {
    %c0_i32 = arith.constant 0 : i32
    %c0_i32_0 = arith.constant 0 : i32
    return %arg0, %c0_i32 : i32, i32
  }
  func.func @transform_2(%arg0: i32) -> (i32, i32) {
    %c0_i32 = arith.constant 0 : i32
    %c0_i32_0 = arith.constant 0 : i32
    %c0_i32_1 = arith.constant 0 : i32
    return %c0_i32, %c0_i32_0 : i32, i32
  }
  func.func @transform_3(%arg0: i32) -> (i32, i32) {
    %c0_i32 = arith.constant 0 : i32
    %c0_i32_0 = arith.constant 0 : i32
    %c0_i32_1 = arith.constant 0 : i32
    return %c0_i32, %c0_i32_0 : i32, i32
  }
  func.func @transform_4(%arg0: i32) -> (i32, i32) {
    %c0_i32 = arith.constant 0 : i32
    %c0_i32_0 = arith.constant 0 : i32
    %c0_i32_1 = arith.constant 0 : i32
    return %c0_i32, %c0_i32_0 : i32, i32
  }
  func.func @transform_5(%arg0: i32) -> (i32, i32) {
    %c0_i32 = arith.constant 0 : i32
    %c0_i32_0 = arith.constant 0 : i32
    %c0_i32_1 = arith.constant 0 : i32
    return %c0_i32, %c0_i32_0 : i32, i32
  }
  func.func @transform_6(%arg0: i32) -> (i32, i32) {
    %c0_i32 = arith.constant 0 : i32
    %c0_i32_0 = arith.constant 0 : i32
    %c0_i32_1 = arith.constant 0 : i32
    return %c0_i32, %c0_i32_0 : i32, i32
  }
  func.func @transform_7(%arg0: i32) -> (i32, i32) {
    %c0_i32 = arith.constant 0 : i32
    %c0_i32_0 = arith.constant 0 : i32
    %c0_i32_1 = arith.constant 0 : i32
    return %c0_i32, %c0_i32_0 : i32, i32
  }
  func.func @transform_8(%arg0: i32) -> (i32, i32) {
    %c0_i32 = arith.constant 0 : i32
    %c0_i32_0 = arith.constant 0 : i32
    return %arg0, %c0_i32 : i32, i32
  }
  func.func @transform_9(%arg0: i32) -> (i32, i32) {
    %c0_i32 = arith.constant 0 : i32
    %c0_i32_0 = arith.constant 0 : i32
    return %arg0, %c0_i32 : i32, i32
  }
}

module attributes {stable_mosaic.version = 11 : i64} {
  func.func @triplet_kernel(%arg0: i32, %arg1: memref<256x64xf32, #tpu.memory_space<vmem>>, %arg2: memref<256x32xf32, #tpu.memory_space<vmem>>, %arg3: memref<256x128xf32, #tpu.memory_space<vmem>>, %arg4: memref<32x8xbf16, #tpu.memory_space<vmem>>, %arg5: memref<8x64xbf16, #tpu.memory_space<vmem>>, %arg6: memref<128x8xbf16, #tpu.memory_space<vmem>>, %arg7: memref<8x64xbf16, #tpu.memory_space<vmem>>, %arg8: memref<256x64xf32, #tpu.memory_space<vmem>>) attributes {dimension_semantics = [#tpu.dimension_semantics<parallel>], iteration_bounds = array<i64: 3>, scalar_prefetch = 0 : i64, scratch_operands = 0 : i64, tpu.core_type = #tpu.core_type<tc>, window_params = [{transform_indices = @transform_0, window_bounds = array<i64: 256, 64>}, {transform_indices = @transform_1, window_bounds = array<i64: 256, 32>}, {transform_indices = @transform_2, window_bounds = array<i64: 256, 128>}, {pipeline_mode = #tpu.pipeline_mode<synchronous>, transform_indices = @transform_3, window_bounds = array<i64: 32, 8>}, {pipeline_mode = #tpu.pipeline_mode<synchronous>, transform_indices = @transform_4, window_bounds = array<i64: 8, 64>}, {pipeline_mode = #tpu.pipeline_mode<synchronous>, transform_indices = @transform_5, window_bounds = array<i64: 128, 8>}, {pipeline_mode = #tpu.pipeline_mode<synchronous>, transform_indices = @transform_6, window_bounds = array<i64: 8, 64>}, {transform_indices = @transform_7, window_bounds = array<i64: 256, 64>}]} {
    %c0 = arith.constant 0 : index
    %c0_0 = arith.constant 0 : index
    %0 = vector.load %arg2[%c0, %c0_0] : memref<256x32xf32, #tpu.memory_space<vmem>>, vector<256x32xf32>
    %1 = arith.truncf %0 : vector<256x32xf32> to vector<256x32xbf16>
    %c0_1 = arith.constant 0 : index
    %c0_2 = arith.constant 0 : index
    %2 = vector.load %arg4[%c0_1, %c0_2] : memref<32x8xbf16, #tpu.memory_space<vmem>>, vector<32x8xbf16>
    %cst = arith.constant dense<0.000000e+00> : vector<256x8xf32>
    %3 = tpu.matmul %1, %2, %cst {dimension_numbers = #tpu.dot_dimension_numbers<[1], [0], [0], [1], [0, 0, 1, 1], [], []>} : vector<256x32xbf16>, vector<32x8xbf16>, vector<256x8xf32> -> vector<256x8xf32>
    %4 = arith.truncf %3 : vector<256x8xf32> to vector<256x8xbf16>
    %c0_3 = arith.constant 0 : index
    %c0_4 = arith.constant 0 : index
    %5 = vector.load %arg5[%c0_3, %c0_4] : memref<8x64xbf16, #tpu.memory_space<vmem>>, vector<8x64xbf16>
    %cst_5 = arith.constant dense<0.000000e+00> : vector<256x64xf32>
    %6 = tpu.matmul %4, %5, %cst_5 {dimension_numbers = #tpu.dot_dimension_numbers<[1], [0], [0], [1], [0, 0, 1, 1], [], []>} : vector<256x8xbf16>, vector<8x64xbf16>, vector<256x64xf32> -> vector<256x64xf32>
    %c0_6 = arith.constant 0 : index
    %c0_7 = arith.constant 0 : index
    %7 = vector.load %arg3[%c0_6, %c0_7] : memref<256x128xf32, #tpu.memory_space<vmem>>, vector<256x128xf32>
    %8 = arith.truncf %7 : vector<256x128xf32> to vector<256x128xbf16>
    %c0_8 = arith.constant 0 : index
    %c0_9 = arith.constant 0 : index
    %9 = vector.load %arg6[%c0_8, %c0_9] : memref<128x8xbf16, #tpu.memory_space<vmem>>, vector<128x8xbf16>
    %cst_10 = arith.constant dense<0.000000e+00> : vector<256x8xf32>
    %10 = tpu.matmul %8, %9, %cst_10 {dimension_numbers = #tpu.dot_dimension_numbers<[1], [0], [0], [1], [0, 0, 1, 1], [], []>} : vector<256x128xbf16>, vector<128x8xbf16>, vector<256x8xf32> -> vector<256x8xf32>
    %11 = arith.truncf %10 : vector<256x8xf32> to vector<256x8xbf16>
    %c0_11 = arith.constant 0 : index
    %c0_12 = arith.constant 0 : index
    %12 = vector.load %arg7[%c0_11, %c0_12] : memref<8x64xbf16, #tpu.memory_space<vmem>>, vector<8x64xbf16>
    %cst_13 = arith.constant dense<0.000000e+00> : vector<256x64xf32>
    %13 = tpu.matmul %11, %12, %cst_13 {dimension_numbers = #tpu.dot_dimension_numbers<[1], [0], [0], [1], [0, 0, 1, 1], [], []>} : vector<256x8xbf16>, vector<8x64xbf16>, vector<256x64xf32> -> vector<256x64xf32>
    %c0_14 = arith.constant 0 : index
    %c0_15 = arith.constant 0 : index
    %14 = vector.load %arg1[%c0_14, %c0_15] : memref<256x64xf32, #tpu.memory_space<vmem>>, vector<256x64xf32>
    %15 = arith.mulf %14, %6 : vector<256x64xf32>
    %16 = arith.mulf %15, %13 : vector<256x64xf32>
    %c0_16 = arith.constant 0 : index
    %c0_17 = arith.constant 0 : index
    %17 = vector.load %arg8[%c0_16, %c0_17] : memref<256x64xf32, #tpu.memory_space<vmem>>, vector<256x64xf32>
    tpu.vector_store %arg8[%c0_16, %c0_17], %16 {strides = array<i32>} : memref<256x64xf32, #tpu.memory_space<vmem>>, vector<256x64xf32>,
    return
  }
  func.func @transform_0(%arg0: i32) -> (i32, i32) {
    %c0_i32 = arith.constant 0 : i32
    %c0_i32_0 = arith.constant 0 : i32
    return %arg0, %c0_i32 : i32, i32
  }
  func.func @transform_1(%arg0: i32) -> (i32, i32) {
    %c0_i32 = arith.constant 0 : i32
    %c0_i32_0 = arith.constant 0 : i32
    return %arg0, %c0_i32 : i32, i32
  }
  func.func @transform_2(%arg0: i32) -> (i32, i32) {
    %c0_i32 = arith.constant 0 : i32
    %c0_i32_0 = arith.constant 0 : i32
    return %arg0, %c0_i32 : i32, i32
  }
  func.func @transform_3(%arg0: i32) -> (i32, i32) {
    %c0_i32 = arith.constant 0 : i32
    %c0_i32_0 = arith.constant 0 : i32
    %c0_i32_1 = arith.constant 0 : i32
    return %c0_i32, %c0_i32_0 : i32, i32
  }
  func.func @transform_4(%arg0: i32) -> (i32, i32) {
    %c0_i32 = arith.constant 0 : i32
    %c0_i32_0 = arith.constant 0 : i32
    %c0_i32_1 = arith.constant 0 : i32
    return %c0_i32, %c0_i32_0 : i32, i32
  }
  func.func @transform_5(%arg0: i32) -> (i32, i32) {
    %c0_i32 = arith.constant 0 : i32
    %c0_i32_0 = arith.constant 0 : i32
    %c0_i32_1 = arith.constant 0 : i32
    return %c0_i32, %c0_i32_0 : i32, i32
  }
  func.func @transform_6(%arg0: i32) -> (i32, i32) {
    %c0_i32 = arith.constant 0 : i32
    %c0_i32_0 = arith.constant 0 : i32
    %c0_i32_1 = arith.constant 0 : i32
    return %c0_i32, %c0_i32_0 : i32, i32
  }
  func.func @transform_7(%arg0: i32) -> (i32, i32) {
    %c0_i32 = arith.constant 0 : i32
    %c0_i32_0 = arith.constant 0 : i32
    return %arg0, %c0_i32 : i32, i32
  }
}

module attributes {stable_mosaic.version = 11 : i64} {
  func.func @edge_post_kernel(%arg0: i32, %arg1: memref<200x128xf32, #tpu.memory_space<vmem>>, %arg2: memref<200x64xf32, #tpu.memory_space<vmem>>, %arg3: memref<200x128xf32, #tpu.memory_space<vmem>>, %arg4: memref<200x8xf32, #tpu.memory_space<vmem>>, %arg5: memref<64x128xbf16, #tpu.memory_space<vmem>>, %arg6: memref<128x128xbf16, #tpu.memory_space<vmem>>, %arg7: memref<1x128xf32, #tpu.memory_space<vmem>>, %arg8: memref<128x128xbf16, #tpu.memory_space<vmem>>, %arg9: memref<1x128xf32, #tpu.memory_space<vmem>>, %arg10: memref<128x128xbf16, #tpu.memory_space<vmem>>, %arg11: memref<1x128xf32, #tpu.memory_space<vmem>>, %arg12: memref<128x128xbf16, #tpu.memory_space<vmem>>, %arg13: memref<1x128xf32, #tpu.memory_space<vmem>>, %arg14: memref<128x128xbf16, #tpu.memory_space<vmem>>, %arg15: memref<1x128xf32, #tpu.memory_space<vmem>>, %arg16: memref<8x128xbf16, #tpu.memory_space<vmem>>, %arg17: memref<200x128xf32, #tpu.memory_space<vmem>>, %arg18: memref<200x128xf32, #tpu.memory_space<vmem>>) attributes {dimension_semantics = [#tpu.dimension_semantics<parallel>], iteration_bounds = array<i64: 1>, scalar_prefetch = 0 : i64, scratch_operands = 0 : i64, tpu.core_type = #tpu.core_type<tc>, window_params = [{transform_indices = @transform_0, window_bounds = array<i64: 200, 128>}, {transform_indices = @transform_1, window_bounds = array<i64: 200, 64>}, {transform_indices = @transform_2, window_bounds = array<i64: 200, 128>}, {transform_indices = @transform_3, window_bounds = array<i64: 200, 8>}, {pipeline_mode = #tpu.pipeline_mode<synchronous>, transform_indices = @transform_4, window_bounds = array<i64: 64, 128>}, {pipeline_mode = #tpu.pipeline_mode<synchronous>, transform_indices = @transform_5, window_bounds = array<i64: 128, 128>}, {pipeline_mode = #tpu.pipeline_mode<synchronous>, transform_indices = @transform_6, window_bounds = array<i64: 1, 128>}, {pipeline_mode = #tpu.pipeline_mode<synchronous>, transform_indices = @transform_7, window_bounds = array<i64: 128, 128>}, {pipeline_mode = #tpu.pipeline_mode<synchronous>, transform_indices = @transform_8, window_bounds = array<i64: 1, 128>}, {pipeline_mode = #tpu.pipeline_mode<synchronous>, transform_indices = @transform_9, window_bounds = array<i64: 128, 128>}, {pipeline_mode = #tpu.pipeline_mode<synchronous>, transform_indices = @transform_10, window_bounds = array<i64: 1, 128>}, {pipeline_mode = #tpu.pipeline_mode<synchronous>, transform_indices = @transform_11, window_bounds = array<i64: 128, 128>}, {pipeline_mode = #tpu.pipeline_mode<synchronous>, transform_indices = @transform_12, window_bounds = array<i64: 1, 128>}, {pipeline_mode = #tpu.pipeline_mode<synchronous>, transform_indices = @transform_13, window_bounds = array<i64: 128, 128>}, {pipeline_mode = #tpu.pipeline_mode<synchronous>, transform_indices = @transform_14, window_bounds = array<i64: 1, 128>}, {pipeline_mode = #tpu.pipeline_mode<synchronous>, transform_indices = @transform_15, window_bounds = array<i64: 8, 128>}, {transform_indices = @transform_16, window_bounds = array<i64: 200, 128>}, {transform_indices = @transform_17, window_bounds = array<i64: 200, 128>}]} {
    %c0 = arith.constant 0 : index
    %c0_0 = arith.constant 0 : index
    %0 = vector.load %arg2[%c0, %c0_0] : memref<200x64xf32, #tpu.memory_space<vmem>>, vector<200x64xf32>
    %1 = arith.truncf %0 : vector<200x64xf32> to vector<200x64xbf16>
    %c0_1 = arith.constant 0 : index
    %c0_2 = arith.constant 0 : index
    %2 = vector.load %arg5[%c0_1, %c0_2] : memref<64x128xbf16, #tpu.memory_space<vmem>>, vector<64x128xbf16>
    %cst = arith.constant dense<0.000000e+00> : vector<200x128xf32>
    %3 = tpu.matmul %1, %2, %cst {dimension_numbers = #tpu.dot_dimension_numbers<[1], [0], [0], [1], [0, 0, 1, 1], [], []>} : vector<200x64xbf16>, vector<64x128xbf16>, vector<200x128xf32> -> vector<200x128xf32>
    %4 = arith.negf %3 : vector<200x128xf32>
    %5 = math.exp %4 : vector<200x128xf32>
    %cst_3 = arith.constant 1.000000e+00 : f32
    %6 = vector.broadcast %cst_3 : f32 to vector<200x128xf32>
    %7 = arith.addf %6, %5 : vector<200x128xf32>
    %8 = arith.divf %6, %7 : vector<200x128xf32>
    %9 = arith.mulf %3, %8 : vector<200x128xf32>
    %c0_4 = arith.constant 0 : index
    %c0_5 = arith.constant 0 : index
    %10 = vector.load %arg1[%c0_4, %c0_5] : memref<200x128xf32, #tpu.memory_space<vmem>>, vector<200x128xf32>
    %11 = arith.addf %10, %9 : vector<200x128xf32>
    %12 = arith.truncf %11 : vector<200x128xf32> to vector<200x128xbf16>
    %c0_6 = arith.constant 0 : index
    %c0_7 = arith.constant 0 : index
    %13 = vector.load %arg6[%c0_6, %c0_7] : memref<128x128xbf16, #tpu.memory_space<vmem>>, vector<128x128xbf16>
    %cst_8 = arith.constant dense<0.000000e+00> : vector<200x128xf32>
    %14 = tpu.matmul %12, %13, %cst_8 {dimension_numbers = #tpu.dot_dimension_numbers<[1], [0], [0], [1], [0, 0, 1, 1], [], []>} : vector<200x128xbf16>, vector<128x128xbf16>, vector<200x128xf32> -> vector<200x128xf32>
    %c0_9 = arith.constant 0 : index
    %c0_10 = arith.constant 0 : index
    %15 = vector.load %arg7[%c0_9, %c0_10] : memref<1x128xf32, #tpu.memory_space<vmem>>, vector<1x128xf32>
    %16 = vector.broadcast %15 : vector<1x128xf32> to vector<200x128xf32>
    %17 = arith.addf %14, %16 : vector<200x128xf32>
    %18 = arith.negf %17 : vector<200x128xf32>
    %19 = math.exp %18 : vector<200x128xf32>
    %cst_11 = arith.constant 1.000000e+00 : f32
    %20 = vector.broadcast %cst_11 : f32 to vector<200x128xf32>
    %21 = arith.addf %20, %19 : vector<200x128xf32>
    %22 = arith.divf %20, %21 : vector<200x128xf32>
    %23 = arith.mulf %17, %22 : vector<200x128xf32>
    %24 = arith.truncf %23 : vector<200x128xf32> to vector<200x128xbf16>
    %c0_12 = arith.constant 0 : index
    %c0_13 = arith.constant 0 : index
    %25 = vector.load %arg8[%c0_12, %c0_13] : memref<128x128xbf16, #tpu.memory_space<vmem>>, vector<128x128xbf16>
    %cst_14 = arith.constant dense<0.000000e+00> : vector<200x128xf32>
    %26 = tpu.matmul %24, %25, %cst_14 {dimension_numbers = #tpu.dot_dimension_numbers<[1], [0], [0], [1], [0, 0, 1, 1], [], []>} : vector<200x128xbf16>, vector<128x128xbf16>, vector<200x128xf32> -> vector<200x128xf32>
    %c0_15 = arith.constant 0 : index
    %c0_16 = arith.constant 0 : index
    %27 = vector.load %arg9[%c0_15, %c0_16] : memref<1x128xf32, #tpu.memory_space<vmem>>, vector<1x128xf32>
    %28 = vector.broadcast %27 : vector<1x128xf32> to vector<200x128xf32>
    %29 = arith.addf %26, %28 : vector<200x128xf32>
    %30 = arith.negf %29 : vector<200x128xf32>
    %31 = math.exp %30 : vector<200x128xf32>
    %cst_17 = arith.constant 1.000000e+00 : f32
    %32 = vector.broadcast %cst_17 : f32 to vector<200x128xf32>
    %33 = arith.addf %32, %31 : vector<200x128xf32>
    %34 = arith.divf %32, %33 : vector<200x128xf32>
    %35 = arith.mulf %29, %34 : vector<200x128xf32>
    %36 = arith.addf %11, %35 : vector<200x128xf32>
    %37 = arith.truncf %36 : vector<200x128xf32> to vector<200x128xbf16>
    %c0_18 = arith.constant 0 : index
    %c0_19 = arith.constant 0 : index
    %38 = vector.load %arg10[%c0_18, %c0_19] : memref<128x128xbf16, #tpu.memory_space<vmem>>, vector<128x128xbf16>
    %cst_20 = arith.constant dense<0.000000e+00> : vector<200x128xf32>
    %39 = tpu.matmul %37, %38, %cst_20 {dimension_numbers = #tpu.dot_dimension_numbers<[1], [0], [0], [1], [0, 0, 1, 1], [], []>} : vector<200x128xbf16>, vector<128x128xbf16>, vector<200x128xf32> -> vector<200x128xf32>
    %c0_21 = arith.constant 0 : index
    %c0_22 = arith.constant 0 : index
    %40 = vector.load %arg11[%c0_21, %c0_22] : memref<1x128xf32, #tpu.memory_space<vmem>>, vector<1x128xf32>
    %41 = vector.broadcast %40 : vector<1x128xf32> to vector<200x128xf32>
    %42 = arith.addf %39, %41 : vector<200x128xf32>
    %43 = arith.negf %42 : vector<200x128xf32>
    %44 = math.exp %43 : vector<200x128xf32>
    %cst_23 = arith.constant 1.000000e+00 : f32
    %45 = vector.broadcast %cst_23 : f32 to vector<200x128xf32>
    %46 = arith.addf %45, %44 : vector<200x128xf32>
    %47 = arith.divf %45, %46 : vector<200x128xf32>
    %48 = arith.mulf %42, %47 : vector<200x128xf32>
    %c0_24 = arith.constant 0 : index
    %c0_25 = arith.constant 0 : index
    %49 = vector.load %arg3[%c0_24, %c0_25] : memref<200x128xf32, #tpu.memory_space<vmem>>, vector<200x128xf32>
    %50 = arith.addf %48, %49 : vector<200x128xf32>
    %51 = arith.truncf %50 : vector<200x128xf32> to vector<200x128xbf16>
    %c0_26 = arith.constant 0 : index
    %c0_27 = arith.constant 0 : index
    %52 = vector.load %arg12[%c0_26, %c0_27] : memref<128x128xbf16, #tpu.memory_space<vmem>>, vector<128x128xbf16>
    %cst_28 = arith.constant dense<0.000000e+00> : vector<200x128xf32>
    %53 = tpu.matmul %51, %52, %cst_28 {dimension_numbers = #tpu.dot_dimension_numbers<[1], [0], [0], [1], [0, 0, 1, 1], [], []>} : vector<200x128xbf16>, vector<128x128xbf16>, vector<200x128xf32> -> vector<200x128xf32>
    %c0_29 = arith.constant 0 : index
    %c0_30 = arith.constant 0 : index
    %54 = vector.load %arg13[%c0_29, %c0_30] : memref<1x128xf32, #tpu.memory_space<vmem>>, vector<1x128xf32>
    %55 = vector.broadcast %54 : vector<1x128xf32> to vector<200x128xf32>
    %56 = arith.addf %53, %55 : vector<200x128xf32>
    %57 = arith.negf %56 : vector<200x128xf32>
    %58 = math.exp %57 : vector<200x128xf32>
    %cst_31 = arith.constant 1.000000e+00 : f32
    %59 = vector.broadcast %cst_31 : f32 to vector<200x128xf32>
    %60 = arith.addf %59, %58 : vector<200x128xf32>
    %61 = arith.divf %59, %60 : vector<200x128xf32>
    %62 = arith.mulf %56, %61 : vector<200x128xf32>
    %63 = arith.truncf %62 : vector<200x128xf32> to vector<200x128xbf16>
    %c0_32 = arith.constant 0 : index
    %c0_33 = arith.constant 0 : index
    %64 = vector.load %arg14[%c0_32, %c0_33] : memref<128x128xbf16, #tpu.memory_space<vmem>>, vector<128x128xbf16>
    %cst_34 = arith.constant dense<0.000000e+00> : vector<200x128xf32>
    %65 = tpu.matmul %63, %64, %cst_34 {dimension_numbers = #tpu.dot_dimension_numbers<[1], [0], [0], [1], [0, 0, 1, 1], [], []>} : vector<200x128xbf16>, vector<128x128xbf16>, vector<200x128xf32> -> vector<200x128xf32>
    %c0_35 = arith.constant 0 : index
    %c0_36 = arith.constant 0 : index
    %66 = vector.load %arg15[%c0_35, %c0_36] : memref<1x128xf32, #tpu.memory_space<vmem>>, vector<1x128xf32>
    %67 = vector.broadcast %66 : vector<1x128xf32> to vector<200x128xf32>
    %68 = arith.addf %65, %67 : vector<200x128xf32>
    %69 = arith.negf %68 : vector<200x128xf32>
    %70 = math.exp %69 : vector<200x128xf32>
    %cst_37 = arith.constant 1.000000e+00 : f32
    %71 = vector.broadcast %cst_37 : f32 to vector<200x128xf32>
    %72 = arith.addf %71, %70 : vector<200x128xf32>
    %73 = arith.divf %71, %72 : vector<200x128xf32>
    %74 = arith.mulf %68, %73 : vector<200x128xf32>
    %75 = arith.addf %50, %74 : vector<200x128xf32>
    %c0_38 = arith.constant 0 : index
    %c0_39 = arith.constant 0 : index
    %76 = vector.load %arg17[%c0_38, %c0_39] : memref<200x128xf32, #tpu.memory_space<vmem>>, vector<200x128xf32>
    tpu.vector_store %arg17[%c0_38, %c0_39], %75 {strides = array<i32>} : memref<200x128xf32, #tpu.memory_space<vmem>>, vector<200x128xf32>,
    %c0_40 = arith.constant 0 : index
    %c0_41 = arith.constant 0 : index
    %77 = vector.load %arg4[%c0_40, %c0_41] : memref<200x8xf32, #tpu.memory_space<vmem>>, vector<200x8xf32>
    %78 = arith.truncf %77 : vector<200x8xf32> to vector<200x8xbf16>
    %c0_42 = arith.constant 0 : index
    %c0_43 = arith.constant 0 : index
    %79 = vector.load %arg16[%c0_42, %c0_43] : memref<8x128xbf16, #tpu.memory_space<vmem>>, vector<8x128xbf16>
    %cst_44 = arith.constant dense<0.000000e+00> : vector<200x128xf32>
    %80 = tpu.matmul %78, %79, %cst_44 {dimension_numbers = #tpu.dot_dimension_numbers<[1], [0], [0], [1], [0, 0, 1, 1], [], []>} : vector<200x8xbf16>, vector<8x128xbf16>, vector<200x128xf32> -> vector<200x128xf32>
    %81 = arith.mulf %80, %75 : vector<200x128xf32>
    %c0_45 = arith.constant 0 : index
    %c0_46 = arith.constant 0 : index
    %82 = vector.load %arg18[%c0_45, %c0_46] : memref<200x128xf32, #tpu.memory_space<vmem>>, vector<200x128xf32>
    tpu.vector_store %arg18[%c0_45, %c0_46], %81 {strides = array<i32>} : memref<200x128xf32, #tpu.memory_space<vmem>>, vector<200x128xf32>,
    return
  }
  func.func @transform_0(%arg0: i32) -> (i32, i32) {
    %c0_i32 = arith.constant 0 : i32
    %c0_i32_0 = arith.constant 0 : i32
    return %arg0, %c0_i32 : i32, i32
  }
  func.func @transform_1(%arg0: i32) -> (i32, i32) {
    %c0_i32 = arith.constant 0 : i32
    %c0_i32_0 = arith.constant 0 : i32
    return %arg0, %c0_i32 : i32, i32
  }
  func.func @transform_2(%arg0: i32) -> (i32, i32) {
    %c0_i32 = arith.constant 0 : i32
    %c0_i32_0 = arith.constant 0 : i32
    return %arg0, %c0_i32 : i32, i32
  }
  func.func @transform_3(%arg0: i32) -> (i32, i32) {
    %c0_i32 = arith.constant 0 : i32
    %c0_i32_0 = arith.constant 0 : i32
    return %arg0, %c0_i32 : i32, i32
  }
  func.func @transform_4(%arg0: i32) -> (i32, i32) {
    %c0_i32 = arith.constant 0 : i32
    %c0_i32_0 = arith.constant 0 : i32
    %c0_i32_1 = arith.constant 0 : i32
    return %c0_i32, %c0_i32_0 : i32, i32
  }
  func.func @transform_5(%arg0: i32) -> (i32, i32) {
    %c0_i32 = arith.constant 0 : i32
    %c0_i32_0 = arith.constant 0 : i32
    %c0_i32_1 = arith.constant 0 : i32
    return %c0_i32, %c0_i32_0 : i32, i32
  }
  func.func @transform_6(%arg0: i32) -> (i32, i32) {
    %c0_i32 = arith.constant 0 : i32
    %c0_i32_0 = arith.constant 0 : i32
    %c0_i32_1 = arith.constant 0 : i32
    return %c0_i32, %c0_i32_0 : i32, i32
  }
  func.func @transform_7(%arg0: i32) -> (i32, i32) {
    %c0_i32 = arith.constant 0 : i32
    %c0_i32_0 = arith.constant 0 : i32
    %c0_i32_1 = arith.constant 0 : i32
    return %c0_i32, %c0_i32_0 : i32, i32
  }
  func.func @transform_8(%arg0: i32) -> (i32, i32) {
    %c0_i32 = arith.constant 0 : i32
    %c0_i32_0 = arith.constant 0 : i32
    %c0_i32_1 = arith.constant 0 : i32
    return %c0_i32, %c0_i32_0 : i32, i32
  }
  func.func @transform_9(%arg0: i32) -> (i32, i32) {
    %c0_i32 = arith.constant 0 : i32
    %c0_i32_0 = arith.constant 0 : i32
    %c0_i32_1 = arith.constant 0 : i32
    return %c0_i32, %c0_i32_0 : i32, i32
  }
  func.func @transform_10(%arg0: i32) -> (i32, i32) {
    %c0_i32 = arith.constant 0 : i32
    %c0_i32_0 = arith.constant 0 : i32
    %c0_i32_1 = arith.constant 0 : i32
    return %c0_i32, %c0_i32_0 : i32, i32
  }
  func.func @transform_11(%arg0: i32) -> (i32, i32) {
    %c0_i32 = arith.constant 0 : i32
    %c0_i32_0 = arith.constant 0 : i32
    %c0_i32_1 = arith.constant 0 : i32
    return %c0_i32, %c0_i32_0 : i32, i32
  }
  func.func @transform_12(%arg0: i32) -> (i32, i32) {
    %c0_i32 = arith.constant 0 : i32
    %c0_i32_0 = arith.constant 0 : i32
    %c0_i32_1 = arith.constant 0 : i32
    return %c0_i32, %c0_i32_0 : i32, i32
  }
  func.func @transform_13(%arg0: i32) -> (i32, i32) {
    %c0_i32 = arith.constant 0 : i32
    %c0_i32_0 = arith.constant 0 : i32
    %c0_i32_1 = arith.constant 0 : i32
    return %c0_i32, %c0_i32_0 : i32, i32
  }
  func.func @transform_14(%arg0: i32) -> (i32, i32) {
    %c0_i32 = arith.constant 0 : i32
    %c0_i32_0 = arith.constant 0 : i32
    %c0_i32_1 = arith.constant 0 : i32
    return %c0_i32, %c0_i32_0 : i32, i32
  }
  func.func @transform_15(%arg0: i32) -> (i32, i32) {
    %c0_i32 = arith.constant 0 : i32
    %c0_i32_0 = arith.constant 0 : i32
    %c0_i32_1 = arith.constant 0 : i32
    return %c0_i32, %c0_i32_0 : i32, i32
  }
  func.func @transform_16(%arg0: i32) -> (i32, i32) {
    %c0_i32 = arith.constant 0 : i32
    %c0_i32_0 = arith.constant 0 : i32
    return %arg0, %c0_i32 : i32, i32
  }
  func.func @transform_17(%arg0: i32) -> (i32, i32) {
    %c0_i32 = arith.constant 0 : i32
    %c0_i32_0 = arith.constant 0 : i32
    return %arg0, %c0_i32 : i32, i32
  }
}

</mosaic_0001>

<llo_original>
// kernel: update_e_forward.4
$region0: #{update_e_forward.4}
  #allocation0 [shape = 'u32[]', space=smem, size = 0x4, offset = 0x4, fixed_abs, tag = 'smem constant byte address 0x4 - core index']
  #allocation1 [shape = 'u32[144,128]{1,0:T(1,128)}', space=vmem, size = 0x12000, scoped, tag = 'internal scratch']
  %s0 = inlined_call_operand.vmem [shape: f32[768,64], index: 0, kind: input, shape index: {}]
  %s1 = inlined_call_operand.vmem [shape: f32[768,32], index: 1, kind: input, shape index: {}]
  %s2 = inlined_call_operand.vmem [shape: f32[768,128], index: 2, kind: input, shape index: {}]
  %s3 = inlined_call_operand.vmem [shape: bf16[32,8], index: 3, kind: input, shape index: {}]
  %s4 = inlined_call_operand.vmem [shape: bf16[8,64], index: 4, kind: input, shape index: {}]
  %s5 = inlined_call_operand.vmem [shape: bf16[128,8], index: 5, kind: input, shape index: {}]
  %s6 = inlined_call_operand.vmem [shape: bf16[8,64], index: 6, kind: input, shape index: {}]
  %s7 = inlined_call_operand.vmem [shape: f32[768,64], index: 7, kind: output, shape index: {}]
  %s8 = sld [smem:[#allocation0]]
  $region61: #{update_e_forward.4} parent=0
    _
  %s10 = ssub.s32 1, %s8
  %s11 = scalar_select 0, %s10, %s8
  loop: start=0, step=1, limit=5
  $region2: #{update_e_forward.4} parent=0 // loop_pre_header
    _
  $region3: #{update_e_forward.4} parent=0 // loop_header
    %s13 = sphi 0, %s17
    %p14 = scmp.ge.s32.totalorder %s13, 5
    %s23 = sphi 0, %s25
    %s26 = sphi 0, %s23
    %s27 = sphi 0, %s26
    %s43 = sphi 0, %s27
    %s49 = sphi 0, %s51
    %s52 = sphi 0, %s49
    %s53 = sphi 0, %s52
    %s69 = sphi 0, %s53
    %s75 = sphi 0, %s77
    %s78 = sphi 0, %s75
    %s79 = sphi 0, %s78
    %s95 = sphi 0, %s79
    %s99 = sphi 0, %s99
    %s101 = sphi 0, %s99
    %s102 = sphi 0, %s101
    %s116 = sphi 0, %s102
    %s120 = sphi 0, %s120
    %s122 = sphi 0, %s120
    %s123 = sphi 0, %s122
    %s137 = sphi 0, %s123
    %s141 = sphi 0, %s141
    %s143 = sphi 0, %s141
    %s144 = sphi 0, %s143
    %s158 = sphi 0, %s144
    %s162 = sphi 0, %s162
    %s164 = sphi 0, %s162
    %s165 = sphi 0, %s164
    %s179 = sphi 0, %s165
    %s185 = sphi 0, %s187
    %s188 = sphi 0, %s185
    %s189 = sphi 0, %s188
    %s205 = sphi 0, %s189
  $region4: #{update_e_forward.4} parent=0 // loop_header_branch
    %16 = sbr.rel (%p14) target = $region8
  $region5: #{update_e_forward.4} parent=0 // loop_body
    %s18 = ssub.s32 %s13, 1
    %s19 = ssub.s32 %s13, 2
    %s20 = sadd.s32 %s13, 1
    %s21 = ssub.s32 %s13, %s20
    %p22 = scmp.eq.s32.totalorder %s21, 0
    %s24 = sadd.s32 %s23, 1
    %s25 = scalar_select %p22, %s23, %s24
    %p28 = pneg %p22
    %p29 = scmp.eq.s32.totalorder %s13, 2
    %p30 = por %p28, %p29
    %p31 = scmp.ne.s32.totalorder %s23, %s26
    %p32 = scmp.eq.s32.totalorder %s13, 0
    %p33 = por %p31, %p32
    %p34 = scmp.ne.s32.totalorder %s23, %s26
    %p35 = scmp.eq.s32.totalorder %s18, 2
    %p36 = por %p34, %p35
    %p37 = scmp.ne.s32.totalorder %s26, %s27
    %p38 = scmp.eq.s32.totalorder %s18, 0
    %p39 = por %p37, %p38
    %p40 = scmp.ne.s32.totalorder %s26, %s27
    %p41 = scmp.eq.s32.totalorder %s19, 2
    %p42 = por %p40, %p41
    %p44 = scmp.ne.s32.totalorder %s27, %s43
    %p45 = scmp.eq.s32.totalorder %s19, 0
    %p46 = por %p44, %p45
    %s47 = ssub.s32 %s13, %s20
    %p48 = scmp.eq.s32.totalorder %s47, 0
    %s50 = sadd.s32 %s49, 1
    %s51 = scalar_select %p48, %s49, %s50
    %p54 = pneg %p48
    %p55 = scmp.eq.s32.totalorder %s13, 2
    %p56 = por %p54, %p55
    %p57 = scmp.ne.s32.totalorder %s49, %s52
    %p58 = scmp.eq.s32.totalorder %s13, 0
    %p59 = por %p57, %p58
    %p60 = scmp.ne.s32.totalorder %s49, %s52
    %p61 = scmp.eq.s32.totalorder %s18, 2
    %p62 = por %p60, %p61
    %p63 = scmp.ne.s32.totalorder %s52, %s53
    %p64 = scmp.eq.s32.totalorder %s18, 0
    %p65 = por %p63, %p64
    %p66 = scmp.ne.s32.totalorder %s52, %s53
    %p67 = scmp.eq.s32.totalorder %s19, 2
    %p68 = por %p66, %p67
    %p70 = scmp.ne.s32.totalorder %s53, %s69
    %p71 = scmp.eq.s32.totalorder %s19, 0
    %p72 = por %p70, %p71
    %s73 = ssub.s32 %s13, %s20
    %p74 = scmp.eq.s32.totalorder %s73, 0
    %s76 = sadd.s32 %s75, 1
    %s77 = scalar_select %p74, %s75, %s76
    %p80 = pneg %p74
    %p81 = scmp.eq.s32.totalorder %s13, 2
    %p82 = por %p80, %p81
    %p83 = scmp.ne.s32.totalorder %s75, %s78
    %p84 = scmp.eq.s32.totalorder %s13, 0
    %p85 = por %p83, %p84
    %p86 = scmp.ne.s32.totalorder %s75, %s78
    %p87 = scmp.eq.s32.totalorder %s18, 2
    %p88 = por %p86, %p87
    %p89 = scmp.ne.s32.totalorder %s78, %s79
    %p90 = scmp.eq.s32.totalorder %s18, 0
    %p91 = por %p89, %p90
    %p92 = scmp.ne.s32.totalorder %s78, %s79
    %p93 = scmp.eq.s32.totalorder %s19, 2
    %p94 = por %p92, %p93
    %p96 = scmp.ne.s32.totalorder %s79, %s95
    %p97 = scmp.eq.s32.totalorder %s19, 0
    %p98 = por %p96, %p97
    %s100 = sadd.s32 %s99, 1
    %p103 = scmp.eq.s32.totalorder %s13, 2
    %p104 = scmp.ne.s32.totalorder %s99, %s101
    %p105 = scmp.eq.s32.totalorder %s13, 0
    %p106 = por %p104, %p105
    %p107 = scmp.ne.s32.totalorder %s99, %s101
    %p108 = scmp.eq.s32.totalorder %s18, 2
    %p109 = por %p107, %p108
    %p110 = scmp.ne.s32.totalorder %s101, %s102
    %p111 = scmp.eq.s32.totalorder %s18, 0
    %p112 = por %p110, %p111
    %p113 = scmp.ne.s32.totalorder %s101, %s102
    %p114 = scmp.eq.s32.totalorder %s19, 2
    %p115 = por %p113, %p114
    %p117 = scmp.ne.s32.totalorder %s102, %s116
    %p118 = scmp.eq.s32.totalorder %s19, 0
    %p119 = por %p117, %p118
    %s121 = sadd.s32 %s120, 1
    %p124 = scmp.eq.s32.totalorder %s13, 2
    %p125 = scmp.ne.s32.totalorder %s120, %s122
    %p126 = scmp.eq.s32.totalorder %s13, 0
    %p127 = por %p125, %p126
    %p128 = scmp.ne.s32.totalorder %s120, %s122
    %p129 = scmp.eq.s32.totalorder %s18, 2
    %p130 = por %p128, %p129
    %p131 = scmp.ne.s32.totalorder %s122, %s123
    %p132 = scmp.eq.s32.totalorder %s18, 0
    %p133 = por %p131, %p132
    %p134 = scmp.ne.s32.totalorder %s122, %s123
    %p135 = scmp.eq.s32.totalorder %s19, 2
    %p136 = por %p134, %p135
    %p138 = scmp.ne.s32.totalorder %s123, %s137
    %p139 = scmp.eq.s32.totalorder %s19, 0
    %p140 = por %p138, %p139
    %s142 = sadd.s32 %s141, 1
    %p145 = scmp.eq.s32.totalorder %s13, 2
    %p146 = scmp.ne.s32.totalorder %s141, %s143
    %p147 = scmp.eq.s32.totalorder %s13, 0
    %p148 = por %p146, %p147
    %p149 = scmp.ne.s32.totalorder %s141, %s143
    %p150 = scmp.eq.s32.totalorder %s18, 2
    %p151 = por %p149, %p150
    %p152 = scmp.ne.s32.totalorder %s143, %s144
    %p153 = scmp.eq.s32.totalorder %s18, 0
    %p154 = por %p152, %p153
    %p155 = scmp.ne.s32.totalorder %s143, %s144
    %p156 = scmp.eq.s32.totalorder %s19, 2
    %p157 = por %p155, %p156
    %p159 = scmp.ne.s32.totalorder %s144, %s158
    %p160 = scmp.eq.s32.totalorder %s19, 0
    %p161 = por %p159, %p160
    %s163 = sadd.s32 %s162, 1
    %p166 = scmp.eq.s32.totalorder %s13, 2
    %p167 = scmp.ne.s32.totalorder %s162, %s164
    %p168 = scmp.eq.s32.totalorder %s13, 0
    %p169 = por %p167, %p168
    %p170 = scmp.ne.s32.totalorder %s162, %s164
    %p171 = scmp.eq.s32.totalorder %s18, 2
    %p172 = por %p170, %p171
    %p173 = scmp.ne.s32.totalorder %s164, %s165
    %p174 = scmp.eq.s32.totalorder %s18, 0
    %p175 = por %p173, %p174
    %p176 = scmp.ne.s32.totalorder %s164, %s165
    %p177 = scmp.eq.s32.totalorder %s19, 2
    %p178 = por %p176, %p177
    %p180 = scmp.ne.s32.totalorder %s165, %s179
    %p181 = scmp.eq.s32.totalorder %s19, 0
    %p182 = por %p180, %p181
    %s183 = ssub.s32 %s13, %s20
    %p184 = scmp.eq.s32.totalorder %s183, 0
    %s186 = sadd.s32 %s185, 1
    %s187 = scalar_select %p184, %s185, %s186
    %p190 = pneg %p184
    %p191 = scmp.eq.s32.totalorder %s13, 2
    %p192 = por %p190, %p191
    %p193 = scmp.ne.s32.totalorder %s185, %s188
    %p194 = scmp.eq.s32.totalorder %s13, 0
    %p195 = por %p193, %p194
    %p196 = scmp.ne.s32.totalorder %s185, %s188
    %p197 = scmp.eq.s32.totalorder %s18, 2
    %p198 = por %p196, %p197
    %p199 = scmp.ne.s32.totalorder %s188, %s189
    %p200 = scmp.eq.s32.totalorder %s18, 0
    %p201 = por %p199, %p200
    %p202 = scmp.ne.s32.totalorder %s188, %s189
    %p203 = scmp.eq.s32.totalorder %s19, 2
    %p204 = por %p202, %p203
    %p206 = scmp.ne.s32.totalorder %s189, %s205
    %p207 = scmp.eq.s32.totalorder %s19, 0
    %p208 = por %p206, %p207
    %p209 = scmp.le.s32.totalorder 1, %s13
    %p210 = scmp.lt.s32.totalorder %s13, 4
    %p211 = pnand %p209, %p210
    %p212 = pneg %p211
    // Predicated region
    $region9: #{update_e_forward.4} parent=5 // pred_check
      _
    $region10: #{update_e_forward.4} parent=5 // pred_check_branch
      %214 = sbr.rel (%p211) target = $region12
    $region11: #{update_e_forward.4} parent=5 // pred_region
      %s215 = ssub.s32 %s13, 1
      // Predicated region
      $region13: #{update_e_forward.4} parent=11 // pred_check
        %p216 = pneg %p112
      $region14: #{update_e_forward.4} parent=11 // pred_check_branch
        %218 = sbr.rel (%p216) target = $region16
      $region15: #{update_e_forward.4} parent=11 // pred_region
        _
      $region16: #{update_e_forward.4} parent=11 // pred_fallthru
        _
      // Predicated region
      $region17: #{update_e_forward.4} parent=11 // pred_check
        %p219 = pneg %p133
      $region18: #{update_e_forward.4} parent=11 // pred_check_branch
        %221 = sbr.rel (%p219) target = $region20
      $region19: #{update_e_forward.4} parent=11 // pred_region
        _
      $region20: #{update_e_forward.4} parent=11 // pred_fallthru
        _
      // Predicated region
      $region21: #{update_e_forward.4} parent=11 // pred_check
        %p222 = pneg %p154
      $region22: #{update_e_forward.4} parent=11 // pred_check_branch
        %224 = sbr.rel (%p222) target = $region24
      $region23: #{update_e_forward.4} parent=11 // pred_region
        _
      $region24: #{update_e_forward.4} parent=11 // pred_fallthru
        _
      // Predicated region
      $region25: #{update_e_forward.4} parent=11 // pred_check
        %p225 = pneg %p175
      $region26: #{update_e_forward.4} parent=11 // pred_check_branch
        %227 = sbr.rel (%p225) target = $region28
      $region27: #{update_e_forward.4} parent=11 // pred_region
        _
      $region28: #{update_e_forward.4} parent=11 // pred_fallthru
        _
    $region12: #{update_e_forward.4} parent=5 // pred_fallthru
      _
    %p228 = scmp.lt.s32.totalorder %s13, 3
    // Predicated region
    $region29: #{update_e_forward.4} parent=5 // pred_check
      %p229 = pneg %p228
    $region30: #{update_e_forward.4} parent=5 // pred_check_branch
      %231 = sbr.rel (%p229) target = $region32
    $region31: #{update_e_forward.4} parent=5 // pred_region
      // Predicated region
      $region33: #{update_e_forward.4} parent=31 // pred_check
        %p232 = pneg %p33
      $region34: #{update_e_forward.4} parent=31 // pred_check_branch
        %234 = sbr.rel (%p232) target = $region36
      $region35: #{update_e_forward.4} parent=31 // pred_region
        %s235 = smul.u32 32, %s13
        %p236 = scmp.lt.s32.totalorder %s235, 95
        %s237 = scalar_select %p236, %s235, 95
        %s238 = smul.addr %s237, 8
        %s239 = scalar_lea.vmem %s0, %s238
        %s240 = smul.u32 32, %s13
      $region36: #{update_e_forward.4} parent=31 // pred_fallthru
        _
      // Predicated region
      $region37: #{update_e_forward.4} parent=31 // pred_check
        %p241 = pneg %p59
      $region38: #{update_e_forward.4} parent=31 // pred_check_branch
        %243 = sbr.rel (%p241) target = $region40
      $region39: #{update_e_forward.4} parent=31 // pred_region
        %s244 = smul.u32 32, %s13
        %p245 = scmp.lt.s32.totalorder %s244, 95
        %s246 = scalar_select %p245, %s244, 95
        %s247 = smul.addr %s246, 8
        %s248 = scalar_lea.vmem %s1, %s247
        %s249 = smul.u32 32, %s13
      $region40: #{update_e_forward.4} parent=31 // pred_fallthru
        _
      // Predicated region
      $region41: #{update_e_forward.4} parent=31 // pred_check
        %p250 = pneg %p85
      $region42: #{update_e_forward.4} parent=31 // pred_check_branch
        %252 = sbr.rel (%p250) target = $region44
      $region43: #{update_e_forward.4} parent=31 // pred_region
        %s253 = smul.u32 32, %s13
        %p254 = scmp.lt.s32.totalorder %s253, 95
        %s255 = scalar_select %p254, %s253, 95
        %s256 = smul.addr %s255, 8
        %s257 = scalar_lea.vmem %s2, %s256
        %s258 = smul.u32 32, %s13
      $region44: #{update_e_forward.4} parent=31 // pred_fallthru
        _
    $region32: #{update_e_forward.4} parent=5 // pred_fallthru
      _
    %p259 = scmp.le.s32.totalorder 1, %s13
    %p260 = scmp.lt.s32.totalorder %s13, 4
    %p261 = pnand %p259, %p260
    %p262 = pneg %p261
    // Predicated region
    $region45: #{update_e_forward.4} parent=5 // pred_check
      _
    $region46: #{update_e_forward.4} parent=5 // pred_check_branch
      %264 = sbr.rel (%p261) target = $region48
    $region47: #{update_e_forward.4} parent=5 // pred_region
      %s265 = ssub.s32 %s13, 1
      %s266 = smul.u32 32, %s18
      %p267 = scmp.lt.s32.totalorder %s266, 95
      %s268 = scalar_select %p267, %s266, 95
      %s269 = smul.addr %s268, 8
      %s270 = scalar_lea.vmem %s0, %s269
      %p271 = pneg %p39
      %p272 = pneg %p36
      %s273 = smul.u32 32, %s18
      %p274 = scmp.lt.s32.totalorder %s273, 95
      %s275 = scalar_select %p274, %s273, 95
      %s276 = smul.addr %s275, 8
      %s277 = scalar_lea.vmem %s1, %s276
      %p278 = pneg %p65
      %p279 = pneg %p62
      %s280 = smul.u32 32, %s18
      %p281 = scmp.lt.s32.totalorder %s280, 95
      %s282 = scalar_select %p281, %s280, 95
      %s283 = smul.addr %s282, 8
      %s284 = scalar_lea.vmem %s2, %s283
      %p285 = pneg %p91
      %p286 = pneg %p88
      %p287 = pneg %p112
      %p288 = pneg %p109
      %p289 = pneg %p133
      %p290 = pneg %p130
      %p291 = pneg %p154
      %p292 = pneg %p151
      %p293 = pneg %p175
      %p294 = pneg %p172
      %p295 = pneg %p201
      %p296 = pneg %p198
      %s297 = smul.u32 32, %s18
      %p298 = scmp.lt.s32.totalorder %s297, 95
      %s299 = scalar_select %p298, %s297, 95
      %s300 = smul.addr %s299, 8
      %s301 = scalar_lea.vmem %s7, %s300
      %s302 = smul.u32 32, %s18
      %p303 = scmp.lt.s32.totalorder %s302, 95
      %s304 = scalar_select %p303, %s302, 95
      %s305 = smul.addr %s304, 8
      %s306 = scalar_lea.vmem %s0, %s305
      %s307 = smul.u32 32, %s18
      %s308 = smul.u32 32, %s18
      %p309 = scmp.lt.s32.totalorder %s308, 95
      %s310 = scalar_select %p309, %s308, 95
      %s311 = smul.addr %s310, 8
      %s312 = scalar_lea.vmem %s1, %s311
      %s313 = smul.u32 32, %s18
      %s314 = smul.u32 32, %s18
      %p315 = scmp.lt.s32.totalorder %s314, 95
      %s316 = scalar_select %p315, %s314, 95
      %s317 = smul.addr %s316, 8
      %s318 = scalar_lea.vmem %s2, %s317
      %s319 = smul.u32 32, %s18
      %s320 = smul.u32 32, %s18
      %p321 = scmp.lt.s32.totalorder %s320, 95
      %s322 = scalar_select %p321, %s320, 95
      %s323 = smul.addr %s322, 8
      %s324 = scalar_lea.vmem %s7, %s323
      %s325 = smul.u32 32, %s18
      %v327 = vld [vmem:[%s312] sm:$0xff]
      %v328 = vld [vmem:[%s312 + $0x8] sm:$0xff]
      %v329 = vld [vmem:[%s312 + $0x10] sm:$0xff]
      %v330 = vld [vmem:[%s312 + $0x18] sm:$0xff]
      %v331 = vld [vmem:[%s312 + $0x20] sm:$0xff]
      %v332 = vld [vmem:[%s312 + $0x28] sm:$0xff]
      %v333 = vld [vmem:[%s312 + $0x30] sm:$0xff]
      %v334 = vld [vmem:[%s312 + $0x38] sm:$0xff]
      %v335 = vld [vmem:[%s312 + $0x40] sm:$0xff]
      %v336 = vld [vmem:[%s312 + $0x48] sm:$0xff]
      %v337 = vld [vmem:[%s312 + $0x50] sm:$0xff]
      %v338 = vld [vmem:[%s312 + $0x58] sm:$0xff]
      %v339 = vld [vmem:[%s312 + $0x60] sm:$0xff]
      %v340 = vld [vmem:[%s312 + $0x68] sm:$0xff]
      %v341 = vld [vmem:[%s312 + $0x70] sm:$0xff]
      %v342 = vld [vmem:[%s312 + $0x78] sm:$0xff]
      %v343 = vld [vmem:[%s312 + $0x80] sm:$0xff]
      %v344 = vld [vmem:[%s312 + $0x88] sm:$0xff]
      %v345 = vld [vmem:[%s312 + $0x90] sm:$0xff]
      %v346 = vld [vmem:[%s312 + $0x98] sm:$0xff]
      %v347 = vld [vmem:[%s312 + $0xa0] sm:$0xff]
      %v348 = vld [vmem:[%s312 + $0xa8] sm:$0xff]
      %v349 = vld [vmem:[%s312 + $0xb0] sm:$0xff]
      %v350 = vld [vmem:[%s312 + $0xb8] sm:$0xff]
      %v351 = vld [vmem:[%s312 + $0xc0] sm:$0xff]
      %v352 = vld [vmem:[%s312 + $0xc8] sm:$0xff]
      %v353 = vld [vmem:[%s312 + $0xd0] sm:$0xff]
      %v354 = vld [vmem:[%s312 + $0xd8] sm:$0xff]
      %v355 = vld [vmem:[%s312 + $0xe0] sm:$0xff]
      %v356 = vld [vmem:[%s312 + $0xe8] sm:$0xff]
      %v357 = vld [vmem:[%s312 + $0xf0] sm:$0xff]
      %v358 = vld [vmem:[%s312 + $0xf8] sm:$0xff]
      %v359 = vpack.c.bf16 %v328, %v327
      %v360 = vpack.c.bf16 %v330, %v329
      %v361 = vpack.c.bf16 %v332, %v331
      %v362 = vpack.c.bf16 %v334, %v333
      %v363 = vpack.c.bf16 %v336, %v335
      %v364 = vpack.c.bf16 %v338, %v337
      %v365 = vpack.c.bf16 %v340, %v339
      %v366 = vpack.c.bf16 %v342, %v341
      %v367 = vpack.c.bf16 %v344, %v343
      %v368 = vpack.c.bf16 %v346, %v345
      %v369 = vpack.c.bf16 %v348, %v347
      %v370 = vpack.c.bf16 %v350, %v349
      %v371 = vpack.c.bf16 %v352, %v351
      %v372 = vpack.c.bf16 %v354, %v353
      %v373 = vpack.c.bf16 %v356, %v355
      %v374 = vpack.c.bf16 %v358, %v357
      %v375 = vld [vmem:[%s3] sm:$0xf]
      %v376 = vld [vmem:[%s3 + $0x4] sm:$0xf]
      %v377 = vld [vmem:[%s3 + $0x8] sm:$0xf]
      %v378 = vld [vmem:[%s3 + $0xc] sm:$0xf]
      %v383 = vunpack.c.l.b16 %v375
      %v384 = vunpack.c.l.b16 %v376
      %v385 = vunpack.c.l.b16 %v377
      %v386 = vunpack.c.l.b16 %v378
      %v387 = vpack.c.b16 %v384, %v383
      %v388 = vpack.c.b16 %v386, %v385
      %vm391 = vcmask 261120
      %v393 = vsel %vm391, %v359, 0
      %v396 = vsel %vm391, %v360, 0
      %v399 = vsel %vm391, %v361, 0
      %v402 = vsel %vm391, %v362, 0
      %v405 = vsel %vm391, %v363, 0
      %v408 = vsel %vm391, %v364, 0
      %v411 = vsel %vm391, %v365, 0
      %v414 = vsel %vm391, %v366, 0
      %v417 = vsel %vm391, %v367, 0
      %v420 = vsel %vm391, %v368, 0
      %v423 = vsel %vm391, %v369, 0
      %v426 = vsel %vm391, %v370, 0
      %v429 = vsel %vm391, %v371, 0
      %v432 = vsel %vm391, %v372, 0
      %v435 = vsel %vm391, %v373, 0
      %v438 = vsel %vm391, %v374, 0
      %440 = vmatprep.subr.bf16.mxu0 0
      %441 = vmatpush1.bf16.msra.mxu0 %v387
      %442 = vmatprep.subr.bf16.mxu0 0
      %443 = vmatpush1.bf16.msra.mxu0 %v388
      %444 = vmatprep.subr.bf16.mxu0 0
      %445 = vmatpush1.bf16.msra.mxu0 0
      %446 = vmatprep.subr.bf16.mxu0 0
      %447 = vmatpush1.bf16.msra.mxu0 0
      %448 = vmatprep.subr.bf16.mxu0 0
      %449 = vmatpush1.bf16.msra.mxu0 0
      %450 = vmatprep.subr.bf16.mxu0 0
      %451 = vmatpush1.bf16.msra.mxu0 0
      %452 = vmatprep.subr.bf16.mxu0 0
      %453 = vmatpush1.bf16.msra.mxu0 0
      %454 = vmatprep.subr.bf16.mxu0 0
      %455 = vmatpush1.bf16.msra.mxu0 0
      %456 = vmatprep.subr.bf16.mxu0 0
      %457 = vmatpush1.bf16.msra.mxu0 0
      %458 = vmatprep.subr.bf16.mxu0 0
      %459 = vmatpush1.bf16.msra.mxu0 0
      %460 = vmatprep.subr.bf16.mxu0 0
      %461 = vmatpush1.bf16.msra.mxu0 0
      %462 = vmatprep.subr.bf16.mxu0 0
      %463 = vmatpush1.bf16.msra.mxu0 0
      %464 = vmatprep.subr.bf16.mxu0 0
      %465 = vmatpush1.bf16.msra.mxu0 0
      %466 = vmatprep.subr.bf16.mxu0 0
      %467 = vmatpush1.bf16.msra.mxu0 0
      %468 = vmatprep.subr.bf16.mxu0 0
      %469 = vmatpush1.bf16.msra.mxu0 0
      %470 = vmatprep.subr.bf16.mxu0 0
      %471 = vmatpush1.bf16.msra.mxu0 0
      %472 = vmatprep.mubr.bf16.mxu0 0
      %473 = vmatmul.mubr.bf16.gmra.mrb[0].mxu0 %v393
      %v474 = vpop.f32.mrb[0].mxu0
      %v475 = vadd.f32 0.0, %v474
      %v476 = vpop.f32.mrb[0].mxu0
      %v477 = vpop.f32.mrb[0].mxu0
      %v478 = vadd.f32 0.0, %v477
      %v479 = vpop.f32.mrb[0].mxu0
      %480 = vmatprep.mubr.bf16.mxu0 0
      %481 = vmatmul.mubr.bf16.gmra.mrb[0].mxu0 %v396
      %v482 = vpop.f32.mrb[0].mxu0
      %v483 = vadd.f32 0.0, %v482
      %v484 = vpop.f32.mrb[0].mxu0
      %v485 = vpop.f32.mrb[0].mxu0
      %v486 = vadd.f32 0.0, %v485
      %v487 = vpop.f32.mrb[0].mxu0
      %488 = vmatprep.mubr.bf16.mxu0 0
      %489 = vmatmul.mubr.bf16.gmra.mrb[0].mxu0 %v399
      %v490 = vpop.f32.mrb[0].mxu0
      %v491 = vadd.f32 0.0, %v490
      %v492 = vpop.f32.mrb[0].mxu0
      %v493 = vpop.f32.mrb[0].mxu0
      %v494 = vadd.f32 0.0, %v493
      %v495 = vpop.f32.mrb[0].mxu0
      %496 = vmatprep.mubr.bf16.mxu0 0
      %497 = vmatmul.mubr.bf16.gmra.mrb[0].mxu0 %v402
      %v498 = vpop.f32.mrb[0].mxu0
      %v499 = vadd.f32 0.0, %v498
      %v500 = vpop.f32.mrb[0].mxu0
      %v501 = vpop.f32.mrb[0].mxu0
      %v502 = vadd.f32 0.0, %v501
      %v503 = vpop.f32.mrb[0].mxu0
      %504 = vmatprep.mubr.bf16.mxu0 0
      %505 = vmatmul.mubr.bf16.gmra.mrb[0].mxu0 %v405
      %v506 = vpop.f32.mrb[0].mxu0
      %v507 = vadd.f32 0.0, %v506
      %v508 = vpop.f32.mrb[0].mxu0
      %v509 = vpop.f32.mrb[0].mxu0
      %v510 = vadd.f32 0.0, %v509
      %v511 = vpop.f32.mrb[0].mxu0
      %512 = vmatprep.mubr.bf16.mxu0 0
      %513 = vmatmul.mubr.bf16.gmra.mrb[0].mxu0 %v408
      %v514 = vpop.f32.mrb[0].mxu0
      %v515 = vadd.f32 0.0, %v514
      %v516 = vpop.f32.mrb[0].mxu0
      %v517 = vpop.f32.mrb[0].mxu0
      %v518 = vadd.f32 0.0, %v517
      %v519 = vpop.f32.mrb[0].mxu0
      %520 = vmatprep.mubr.bf16.mxu0 0
      %521 = vmatmul.mubr.bf16.gmra.mrb[0].mxu0 %v411
      %v522 = vpop.f32.mrb[0].mxu0
      %v523 = vadd.f32 0.0, %v522
      %v524 = vpop.f32.mrb[0].mxu0
      %v525 = vpop.f32.mrb[0].mxu0
      %v526 = vadd.f32 0.0, %v525
      %v527 = vpop.f32.mrb[0].mxu0
      %528 = vmatprep.mubr.bf16.mxu0 0
      %529 = vmatmul.mubr.bf16.gmra.mrb[0].mxu0 %v414
      %v530 = vpop.f32.mrb[0].mxu0
      %v531 = vadd.f32 0.0, %v530
      %v532 = vpop.f32.mrb[0].mxu0
      %v533 = vpop.f32.mrb[0].mxu0
      %v534 = vadd.f32 0.0, %v533
      %v535 = vpop.f32.mrb[0].mxu0
      %536 = vmatprep.mubr.bf16.mxu0 0
      %537 = vmatmul.mubr.bf16.gmra.mrb[0].mxu0 %v417
      %v538 = vpop.f32.mrb[0].mxu0
      %v539 = vadd.f32 0.0, %v538
      %v540 = vpop.f32.mrb[0].mxu0
      %v541 = vpop.f32.mrb[0].mxu0
      %v542 = vadd.f32 0.0, %v541
      %v543 = vpop.f32.mrb[0].mxu0
      %544 = vmatprep.mubr.bf16.mxu0 0
      %545 = vmatmul.mubr.bf16.gmra.mrb[0].mxu0 %v420
      %v546 = vpop.f32.mrb[0].mxu0
      %v547 = vadd.f32 0.0, %v546
      %v548 = vpop.f32.mrb[0].mxu0
      %v549 = vpop.f32.mrb[0].mxu0
      %v550 = vadd.f32 0.0, %v549
      %v551 = vpop.f32.mrb[0].mxu0
      %552 = vmatprep.mubr.bf16.mxu0 0
      %553 = vmatmul.mubr.bf16.gmra.mrb[0].mxu0 %v423
      %v554 = vpop.f32.mrb[0].mxu0
      %v555 = vadd.f32 0.0, %v554
      %v556 = vpop.f32.mrb[0].mxu0
      %v557 = vpop.f32.mrb[0].mxu0
      %v558 = vadd.f32 0.0, %v557
      %v559 = vpop.f32.mrb[0].mxu0
      %560 = vmatprep.mubr.bf16.mxu0 0
      %561 = vmatmul.mubr.bf16.gmra.mrb[0].mxu0 %v426
      %v562 = vpop.f32.mrb[0].mxu0
      %v563 = vadd.f32 0.0, %v562
      %v564 = vpop.f32.mrb[0].mxu0
      %v565 = vpop.f32.mrb[0].mxu0
      %v566 = vadd.f32 0.0, %v565
      %v567 = vpop.f32.mrb[0].mxu0
      %568 = vmatprep.mubr.bf16.mxu0 0
      %569 = vmatmul.mubr.bf16.gmra.mrb[0].mxu0 %v429
      %v570 = vpop.f32.mrb[0].mxu0
      %v571 = vadd.f32 0.0, %v570
      %v572 = vpop.f32.mrb[0].mxu0
      %v573 = vpop.f32.mrb[0].mxu0
      %v574 = vadd.f32 0.0, %v573
      %v575 = vpop.f32.mrb[0].mxu0
      %576 = vmatprep.mubr.bf16.mxu0 0
      %577 = vmatmul.mubr.bf16.gmra.mrb[0].mxu0 %v432
      %v578 = vpop.f32.mrb[0].mxu0
      %v579 = vadd.f32 0.0, %v578
      %v580 = vpop.f32.mrb[0].mxu0
      %v581 = vpop.f32.mrb[0].mxu0
      %v582 = vadd.f32 0.0, %v581
      %v583 = vpop.f32.mrb[0].mxu0
      %584 = vmatprep.mubr.bf16.mxu0 0
      %585 = vmatmul.mubr.bf16.gmra.mrb[0].mxu0 %v435
      %v586 = vpop.f32.mrb[0].mxu0
      %v587 = vadd.f32 0.0, %v586
      %v588 = vpop.f32.mrb[0].mxu0
      %v589 = vpop.f32.mrb[0].mxu0
      %v590 = vadd.f32 0.0, %v589
      %v591 = vpop.f32.mrb[0].mxu0
      %592 = vmatprep.mubr.bf16.mxu0 0
      %593 = vmatmul.mubr.bf16.gmra.mrb[0].mxu0 %v438
      %v594 = vpop.f32.mrb[0].mxu0
      %v595 = vadd.f32 0.0, %v594
      %v596 = vpop.f32.mrb[0].mxu0
      %v597 = vpop.f32.mrb[0].mxu0
      %v598 = vadd.f32 0.0, %v597
      %v599 = vpop.f32.mrb[0].mxu0
      %600 = vdwg.mxu0
      %v601 = vpack.c.bf16 %v478, %v475
      %v602 = vpack.c.bf16 %v486, %v483
      %v603 = vpack.c.bf16 %v494, %v491
      %v604 = vpack.c.bf16 %v502, %v499
      %v605 = vpack.c.bf16 %v510, %v507
      %v606 = vpack.c.bf16 %v518, %v515
      %v607 = vpack.c.bf16 %v526, %v523
      %v608 = vpack.c.bf16 %v534, %v531
      %v609 = vpack.c.bf16 %v542, %v539
      %v610 = vpack.c.bf16 %v550, %v547
      %v611 = vpack.c.bf16 %v558, %v555
      %v612 = vpack.c.bf16 %v566, %v563
      %v613 = vpack.c.bf16 %v574, %v571
      %v614 = vpack.c.bf16 %v582, %v579
      %v615 = vpack.c.bf16 %v590, %v587
      %v616 = vpack.c.bf16 %v598, %v595
      %v617 = vld [vmem:[%s4] sm:$0xf]
      %vm618 = vcmask 64512
      %v620 = vsel %vm618, %v601, 0
      %v623 = vsel %vm618, %v602, 0
      %v626 = vsel %vm618, %v603, 0
      %v629 = vsel %vm618, %v604, 0
      %v632 = vsel %vm618, %v605, 0
      %v635 = vsel %vm618, %v606, 0
      %v638 = vsel %vm618, %v607, 0
      %v641 = vsel %vm618, %v608, 0
      %v644 = vsel %vm618, %v609, 0
      %v647 = vsel %vm618, %v610, 0
      %v650 = vsel %vm618, %v611, 0
      %v653 = vsel %vm618, %v612, 0
      %v656 = vsel %vm618, %v613, 0
      %v659 = vsel %vm618, %v614, 0
      %v662 = vsel %vm618, %v615, 0
      %v665 = vsel %vm618, %v616, 0
      %vm667 = vcmask 1043456
      %v669 = vsel %vm667, %v617, 0
      %671 = vmatprep.subr.bf16.mxu0 0
      %672 = vmatpush1.bf16.msra.mxu0 %v669
      %673 = vmatprep.subr.bf16.mxu0 0
      %674 = vmatpush1.bf16.msra.mxu0 0
      %675 = vmatprep.subr.bf16.mxu0 0
      %676 = vmatpush1.bf16.msra.mxu0 0
      %677 = vmatprep.subr.bf16.mxu0 0
      %678 = vmatpush1.bf16.msra.mxu0 0
      %679 = vmatprep.subr.bf16.mxu0 0
      %680 = vmatpush1.bf16.msra.mxu0 0
      %681 = vmatprep.subr.bf16.mxu0 0
      %682 = vmatpush1.bf16.msra.mxu0 0
      %683 = vmatprep.subr.bf16.mxu0 0
      %684 = vmatpush1.bf16.msra.mxu0 0
      %685 = vmatprep.subr.bf16.mxu0 0
      %686 = vmatpush1.bf16.msra.mxu0 0
      %687 = vmatprep.subr.bf16.mxu0 0
      %688 = vmatpush1.bf16.msra.mxu0 0
      %689 = vmatprep.subr.bf16.mxu0 0
      %690 = vmatpush1.bf16.msra.mxu0 0
      %691 = vmatprep.subr.bf16.mxu0 0
      %692 = vmatpush1.bf16.msra.mxu0 0
      %693 = vmatprep.subr.bf16.mxu0 0
      %694 = vmatpush1.bf16.msra.mxu0 0
      %695 = vmatprep.subr.bf16.mxu0 0
      %696 = vmatpush1.bf16.msra.mxu0 0
      %697 = vmatprep.subr.bf16.mxu0 0
      %698 = vmatpush1.bf16.msra.mxu0 0
      %699 = vmatprep.subr.bf16.mxu0 0
      %700 = vmatpush1.bf16.msra.mxu0 0
      %701 = vmatprep.subr.bf16.mxu0 0
      %702 = vmatpush1.bf16.msra.mxu0 0
      %703 = vmatprep.mubr.bf16.mxu0 0
      %704 = vmatmul.mubr.bf16.gmra.mrb[0].mxu0 %v620
      %v705 = vpop.f32.mrb[0].mxu0
      %v706 = vadd.f32 0.0, %v705
      %v707 = vpop.f32.mrb[0].mxu0
      %v708 = vpop.f32.mrb[0].mxu0
      %v709 = vadd.f32 0.0, %v708
      %v710 = vpop.f32.mrb[0].mxu0
      %711 = vmatprep.mubr.bf16.mxu0 0
      %712 = vmatmul.mubr.bf16.gmra.mrb[0].mxu0 %v623
      %v713 = vpop.f32.mrb[0].mxu0
      %v714 = vadd.f32 0.0, %v713
      %v715 = vpop.f32.mrb[0].mxu0
      %v716 = vpop.f32.mrb[0].mxu0
      %v717 = vadd.f32 0.0, %v716
      %v718 = vpop.f32.mrb[0].mxu0
      %719 = vmatprep.mubr.bf16.mxu0 0
      %720 = vmatmul.mubr.bf16.gmra.mrb[0].mxu0 %v626
      %v721 = vpop.f32.mrb[0].mxu0
      %v722 = vadd.f32 0.0, %v721
      %v723 = vpop.f32.mrb[0].mxu0
      %v724 = vpop.f32.mrb[0].mxu0
      %v725 = vadd.f32 0.0, %v724
      %v726 = vpop.f32.mrb[0].mxu0
      %727 = vmatprep.mubr.bf16.mxu0 0
      %728 = vmatmul.mubr.bf16.gmra.mrb[0].mxu0 %v629
      %v729 = vpop.f32.mrb[0].mxu0
      %v730 = vadd.f32 0.0, %v729
      %v731 = vpop.f32.mrb[0].mxu0
      %v732 = vpop.f32.mrb[0].mxu0
      %v733 = vadd.f32 0.0, %v732
      %v734 = vpop.f32.mrb[0].mxu0
      %735 = vmatprep.mubr.bf16.mxu0 0
      %736 = vmatmul.mubr.bf16.gmra.mrb[0].mxu0 %v632
      %v737 = vpop.f32.mrb[0].mxu0
      %v738 = vadd.f32 0.0, %v737
      %v739 = vpop.f32.mrb[0].mxu0
      %v740 = vpop.f32.mrb[0].mxu0
      %v741 = vadd.f32 0.0, %v740
      %v742 = vpop.f32.mrb[0].mxu0
      %743 = vmatprep.mubr.bf16.mxu0 0
      %744 = vmatmul.mubr.bf16.gmra.mrb[0].mxu0 %v635
      %v745 = vpop.f32.mrb[0].mxu0
      %v746 = vadd.f32 0.0, %v745
      %v747 = vpop.f32.mrb[0].mxu0
      %v748 = vpop.f32.mrb[0].mxu0
      %v749 = vadd.f32 0.0, %v748
      %v750 = vpop.f32.mrb[0].mxu0
      %751 = vmatprep.mubr.bf16.mxu0 0
      %752 = vmatmul.mubr.bf16.gmra.mrb[0].mxu0 %v638
      %v753 = vpop.f32.mrb[0].mxu0
      %v754 = vadd.f32 0.0, %v753
      %v755 = vpop.f32.mrb[0].mxu0
      %v756 = vpop.f32.mrb[0].mxu0
      %v757 = vadd.f32 0.0, %v756
      %v758 = vpop.f32.mrb[0].mxu0
      %759 = vmatprep.mubr.bf16.mxu0 0
      %760 = vmatmul.mubr.bf16.gmra.mrb[0].mxu0 %v641
      %v761 = vpop.f32.mrb[0].mxu0
      %v762 = vadd.f32 0.0, %v761
      %v763 = vpop.f32.mrb[0].mxu0
      %v764 = vpop.f32.mrb[0].mxu0
      %v765 = vadd.f32 0.0, %v764
      %v766 = vpop.f32.mrb[0].mxu0
      %767 = vmatprep.mubr.bf16.mxu0 0
      %768 = vmatmul.mubr.bf16.gmra.mrb[0].mxu0 %v644
      %v769 = vpop.f32.mrb[0].mxu0
      %v770 = vadd.f32 0.0, %v769
      %v771 = vpop.f32.mrb[0].mxu0
      %v772 = vpop.f32.mrb[0].mxu0
      %v773 = vadd.f32 0.0, %v772
      %v774 = vpop.f32.mrb[0].mxu0
      %775 = vmatprep.mubr.bf16.mxu0 0
      %776 = vmatmul.mubr.bf16.gmra.mrb[0].mxu0 %v647
      %v777 = vpop.f32.mrb[0].mxu0
      %v778 = vadd.f32 0.0, %v777
      %v779 = vpop.f32.mrb[0].mxu0
      %v780 = vpop.f32.mrb[0].mxu0
      %v781 = vadd.f32 0.0, %v780
      %v782 = vpop.f32.mrb[0].mxu0
      %783 = vmatprep.mubr.bf16.mxu0 0
      %784 = vmatmul.mubr.bf16.gmra.mrb[0].mxu0 %v650
      %v785 = vpop.f32.mrb[0].mxu0
      %v786 = vadd.f32 0.0, %v785
      %v787 = vpop.f32.mrb[0].mxu0
      %v788 = vpop.f32.mrb[0].mxu0
      %v789 = vadd.f32 0.0, %v788
      %v790 = vpop.f32.mrb[0].mxu0
      %791 = vmatprep.mubr.bf16.mxu0 0
      %792 = vmatmul.mubr.bf16.gmra.mrb[0].mxu0 %v653
      %v793 = vpop.f32.mrb[0].mxu0
      %v794 = vadd.f32 0.0, %v793
      %v795 = vpop.f32.mrb[0].mxu0
      %v796 = vpop.f32.mrb[0].mxu0
      %v797 = vadd.f32 0.0, %v796
      %v798 = vpop.f32.mrb[0].mxu0
      %799 = vmatprep.mubr.bf16.mxu0 0
      %800 = vmatmul.mubr.bf16.gmra.mrb[0].mxu0 %v656
      %v801 = vpop.f32.mrb[0].mxu0
      %v802 = vadd.f32 0.0, %v801
      %v803 = vpop.f32.mrb[0].mxu0
      %v804 = vpop.f32.mrb[0].mxu0
      %v805 = vadd.f32 0.0, %v804
      %v806 = vpop.f32.mrb[0].mxu0
      %807 = vmatprep.mubr.bf16.mxu0 0
      %808 = vmatmul.mubr.bf16.gmra.mrb[0].mxu0 %v659
      %v809 = vpop.f32.mrb[0].mxu0
      %v810 = vadd.f32 0.0, %v809
      %v811 = vpop.f32.mrb[0].mxu0
      %v812 = vpop.f32.mrb[0].mxu0
      %v813 = vadd.f32 0.0, %v812
      %v814 = vpop.f32.mrb[0].mxu0
      %815 = vmatprep.mubr.bf16.mxu0 0
      %816 = vmatmul.mubr.bf16.gmra.mrb[0].mxu0 %v662
      %v817 = vpop.f32.mrb[0].mxu0
      %v818 = vadd.f32 0.0, %v817
      %v819 = vpop.f32.mrb[0].mxu0
      %v820 = vpop.f32.mrb[0].mxu0
      %v821 = vadd.f32 0.0, %v820
      %v822 = vpop.f32.mrb[0].mxu0
      %823 = vmatprep.mubr.bf16.mxu0 0
      %824 = vmatmul.mubr.bf16.gmra.mrb[0].mxu0 %v665
      %v825 = vpop.f32.mrb[0].mxu0
      %v826 = vadd.f32 0.0, %v825
      %v827 = vpop.f32.mrb[0].mxu0
      %v828 = vpop.f32.mrb[0].mxu0
      %v829 = vadd.f32 0.0, %v828
      %v830 = vpop.f32.mrb[0].mxu0
      %831 = vdwg.mxu0
      %v832 = vld [vmem:[%s318] sm:$0xff]
      %v833 = vld [vmem:[%s318 + $0x8] sm:$0xff]
      %v834 = vld [vmem:[%s318 + $0x10] sm:$0xff]
      %v835 = vld [vmem:[%s318 + $0x18] sm:$0xff]
      %v836 = vld [vmem:[%s318 + $0x20] sm:$0xff]
      %v837 = vld [vmem:[%s318 + $0x28] sm:$0xff]
      %v838 = vld [vmem:[%s318 + $0x30] sm:$0xff]
      %v839 = vld [vmem:[%s318 + $0x38] sm:$0xff]
      %v840 = vld [vmem:[%s318 + $0x40] sm:$0xff]
      %v841 = vld [vmem:[%s318 + $0x48] sm:$0xff]
      %v842 = vld [vmem:[%s318 + $0x50] sm:$0xff]
      %v843 = vld [vmem:[%s318 + $0x58] sm:$0xff]
      %v844 = vld [vmem:[%s318 + $0x60] sm:$0xff]
      %v845 = vld [vmem:[%s318 + $0x68] sm:$0xff]
      %v846 = vld [vmem:[%s318 + $0x70] sm:$0xff]
      %v847 = vld [vmem:[%s318 + $0x78] sm:$0xff]
      %v848 = vld [vmem:[%s318 + $0x80] sm:$0xff]
      %v849 = vld [vmem:[%s318 + $0x88] sm:$0xff]
      %v850 = vld [vmem:[%s318 + $0x90] sm:$0xff]
      %v851 = vld [vmem:[%s318 + $0x98] sm:$0xff]
      %v852 = vld [vmem:[%s318 + $0xa0] sm:$0xff]
      %v853 = vld [vmem:[%s318 + $0xa8] sm:$0xff]
      %v854 = vld [vmem:[%s318 + $0xb0] sm:$0xff]
      %v855 = vld [vmem:[%s318 + $0xb8] sm:$0xff]
      %v856 = vld [vmem:[%s318 + $0xc0] sm:$0xff]
      %v857 = vld [vmem:[%s318 + $0xc8] sm:$0xff]
      %v858 = vld [vmem:[%s318 + $0xd0] sm:$0xff]
      %v859 = vld [vmem:[%s318 + $0xd8] sm:$0xff]
      %v860 = vld [vmem:[%s318 + $0xe0] sm:$0xff]
      %v861 = vld [vmem:[%s318 + $0xe8] sm:$0xff]
      %v862 = vld [vmem:[%s318 + $0xf0] sm:$0xff]
      %v863 = vld [vmem:[%s318 + $0xf8] sm:$0xff]
      %v864 = vpack.c.bf16 %v833, %v832
      %v865 = vpack.c.bf16 %v835, %v834
      %v866 = vpack.c.bf16 %v837, %v836
      %v867 = vpack.c.bf16 %v839, %v838
      %v868 = vpack.c.bf16 %v841, %v840
      %v869 = vpack.c.bf16 %v843, %v842
      %v870 = vpack.c.bf16 %v845, %v844
      %v871 = vpack.c.bf16 %v847, %v846
      %v872 = vpack.c.bf16 %v849, %v848
      %v873 = vpack.c.bf16 %v851, %v850
      %v874 = vpack.c.bf16 %v853, %v852
      %v875 = vpack.c.bf16 %v855, %v854
      %v876 = vpack.c.bf16 %v857, %v856
      %v877 = vpack.c.bf16 %v859, %v858
      %v878 = vpack.c.bf16 %v861, %v860
      %v879 = vpack.c.bf16 %v863, %v862
      %v880 = vld [vmem:[%s5] sm:$0xf]
      %v881 = vld [vmem:[%s5 + $0x4] sm:$0xf]
      %v882 = vld [vmem:[%s5 + $0x8] sm:$0xf]
      %v883 = vld [vmem:[%s5 + $0xc] sm:$0xf]
      %v884 = vld [vmem:[%s5 + $0x10] sm:$0xf]
      %v885 = vld [vmem:[%s5 + $0x14] sm:$0xf]
      %v886 = vld [vmem:[%s5 + $0x18] sm:$0xf]
      %v887 = vld [vmem:[%s5 + $0x1c] sm:$0xf]
      %v888 = vld [vmem:[%s5 + $0x20] sm:$0xf]
      %v889 = vld [vmem:[%s5 + $0x24] sm:$0xf]
      %v890 = vld [vmem:[%s5 + $0x28] sm:$0xf]
      %v891 = vld [vmem:[%s5 + $0x2c] sm:$0xf]
      %v892 = vld [vmem:[%s5 + $0x30] sm:$0xf]
      %v893 = vld [vmem:[%s5 + $0x34] sm:$0xf]
      %v894 = vld [vmem:[%s5 + $0x38] sm:$0xf]
      %v895 = vld [vmem:[%s5 + $0x3c] sm:$0xf]
      %v912 = vunpack.c.l.b16 %v880
      %v913 = vunpack.c.l.b16 %v881
      %v914 = vunpack.c.l.b16 %v882
      %v915 = vunpack.c.l.b16 %v883
      %v916 = vunpack.c.l.b16 %v884
      %v917 = vunpack.c.l.b16 %v885
      %v918 = vunpack.c.l.b16 %v886
      %v919 = vunpack.c.l.b16 %v887
      %v920 = vunpack.c.l.b16 %v888
      %v921 = vunpack.c.l.b16 %v889
      %v922 = vunpack.c.l.b16 %v890
      %v923 = vunpack.c.l.b16 %v891
      %v924 = vunpack.c.l.b16 %v892
      %v925 = vunpack.c.l.b16 %v893
      %v926 = vunpack.c.l.b16 %v894
      %v927 = vunpack.c.l.b16 %v895
      %v928 = vpack.c.b16 %v913, %v912
      %v929 = vpack.c.b16 %v915, %v914
      %v930 = vpack.c.b16 %v917, %v916
      %v931 = vpack.c.b16 %v919, %v918
      %v932 = vpack.c.b16 %v921, %v920
      %v933 = vpack.c.b16 %v923, %v922
      %v934 = vpack.c.b16 %v925, %v924
      %v935 = vpack.c.b16 %v927, %v926
      %944 = vmatprep.subr.bf16.mxu0 0
      %945 = vmatpush1.bf16.msra.mxu0 %v928
      %946 = vmatprep.subr.bf16.mxu0 0
      %947 = vmatpush1.bf16.msra.mxu0 %v929
      %948 = vmatprep.subr.bf16.mxu0 0
      %949 = vmatpush1.bf16.msra.mxu0 %v930
      %950 = vmatprep.subr.bf16.mxu0 0
      %951 = vmatpush1.bf16.msra.mxu0 %v931
      %952 = vmatprep.subr.bf16.mxu0 0
      %953 = vmatpush1.bf16.msra.mxu0 %v932
      %954 = vmatprep.subr.bf16.mxu0 0
      %955 = vmatpush1.bf16.msra.mxu0 %v933
      %956 = vmatprep.subr.bf16.mxu0 0
      %957 = vmatpush1.bf16.msra.mxu0 %v934
      %958 = vmatprep.subr.bf16.mxu0 0
      %959 = vmatpush1.bf16.msra.mxu0 %v935
      %960 = vmatprep.subr.bf16.mxu0 0
      %961 = vmatpush1.bf16.msra.mxu0 0
      %962 = vmatprep.subr.bf16.mxu0 0
      %963 = vmatpush1.bf16.msra.mxu0 0
      %964 = vmatprep.subr.bf16.mxu0 0
      %965 = vmatpush1.bf16.msra.mxu0 0
      %966 = vmatprep.subr.bf16.mxu0 0
      %967 = vmatpush1.bf16.msra.mxu0 0
      %968 = vmatprep.subr.bf16.mxu0 0
      %969 = vmatpush1.bf16.msra.mxu0 0
      %970 = vmatprep.subr.bf16.mxu0 0
      %971 = vmatpush1.bf16.msra.mxu0 0
      %972 = vmatprep.subr.bf16.mxu0 0
      %973 = vmatpush1.bf16.msra.mxu0 0
      %974 = vmatprep.subr.bf16.mxu0 0
      %975 = vmatpush1.bf16.msra.mxu0 0
      %976 = vmatprep.mubr.bf16.mxu0 0
      %977 = vmatmul.mubr.bf16.gmra.mrb[0].mxu0 %v864
      %v978 = vpop.f32.mrb[0].mxu0
      %v979 = vadd.f32 0.0, %v978
      %v980 = vpop.f32.mrb[0].mxu0
      %v981 = vpop.f32.mrb[0].mxu0
      %v982 = vadd.f32 0.0, %v981
      %v983 = vpop.f32.mrb[0].mxu0
      %984 = vmatprep.mubr.bf16.mxu0 0
      %985 = vmatmul.mubr.bf16.gmra.mrb[0].mxu0 %v865
      %v986 = vpop.f32.mrb[0].mxu0
      %v987 = vadd.f32 0.0, %v986
      %v988 = vpop.f32.mrb[0].mxu0
      %v989 = vpop.f32.mrb[0].mxu0
      %v990 = vadd.f32 0.0, %v989
      %v991 = vpop.f32.mrb[0].mxu0
      %992 = vmatprep.mubr.bf16.mxu0 0
      %993 = vmatmul.mubr.bf16.gmra.mrb[0].mxu0 %v866
      %v994 = vpop.f32.mrb[0].mxu0
      %v995 = vadd.f32 0.0, %v994
      %v996 = vpop.f32.mrb[0].mxu0
      %v997 = vpop.f32.mrb[0].mxu0
      %v998 = vadd.f32 0.0, %v997
      %v999 = vpop.f32.mrb[0].mxu0
      %1000 = vmatprep.mubr.bf16.mxu0 0
      %1001 = vmatmul.mubr.bf16.gmra.mrb[0].mxu0 %v867
      %v1002 = vpop.f32.mrb[0].mxu0
      %v1003 = vadd.f32 0.0, %v1002
      %v1004 = vpop.f32.mrb[0].mxu0
      %v1005 = vpop.f32.mrb[0].mxu0
      %v1006 = vadd.f32 0.0, %v1005
      %v1007 = vpop.f32.mrb[0].mxu0
      %1008 = vmatprep.mubr.bf16.mxu0 0
      %1009 = vmatmul.mubr.bf16.gmra.mrb[0].mxu0 %v868
      %v1010 = vpop.f32.mrb[0].mxu0
      %v1011 = vadd.f32 0.0, %v1010
      %v1012 = vpop.f32.mrb[0].mxu0
      %v1013 = vpop.f32.mrb[0].mxu0
      %v1014 = vadd.f32 0.0, %v1013
      %v1015 = vpop.f32.mrb[0].mxu0
      %1016 = vmatprep.mubr.bf16.mxu0 0
      %1017 = vmatmul.mubr.bf16.gmra.mrb[0].mxu0 %v869
      %v1018 = vpop.f32.mrb[0].mxu0
      %v1019 = vadd.f32 0.0, %v1018
      %v1020 = vpop.f32.mrb[0].mxu0
      %v1021 = vpop.f32.mrb[0].mxu0
      %v1022 = vadd.f32 0.0, %v1021
      %v1023 = vpop.f32.mrb[0].mxu0
      %1024 = vmatprep.mubr.bf16.mxu0 0
      %1025 = vmatmul.mubr.bf16.gmra.mrb[0].mxu0 %v870
      %v1026 = vpop.f32.mrb[0].mxu0
      %v1027 = vadd.f32 0.0, %v1026
      %v1028 = vpop.f32.mrb[0].mxu0
      %v1029 = vpop.f32.mrb[0].mxu0
      %v1030 = vadd.f32 0.0, %v1029
      %v1031 = vpop.f32.mrb[0].mxu0
      %1032 = vmatprep.mubr.bf16.mxu0 0
      %1033 = vmatmul.mubr.bf16.gmra.mrb[0].mxu0 %v871
      %v1034 = vpop.f32.mrb[0].mxu0
      %v1035 = vadd.f32 0.0, %v1034
      %v1036 = vpop.f32.mrb[0].mxu0
      %v1037 = vpop.f32.mrb[0].mxu0
      %v1038 = vadd.f32 0.0, %v1037
      %v1039 = vpop.f32.mrb[0].mxu0
      %1040 = vmatprep.mubr.bf16.mxu0 0
      %1041 = vmatmul.mubr.bf16.gmra.mrb[0].mxu0 %v872
      %v1042 = vpop.f32.mrb[0].mxu0
      %v1043 = vadd.f32 0.0, %v1042
      %v1044 = vpop.f32.mrb[0].mxu0
      %v1045 = vpop.f32.mrb[0].mxu0
      %v1046 = vadd.f32 0.0, %v1045
      %v1047 = vpop.f32.mrb[0].mxu0
      %1048 = vmatprep.mubr.bf16.mxu0 0
      %1049 = vmatmul.mubr.bf16.gmra.mrb[0].mxu0 %v873
      %v1050 = vpop.f32.mrb[0].mxu0
      %v1051 = vadd.f32 0.0, %v1050
      %v1052 = vpop.f32.mrb[0].mxu0
      %v1053 = vpop.f32.mrb[0].mxu0
      %v1054 = vadd.f32 0.0, %v1053
      %v1055 = vpop.f32.mrb[0].mxu0
      %1056 = vmatprep.mubr.bf16.mxu0 0
      %1057 = vmatmul.mubr.bf16.gmra.mrb[0].mxu0 %v874
      %v1058 = vpop.f32.mrb[0].mxu0
      %v1059 = vadd.f32 0.0, %v1058
      %v1060 = vpop.f32.mrb[0].mxu0
      %v1061 = vpop.f32.mrb[0].mxu0
      %v1062 = vadd.f32 0.0, %v1061
      %v1063 = vpop.f32.mrb[0].mxu0
      %1064 = vmatprep.mubr.bf16.mxu0 0
      %1065 = vmatmul.mubr.bf16.gmra.mrb[0].mxu0 %v875
      %v1066 = vpop.f32.mrb[0].mxu0
      %v1067 = vadd.f32 0.0, %v1066
      %v1068 = vpop.f32.mrb[0].mxu0
      %v1069 = vpop.f32.mrb[0].mxu0
      %v1070 = vadd.f32 0.0, %v1069
      %v1071 = vpop.f32.mrb[0].mxu0
      %1072 = vmatprep.mubr.bf16.mxu0 0
      %1073 = vmatmul.mubr.bf16.gmra.mrb[0].mxu0 %v876
      %v1074 = vpop.f32.mrb[0].mxu0
      %v1075 = vadd.f32 0.0, %v1074
      %v1076 = vpop.f32.mrb[0].mxu0
      %v1077 = vpop.f32.mrb[0].mxu0
      %v1078 = vadd.f32 0.0, %v1077
      %v1079 = vpop.f32.mrb[0].mxu0
      %1080 = vmatprep.mubr.bf16.mxu0 0
      %1081 = vmatmul.mubr.bf16.gmra.mrb[0].mxu0 %v877
      %v1082 = vpop.f32.mrb[0].mxu0
      %v1083 = vadd.f32 0.0, %v1082
      %v1084 = vpop.f32.mrb[0].mxu0
      %v1085 = vpop.f32.mrb[0].mxu0
      %v1086 = vadd.f32 0.0, %v1085
      %v1087 = vpop.f32.mrb[0].mxu0
      %1088 = vmatprep.mubr.bf16.mxu0 0
      %1089 = vmatmul.mubr.bf16.gmra.mrb[0].mxu0 %v878
      %v1090 = vpop.f32.mrb[0].mxu0
      %v1091 = vadd.f32 0.0, %v1090
      %v1092 = vpop.f32.mrb[0].mxu0
      %v1093 = vpop.f32.mrb[0].mxu0
      %v1094 = vadd.f32 0.0, %v1093
      %v1095 = vpop.f32.mrb[0].mxu0
      %1096 = vmatprep.mubr.bf16.mxu0 0
      %1097 = vmatmul.mubr.bf16.gmra.mrb[0].mxu0 %v879
      %v1098 = vpop.f32.mrb[0].mxu0
      %v1099 = vadd.f32 0.0, %v1098
      %v1100 = vpop.f32.mrb[0].mxu0
      %v1101 = vpop.f32.mrb[0].mxu0
      %v1102 = vadd.f32 0.0, %v1101
      %v1103 = vpop.f32.mrb[0].mxu0
      %1104 = vdwg.mxu0
      %v1105 = vpack.c.bf16 %v982, %v979
      %v1106 = vpack.c.bf16 %v990, %v987
      %v1107 = vpack.c.bf16 %v998, %v995
      %v1108 = vpack.c.bf16 %v1006, %v1003
      %v1109 = vpack.c.bf16 %v1014, %v1011
      %v1110 = vpack.c.bf16 %v1022, %v1019
      %v1111 = vpack.c.bf16 %v1030, %v1027
      %v1112 = vpack.c.bf16 %v1038, %v1035
      %v1113 = vpack.c.bf16 %v1046, %v1043
      %v1114 = vpack.c.bf16 %v1054, %v1051
      %v1115 = vpack.c.bf16 %v1062, %v1059
      %v1116 = vpack.c.bf16 %v1070, %v1067
      %v1117 = vpack.c.bf16 %v1078, %v1075
      %v1118 = vpack.c.bf16 %v1086, %v1083
      %v1119 = vpack.c.bf16 %v1094, %v1091
      %v1120 = vpack.c.bf16 %v1102, %v1099
      %v1121 = vld [vmem:[%s6] sm:$0xf]
      %v1123 = vsel %vm618, %v1105, 0
      %v1126 = vsel %vm618, %v1106, 0
      %v1129 = vsel %vm618, %v1107, 0
      %v1132 = vsel %vm618, %v1108, 0
      %v1135 = vsel %vm618, %v1109, 0
      %v1138 = vsel %vm618, %v1110, 0
      %v1141 = vsel %vm618, %v1111, 0
      %v1144 = vsel %vm618, %v1112, 0
      %v1147 = vsel %vm618, %v1113, 0
      %v1150 = vsel %vm618, %v1114, 0
      %v1153 = vsel %vm618, %v1115, 0
      %v1156 = vsel %vm618, %v1116, 0
      %v1159 = vsel %vm618, %v1117, 0
      %v1162 = vsel %vm618, %v1118, 0
      %v1165 = vsel %vm618, %v1119, 0
      %v1168 = vsel %vm618, %v1120, 0
      %v1171 = vsel %vm667, %v1121, 0
      %1173 = vmatprep.subr.bf16.mxu0 0
      %1174 = vmatpush1.bf16.msra.mxu0 %v1171
      %1175 = vmatprep.subr.bf16.mxu0 0
      %1176 = vmatpush1.bf16.msra.mxu0 0
      %1177 = vmatprep.subr.bf16.mxu0 0
      %1178 = vmatpush1.bf16.msra.mxu0 0
      %1179 = vmatprep.subr.bf16.mxu0 0
      %1180 = vmatpush1.bf16.msra.mxu0 0
      %1181 = vmatprep.subr.bf16.mxu0 0
      %1182 = vmatpush1.bf16.msra.mxu0 0
      %1183 = vmatprep.subr.bf16.mxu0 0
      %1184 = vmatpush1.bf16.msra.mxu0 0
      %1185 = vmatprep.subr.bf16.mxu0 0
      %1186 = vmatpush1.bf16.msra.mxu0 0
      %1187 = vmatprep.subr.bf16.mxu0 0
      %1188 = vmatpush1.bf16.msra.mxu0 0
      %1189 = vmatprep.subr.bf16.mxu0 0
      %1190 = vmatpush1.bf16.msra.mxu0 0
      %1191 = vmatprep.subr.bf16.mxu0 0
      %1192 = vmatpush1.bf16.msra.mxu0 0
      %1193 = vmatprep.subr.bf16.mxu0 0
      %1194 = vmatpush1.bf16.msra.mxu0 0
      %1195 = vmatprep.subr.bf16.mxu0 0
      %1196 = vmatpush1.bf16.msra.mxu0 0
      %1197 = vmatprep.subr.bf16.mxu0 0
      %1198 = vmatpush1.bf16.msra.mxu0 0
      %1199 = vmatprep.subr.bf16.mxu0 0
      %1200 = vmatpush1.bf16.msra.mxu0 0
      %1201 = vmatprep.subr.bf16.mxu0 0
      %1202 = vmatpush1.bf16.msra.mxu0 0
      %1203 = vmatprep.subr.bf16.mxu0 0
      %1204 = vmatpush1.bf16.msra.mxu0 0
      %1205 = vmatprep.mubr.bf16.mxu0 0
      %1206 = vmatmul.mubr.bf16.gmra.mrb[0].mxu0 %v1123
      %v1207 = vpop.f32.mrb[0].mxu0
      %v1208 = vadd.f32 0.0, %v1207
      %v1209 = vpop.f32.mrb[0].mxu0
      %v1210 = vpop.f32.mrb[0].mxu0
      %v1211 = vadd.f32 0.0, %v1210
      %v1212 = vpop.f32.mrb[0].mxu0
      %1213 = vmatprep.mubr.bf16.mxu0 0
      %1214 = vmatmul.mubr.bf16.gmra.mrb[0].mxu0 %v1126
      %v1215 = vpop.f32.mrb[0].mxu0
      %v1216 = vadd.f32 0.0, %v1215
      %v1217 = vpop.f32.mrb[0].mxu0
      %v1218 = vpop.f32.mrb[0].mxu0
      %v1219 = vadd.f32 0.0, %v1218
      %v1220 = vpop.f32.mrb[0].mxu0
      %1221 = vmatprep.mubr.bf16.mxu0 0
      %1222 = vmatmul.mubr.bf16.gmra.mrb[0].mxu0 %v1129
      %v1223 = vpop.f32.mrb[0].mxu0
      %v1224 = vadd.f32 0.0, %v1223
      %v1225 = vpop.f32.mrb[0].mxu0
      %v1226 = vpop.f32.mrb[0].mxu0
      %v1227 = vadd.f32 0.0, %v1226
      %v1228 = vpop.f32.mrb[0].mxu0
      %1229 = vmatprep.mubr.bf16.mxu0 0
      %1230 = vmatmul.mubr.bf16.gmra.mrb[0].mxu0 %v1132
      %v1231 = vpop.f32.mrb[0].mxu0
      %v1232 = vadd.f32 0.0, %v1231
      %v1233 = vpop.f32.mrb[0].mxu0
      %v1234 = vpop.f32.mrb[0].mxu0
      %v1235 = vadd.f32 0.0, %v1234
      %v1236 = vpop.f32.mrb[0].mxu0
      %1237 = vmatprep.mubr.bf16.mxu0 0
      %1238 = vmatmul.mubr.bf16.gmra.mrb[0].mxu0 %v1135
      %v1239 = vpop.f32.mrb[0].mxu0
      %v1240 = vadd.f32 0.0, %v1239
      %v1241 = vpop.f32.mrb[0].mxu0
      %v1242 = vpop.f32.mrb[0].mxu0
      %v1243 = vadd.f32 0.0, %v1242
      %v1244 = vpop.f32.mrb[0].mxu0
      %1245 = vmatprep.mubr.bf16.mxu0 0
      %1246 = vmatmul.mubr.bf16.gmra.mrb[0].mxu0 %v1138
      %v1247 = vpop.f32.mrb[0].mxu0
      %v1248 = vadd.f32 0.0, %v1247
      %v1249 = vpop.f32.mrb[0].mxu0
      %v1250 = vpop.f32.mrb[0].mxu0
      %v1251 = vadd.f32 0.0, %v1250
      %v1252 = vpop.f32.mrb[0].mxu0
      %1253 = vmatprep.mubr.bf16.mxu0 0
      %1254 = vmatmul.mubr.bf16.gmra.mrb[0].mxu0 %v1141
      %v1255 = vpop.f32.mrb[0].mxu0
      %v1256 = vadd.f32 0.0, %v1255
      %v1257 = vpop.f32.mrb[0].mxu0
      %v1258 = vpop.f32.mrb[0].mxu0
      %v1259 = vadd.f32 0.0, %v1258
      %v1260 = vpop.f32.mrb[0].mxu0
      %1261 = vmatprep.mubr.bf16.mxu0 0
      %1262 = vmatmul.mubr.bf16.gmra.mrb[0].mxu0 %v1144
      %v1263 = vpop.f32.mrb[0].mxu0
      %v1264 = vadd.f32 0.0, %v1263
      %v1265 = vpop.f32.mrb[0].mxu0
      %v1266 = vpop.f32.mrb[0].mxu0
      %v1267 = vadd.f32 0.0, %v1266
      %v1268 = vpop.f32.mrb[0].mxu0
      %1269 = vmatprep.mubr.bf16.mxu0 0
      %1270 = vmatmul.mubr.bf16.gmra.mrb[0].mxu0 %v1147
      %v1271 = vpop.f32.mrb[0].mxu0
      %v1272 = vadd.f32 0.0, %v1271
      %v1273 = vpop.f32.mrb[0].mxu0
      %v1274 = vpop.f32.mrb[0].mxu0
      %v1275 = vadd.f32 0.0, %v1274
      %v1276 = vpop.f32.mrb[0].mxu0
      %1277 = vmatprep.mubr.bf16.mxu0 0
      %1278 = vmatmul.mubr.bf16.gmra.mrb[0].mxu0 %v1150
      %v1279 = vpop.f32.mrb[0].mxu0
      %v1280 = vadd.f32 0.0, %v1279
      %v1281 = vpop.f32.mrb[0].mxu0
      %v1282 = vpop.f32.mrb[0].mxu0
      %v1283 = vadd.f32 0.0, %v1282
      %v1284 = vpop.f32.mrb[0].mxu0
      %1285 = vmatprep.mubr.bf16.mxu0 0
      %1286 = vmatmul.mubr.bf16.gmra.mrb[0].mxu0 %v1153
      %v1287 = vpop.f32.mrb[0].mxu0
      %v1288 = vadd.f32 0.0, %v1287
      %v1289 = vpop.f32.mrb[0].mxu0
      %v1290 = vpop.f32.mrb[0].mxu0
      %v1291 = vadd.f32 0.0, %v1290
      %v1292 = vpop.f32.mrb[0].mxu0
      %1293 = vmatprep.mubr.bf16.mxu0 0
      %1294 = vmatmul.mubr.bf16.gmra.mrb[0].mxu0 %v1156
      %v1295 = vpop.f32.mrb[0].mxu0
      %v1296 = vadd.f32 0.0, %v1295
      %v1297 = vpop.f32.mrb[0].mxu0
      %v1298 = vpop.f32.mrb[0].mxu0
      %v1299 = vadd.f32 0.0, %v1298
      %v1300 = vpop.f32.mrb[0].mxu0
      %1301 = vmatprep.mubr.bf16.mxu0 0
      %1302 = vmatmul.mubr.bf16.gmra.mrb[0].mxu0 %v1159
      %v1303 = vpop.f32.mrb[0].mxu0
      %v1304 = vadd.f32 0.0, %v1303
      %v1305 = vpop.f32.mrb[0].mxu0
      %v1306 = vpop.f32.mrb[0].mxu0
      %v1307 = vadd.f32 0.0, %v1306
      %v1308 = vpop.f32.mrb[0].mxu0
      %1309 = vmatprep.mubr.bf16.mxu0 0
      %1310 = vmatmul.mubr.bf16.gmra.mrb[0].mxu0 %v1162
      %v1311 = vpop.f32.mrb[0].mxu0
      %v1312 = vadd.f32 0.0, %v1311
      %v1313 = vpop.f32.mrb[0].mxu0
      %v1314 = vpop.f32.mrb[0].mxu0
      %v1315 = vadd.f32 0.0, %v1314
      %v1316 = vpop.f32.mrb[0].mxu0
      %1317 = vmatprep.mubr.bf16.mxu0 0
      %1318 = vmatmul.mubr.bf16.gmra.mrb[0].mxu0 %v1165
      %v1319 = vpop.f32.mrb[0].mxu0
      %v1320 = vadd.f32 0.0, %v1319
      %v1321 = vpop.f32.mrb[0].mxu0
      %v1322 = vpop.f32.mrb[0].mxu0
      %v1323 = vadd.f32 0.0, %v1322
      %v1324 = vpop.f32.mrb[0].mxu0
      %1325 = vmatprep.mubr.bf16.mxu0 0
      %1326 = vmatmul.mubr.bf16.gmra.mrb[0].mxu0 %v1168
      %v1327 = vpop.f32.mrb[0].mxu0
      %v1328 = vadd.f32 0.0, %v1327
      %v1329 = vpop.f32.mrb[0].mxu0
      %v1330 = vpop.f32.mrb[0].mxu0
      %v1331 = vadd.f32 0.0, %v1330
      %v1332 = vpop.f32.mrb[0].mxu0
      %1333 = vdwg.mxu0
      %v1334 = vld [vmem:[%s306] sm:$0xff]
      %v1335 = vld [vmem:[%s306 + $0x8] sm:$0xff]
      %v1336 = vld [vmem:[%s306 + $0x10] sm:$0xff]
      %v1337 = vld [vmem:[%s306 + $0x18] sm:$0xff]
      %v1338 = vld [vmem:[%s306 + $0x20] sm:$0xff]
      %v1339 = vld [vmem:[%s306 + $0x28] sm:$0xff]
      %v1340 = vld [vmem:[%s306 + $0x30] sm:$0xff]
      %v1341 = vld [vmem:[%s306 + $0x38] sm:$0xff]
      %v1342 = vld [vmem:[%s306 + $0x40] sm:$0xff]
      %v1343 = vld [vmem:[%s306 + $0x48] sm:$0xff]
      %v1344 = vld [vmem:[%s306 + $0x50] sm:$0xff]
      %v1345 = vld [vmem:[%s306 + $0x58] sm:$0xff]
      %v1346 = vld [vmem:[%s306 + $0x60] sm:$0xff]
      %v1347 = vld [vmem:[%s306 + $0x68] sm:$0xff]
      %v1348 = vld [vmem:[%s306 + $0x70] sm:$0xff]
      %v1349 = vld [vmem:[%s306 + $0x78] sm:$0xff]
      %v1350 = vld [vmem:[%s306 + $0x80] sm:$0xff]
      %v1351 = vld [vmem:[%s306 + $0x88] sm:$0xff]
      %v1352 = vld [vmem:[%s306 + $0x90] sm:$0xff]
      %v1353 = vld [vmem:[%s306 + $0x98] sm:$0xff]
      %v1354 = vld [vmem:[%s306 + $0xa0] sm:$0xff]
      %v1355 = vld [vmem:[%s306 + $0xa8] sm:$0xff]
      %v1356 = vld [vmem:[%s306 + $0xb0] sm:$0xff]
      %v1357 = vld [vmem:[%s306 + $0xb8] sm:$0xff]
      %v1358 = vld [vmem:[%s306 + $0xc0] sm:$0xff]
      %v1359 = vld [vmem:[%s306 + $0xc8] sm:$0xff]
      %v1360 = vld [vmem:[%s306 + $0xd0] sm:$0xff]
      %v1361 = vld [vmem:[%s306 + $0xd8] sm:$0xff]
      %v1362 = vld [vmem:[%s306 + $0xe0] sm:$0xff]
      %v1363 = vld [vmem:[%s306 + $0xe8] sm:$0xff]
      %v1364 = vld [vmem:[%s306 + $0xf0] sm:$0xff]
      %v1365 = vld [vmem:[%s306 + $0xf8] sm:$0xff]
      %v1366 = vmul.f32 %v1334, %v706
      %v1367 = vmul.f32 %v1335, %v709
      %v1368 = vmul.f32 %v1336, %v714
      %v1369 = vmul.f32 %v1337, %v717
      %v1370 = vmul.f32 %v1338, %v722
      %v1371 = vmul.f32 %v1339, %v725
      %v1372 = vmul.f32 %v1340, %v730
      %v1373 = vmul.f32 %v1341, %v733
      %v1374 = vmul.f32 %v1342, %v738
      %v1375 = vmul.f32 %v1343, %v741
      %v1376 = vmul.f32 %v1344, %v746
      %v1377 = vmul.f32 %v1345, %v749
      %v1378 = vmul.f32 %v1346, %v754
      %v1379 = vmul.f32 %v1347, %v757
      %v1380 = vmul.f32 %v1348, %v762
      %v1381 = vmul.f32 %v1349, %v765
      %v1382 = vmul.f32 %v1350, %v770
      %v1383 = vmul.f32 %v1351, %v773
      %v1384 = vmul.f32 %v1352, %v778
      %v1385 = vmul.f32 %v1353, %v781
      %v1386 = vmul.f32 %v1354, %v786
      %v1387 = vmul.f32 %v1355, %v789
      %v1388 = vmul.f32 %v1356, %v794
      %v1389 = vmul.f32 %v1357, %v797
      %v1390 = vmul.f32 %v1358, %v802
      %v1391 = vmul.f32 %v1359, %v805
      %v1392 = vmul.f32 %v1360, %v810
      %v1393 = vmul.f32 %v1361, %v813
      %v1394 = vmul.f32 %v1362, %v818
      %v1395 = vmul.f32 %v1363, %v821
      %v1396 = vmul.f32 %v1364, %v826
      %v1397 = vmul.f32 %v1365, %v829
      %v1398 = vmul.f32 %v1366, %v1208
      %v1399 = vmul.f32 %v1367, %v1211
      %v1400 = vmul.f32 %v1368, %v1216
      %v1401 = vmul.f32 %v1369, %v1219
      %v1402 = vmul.f32 %v1370, %v1224
      %v1403 = vmul.f32 %v1371, %v1227
      %v1404 = vmul.f32 %v1372, %v1232
      %v1405 = vmul.f32 %v1373, %v1235
      %v1406 = vmul.f32 %v1374, %v1240
      %v1407 = vmul.f32 %v1375, %v1243
      %v1408 = vmul.f32 %v1376, %v1248
      %v1409 = vmul.f32 %v1377, %v1251
      %v1410 = vmul.f32 %v1378, %v1256
      %v1411 = vmul.f32 %v1379, %v1259
      %v1412 = vmul.f32 %v1380, %v1264
      %v1413 = vmul.f32 %v1381, %v1267
      %v1414 = vmul.f32 %v1382, %v1272
      %v1415 = vmul.f32 %v1383, %v1275
      %v1416 = vmul.f32 %v1384, %v1280
      %v1417 = vmul.f32 %v1385, %v1283
      %v1418 = vmul.f32 %v1386, %v1288
      %v1419 = vmul.f32 %v1387, %v1291
      %v1420 = vmul.f32 %v1388, %v1296
      %v1421 = vmul.f32 %v1389, %v1299
      %v1422 = vmul.f32 %v1390, %v1304
      %v1423 = vmul.f32 %v1391, %v1307
      %v1424 = vmul.f32 %v1392, %v1312
      %v1425 = vmul.f32 %v1393, %v1315
      %v1426 = vmul.f32 %v1394, %v1320
      %v1427 = vmul.f32 %v1395, %v1323
      %v1428 = vmul.f32 %v1396, %v1328
      %v1429 = vmul.f32 %v1397, %v1331
      %vm1430 = vcmask 523264
      %1431 = vst.msk [vmem:[%s324] sm:$0xff] %vm1430, %v1398
      %1432 = vst.msk [vmem:[%s324 + $0x8] sm:$0xff] %vm1430, %v1399
      %1433 = vst.msk [vmem:[%s324 + $0x10] sm:$0xff] %vm1430, %v1400
      %1434 = vst.msk [vmem:[%s324 + $0x18] sm:$0xff] %vm1430, %v1401
      %1435 = vst.msk [vmem:[%s324 + $0x20] sm:$0xff] %vm1430, %v1402
      %1436 = vst.msk [vmem:[%s324 + $0x28] sm:$0xff] %vm1430, %v1403
      %1437 = vst.msk [vmem:[%s324 + $0x30] sm:$0xff] %vm1430, %v1404
      %1438 = vst.msk [vmem:[%s324 + $0x38] sm:$0xff] %vm1430, %v1405
      %1439 = vst.msk [vmem:[%s324 + $0x40] sm:$0xff] %vm1430, %v1406
      %1440 = vst.msk [vmem:[%s324 + $0x48] sm:$0xff] %vm1430, %v1407
      %1441 = vst.msk [vmem:[%s324 + $0x50] sm:$0xff] %vm1430, %v1408
      %1442 = vst.msk [vmem:[%s324 + $0x58] sm:$0xff] %vm1430, %v1409
      %1443 = vst.msk [vmem:[%s324 + $0x60] sm:$0xff] %vm1430, %v1410
      %1444 = vst.msk [vmem:[%s324 + $0x68] sm:$0xff] %vm1430, %v1411
      %1445 = vst.msk [vmem:[%s324 + $0x70] sm:$0xff] %vm1430, %v1412
      %1446 = vst.msk [vmem:[%s324 + $0x78] sm:$0xff] %vm1430, %v1413
      %1447 = vst.msk [vmem:[%s324 + $0x80] sm:$0xff] %vm1430, %v1414
      %1448 = vst.msk [vmem:[%s324 + $0x88] sm:$0xff] %vm1430, %v1415
      %1449 = vst.msk [vmem:[%s324 + $0x90] sm:$0xff] %vm1430, %v1416
      %1450 = vst.msk [vmem:[%s324 + $0x98] sm:$0xff] %vm1430, %v1417
      %1451 = vst.msk [vmem:[%s324 + $0xa0] sm:$0xff] %vm1430, %v1418
      %1452 = vst.msk [vmem:[%s324 + $0xa8] sm:$0xff] %vm1430, %v1419
      %1453 = vst.msk [vmem:[%s324 + $0xb0] sm:$0xff] %vm1430, %v1420
      %1454 = vst.msk [vmem:[%s324 + $0xb8] sm:$0xff] %vm1430, %v1421
      %1455 = vst.msk [vmem:[%s324 + $0xc0] sm:$0xff] %vm1430, %v1422
      %1456 = vst.msk [vmem:[%s324 + $0xc8] sm:$0xff] %vm1430, %v1423
      %1457 = vst.msk [vmem:[%s324 + $0xd0] sm:$0xff] %vm1430, %v1424
      %1458 = vst.msk [vmem:[%s324 + $0xd8] sm:$0xff] %vm1430, %v1425
      %1459 = vst.msk [vmem:[%s324 + $0xe0] sm:$0xff] %vm1430, %v1426
      %1460 = vst.msk [vmem:[%s324 + $0xe8] sm:$0xff] %vm1430, %v1427
      %1461 = vst.msk [vmem:[%s324 + $0xf0] sm:$0xff] %vm1430, %v1428
      %1462 = vst.msk [vmem:[%s324 + $0xf8] sm:$0xff] %vm1430, %v1429
      %s1463 = smul.u32 32, %s18
      %p1464 = scmp.lt.s32.totalorder %s1463, 95
      %s1465 = scalar_select %p1464, %s1463, 95
      %s1466 = smul.addr %s1465, 8
      %s1467 = scalar_lea.vmem %s7, %s1466
      // Predicated region
      $region49: #{update_e_forward.4} parent=47 // pred_check
        %p1468 = pneg %p198
      $region50: #{update_e_forward.4} parent=47 // pred_check_branch
        %1470 = sbr.rel (%p1468) target = $region52
      $region51: #{update_e_forward.4} parent=47 // pred_region
        %s1471 = smul.u32 32, %s18
      $region52: #{update_e_forward.4} parent=47 // pred_fallthru
        _
    $region48: #{update_e_forward.4} parent=5 // pred_fallthru
      _
    %p1472 = scmp.le.s32.totalorder 2, %s13
    // Predicated region
    $region53: #{update_e_forward.4} parent=5 // pred_check
      %p1473 = pneg %p1472
    $region54: #{update_e_forward.4} parent=5 // pred_check_branch
      %1475 = sbr.rel (%p1473) target = $region56
    $region55: #{update_e_forward.4} parent=5 // pred_region
      %s1476 = ssub.s32 %s13, 2
      // Predicated region
      $region57: #{update_e_forward.4} parent=55 // pred_check
        %p1477 = pneg %p204
      $region58: #{update_e_forward.4} parent=55 // pred_check_branch
        %1479 = sbr.rel (%p1477) target = $region60
      $region59: #{update_e_forward.4} parent=55 // pred_region
        %s1480 = smul.u32 32, %s19
        %p1481 = scmp.lt.s32.totalorder %s1480, 95
        %s1482 = scalar_select %p1481, %s1480, 95
        %s1483 = smul.addr %s1482, 8
        %s1484 = scalar_lea.vmem %s7, %s1483
      $region60: #{update_e_forward.4} parent=55 // pred_fallthru
        _
    $region56: #{update_e_forward.4} parent=5 // pred_fallthru
      _
  $region6: #{update_e_forward.4} parent=0 // loop_footer
    %s17 = sadd.s32 1, %s13
  $region7: #{update_e_forward.4} parent=0 // loop_footer_branch
    %12 = sbr.rel target = $region3
  $region8: #{update_e_forward.4} parent=0 // loop_exit
    _

// kernel: update_e_forward.3
$region0: #{update_e_forward.3}
  #allocation0 [shape = 'u32[]', space=smem, size = 0x4, offset = 0x4, fixed_abs, tag = 'smem constant byte address 0x4 - core index']
  #allocation1 [shape = 'u32[144,128]{1,0:T(1,128)}', space=vmem, size = 0x12000, scoped, tag = 'internal scratch']
  %s0 = inlined_call_operand.vmem [shape: f32[200,128], index: 0, kind: input, shape index: {}]
  %s1 = inlined_call_operand.vmem [shape: f32[200,8], index: 1, kind: input, shape index: {}]
  %s2 = inlined_call_operand.vmem [shape: bf16[128,128], index: 2, kind: input, shape index: {}]
  %s3 = inlined_call_operand.vmem [shape: f32[1,128], index: 3, kind: input, shape index: {}]
  %s4 = inlined_call_operand.vmem [shape: bf16[128,128], index: 4, kind: input, shape index: {}]
  %s5 = inlined_call_operand.vmem [shape: f32[1,128], index: 5, kind: input, shape index: {}]
  %s6 = inlined_call_operand.vmem [shape: bf16[8,128], index: 6, kind: input, shape index: {}]
  %s7 = inlined_call_operand.vmem [shape: bf16[128,64], index: 7, kind: input, shape index: {}]
  %s8 = inlined_call_operand.vmem [shape: f32[200,128], index: 8, kind: output, shape index: {0}]
  %s9 = inlined_call_operand.vmem [shape: f32[200,64], index: 9, kind: output, shape index: {1}]
  %10 = xla_tuple %s8, %s9
  %s11 = sld [smem:[#allocation0]]
  $region50: #{update_e_forward.3} parent=0
    _
  %s13 = ssub.s32 1, %s11
  %s14 = scalar_select 0, %s13, %s11
  // Predicated region
  $region2: #{update_e_forward.3} parent=0 // pred_check
    _
  $region3: #{update_e_forward.3} parent=0 // pred_check_branch
    %16 = sbr.rel (0) target = $region5
  $region4: #{update_e_forward.3} parent=0 // pred_region
    _
  $region5: #{update_e_forward.3} parent=0 // pred_fallthru
    _
  // Predicated region
  $region6: #{update_e_forward.3} parent=0 // pred_check
    _
  $region7: #{update_e_forward.3} parent=0 // pred_check_branch
    %18 = sbr.rel (0) target = $region9
  $region8: #{update_e_forward.3} parent=0 // pred_region
    _
  $region9: #{update_e_forward.3} parent=0 // pred_fallthru
    _
  // Predicated region
  $region10: #{update_e_forward.3} parent=0 // pred_check
    _
  $region11: #{update_e_forward.3} parent=0 // pred_check_branch
    %20 = sbr.rel (0) target = $region13
  $region12: #{update_e_forward.3} parent=0 // pred_region
    _
  $region13: #{update_e_forward.3} parent=0 // pred_fallthru
    _
  // Predicated region
  $region14: #{update_e_forward.3} parent=0 // pred_check
    _
  $region15: #{update_e_forward.3} parent=0 // pred_check_branch
    %22 = sbr.rel (0) target = $region17
  $region16: #{update_e_forward.3} parent=0 // pred_region
    _
  $region17: #{update_e_forward.3} parent=0 // pred_fallthru
    _
  // Predicated region
  $region18: #{update_e_forward.3} parent=0 // pred_check
    _
  $region19: #{update_e_forward.3} parent=0 // pred_check_branch
    %24 = sbr.rel (0) target = $region21
  $region20: #{update_e_forward.3} parent=0 // pred_region
    _
  $region21: #{update_e_forward.3} parent=0 // pred_fallthru
    _
  // Predicated region
  $region22: #{update_e_forward.3} parent=0 // pred_check
    _
  $region23: #{update_e_forward.3} parent=0 // pred_check_branch
    %26 = sbr.rel (0) target = $region25
  $region24: #{update_e_forward.3} parent=0 // pred_region
    _
  $region25: #{update_e_forward.3} parent=0 // pred_fallthru
    _
  // Predicated region
  $region26: #{update_e_forward.3} parent=0 // pred_check
    _
  $region27: #{update_e_forward.3} parent=0 // pred_check_branch
    %28 = sbr.rel (0) target = $region29
  $region28: #{update_e_forward.3} parent=0 // pred_region
    _
  $region29: #{update_e_forward.3} parent=0 // pred_fallthru
    _
  // Predicated region
  $region30: #{update_e_forward.3} parent=0 // pred_check
    _
  $region31: #{update_e_forward.3} parent=0 // pred_check_branch
    %30 = sbr.rel (0) target = $region33
  $region32: #{update_e_forward.3} parent=0 // pred_region
    _
  $region33: #{update_e_forward.3} parent=0 // pred_fallthru
    _
  %v32 = vld [vmem:[%s0] sm:$0xff]
  %v33 = vld [vmem:[%s0 + $0x8] sm:$0xff]
  %v34 = vld [vmem:[%s0 + $0x10] sm:$0xff]
  %v35 = vld [vmem:[%s0 + $0x18] sm:$0xff]
  %v36 = vld [vmem:[%s0 + $0x20] sm:$0xff]
  %v37 = vld [vmem:[%s0 + $0x28] sm:$0xff]
  %v38 = vld [vmem:[%s0 + $0x30] sm:$0xff]
  %v39 = vld [vmem:[%s0 + $0x38] sm:$0xff]
  %v40 = vld [vmem:[%s0 + $0x40] sm:$0xff]
  %v41 = vld [vmem:[%s0 + $0x48] sm:$0xff]
  %v42 = vld [vmem:[%s0 + $0x50] sm:$0xff]
  %v43 = vld [vmem:[%s0 + $0x58] sm:$0xff]
  %v44 = vld [vmem:[%s0 + $0x60] sm:$0xff]
  %v45 = vld [vmem:[%s0 + $0x68] sm:$0xff]
  %v46 = vld [vmem:[%s0 + $0x70] sm:$0xff]
  %v47 = vld [vmem:[%s0 + $0x78] sm:$0xff]
  %v48 = vld [vmem:[%s0 + $0x80] sm:$0xff]
  %v49 = vld [vmem:[%s0 + $0x88] sm:$0xff]
  %v50 = vld [vmem:[%s0 + $0x90] sm:$0xff]
  %v51 = vld [vmem:[%s0 + $0x98] sm:$0xff]
  %v52 = vld [vmem:[%s0 + $0xa0] sm:$0xff]
  %v53 = vld [vmem:[%s0 + $0xa8] sm:$0xff]
  %v54 = vld [vmem:[%s0 + $0xb0] sm:$0xff]
  %v55 = vld [vmem:[%s0 + $0xb8] sm:$0xff]
  %v56 = vld [vmem:[%s0 + $0xc0] sm:$0xff]
  %v57 = vpack.c.bf16 %v33, %v32
  %v58 = vpack.c.bf16 %v35, %v34
  %v59 = vpack.c.bf16 %v37, %v36
  %v60 = vpack.c.bf16 %v39, %v38
  %v61 = vpack.c.bf16 %v41, %v40
  %v62 = vpack.c.bf16 %v43, %v42
  %v63 = vpack.c.bf16 %v45, %v44
  %v64 = vpack.c.bf16 %v47, %v46
  %v65 = vpack.c.bf16 %v49, %v48
  %v66 = vpack.c.bf16 %v51, %v50
  %v67 = vpack.c.bf16 %v53, %v52
  %v68 = vpack.c.bf16 %v55, %v54
  %v69 = vpack.c.bf16 %v56, %v56
  %v70 = vld [vmem:[%s2] sm:$0xf]
  %v71 = vld [vmem:[%s2 + $0x4] sm:$0xf]
  %v72 = vld [vmem:[%s2 + $0x8] sm:$0xf]
  %v73 = vld [vmem:[%s2 + $0xc] sm:$0xf]
  %v74 = vld [vmem:[%s2 + $0x10] sm:$0xf]
  %v75 = vld [vmem:[%s2 + $0x14] sm:$0xf]
  %v76 = vld [vmem:[%s2 + $0x18] sm:$0xf]
  %v77 = vld [vmem:[%s2 + $0x1c] sm:$0xf]
  %v78 = vld [vmem:[%s2 + $0x20] sm:$0xf]
  %v79 = vld [vmem:[%s2 + $0x24] sm:$0xf]
  %v80 = vld [vmem:[%s2 + $0x28] sm:$0xf]
  %v81 = vld [vmem:[%s2 + $0x2c] sm:$0xf]
  %v82 = vld [vmem:[%s2 + $0x30] sm:$0xf]
  %v83 = vld [vmem:[%s2 + $0x34] sm:$0xf]
  %v84 = vld [vmem:[%s2 + $0x38] sm:$0xf]
  %v85 = vld [vmem:[%s2 + $0x3c] sm:$0xf]
  %v86 = vld [vmem:[%s3] sm:$0x1]
  %v88 = vlaneseq
  %v89 = vshrl.u32 %v88, 7
  %v90 = vsub.s32 0, %v89
  %v91 = vrot.slane %v86, %v90
  %v109 = vunpack.c.l.b16 %v70
  %v110 = vunpack.c.l.b16 %v71
  %v111 = vunpack.c.l.b16 %v72
  %v112 = vunpack.c.l.b16 %v73
  %v113 = vunpack.c.l.b16 %v74
  %v114 = vunpack.c.l.b16 %v75
  %v115 = vunpack.c.l.b16 %v76
  %v116 = vunpack.c.l.b16 %v77
  %v117 = vunpack.c.l.b16 %v78
  %v118 = vunpack.c.l.b16 %v79
  %v119 = vunpack.c.l.b16 %v80
  %v120 = vunpack.c.l.b16 %v81
  %v121 = vunpack.c.l.b16 %v82
  %v122 = vunpack.c.l.b16 %v83
  %v123 = vunpack.c.l.b16 %v84
  %v124 = vunpack.c.l.b16 %v85
  %v125 = vpack.c.b16 %v110, %v109
  %v126 = vpack.c.b16 %v112, %v111
  %v127 = vpack.c.b16 %v114, %v113
  %v128 = vpack.c.b16 %v116, %v115
  %v129 = vpack.c.b16 %v118, %v117
  %v130 = vpack.c.b16 %v120, %v119
  %v131 = vpack.c.b16 %v122, %v121
  %v132 = vpack.c.b16 %v124, %v123
  %141 = vmatprep.subr.bf16.mxu0 0
  %142 = vmatpush1.bf16.msra.mxu0 %v125
  %143 = vmatprep.subr.bf16.mxu0 0
  %144 = vmatpush1.bf16.msra.mxu0 %v126
  %145 = vmatprep.subr.bf16.mxu0 0
  %146 = vmatpush1.bf16.msra.mxu0 %v127
  %147 = vmatprep.subr.bf16.mxu0 0
  %148 = vmatpush1.bf16.msra.mxu0 %v128
  %149 = vmatprep.subr.bf16.mxu0 0
  %150 = vmatpush1.bf16.msra.mxu0 %v129
  %151 = vmatprep.subr.bf16.mxu0 0
  %152 = vmatpush1.bf16.msra.mxu0 %v130
  %153 = vmatprep.subr.bf16.mxu0 0
  %154 = vmatpush1.bf16.msra.mxu0 %v131
  %155 = vmatprep.subr.bf16.mxu0 0
  %156 = vmatpush1.bf16.msra.mxu0 %v132
  %157 = vmatprep.subr.bf16.mxu0 0
  %158 = vmatpush1.bf16.msra.mxu0 0
  %159 = vmatprep.subr.bf16.mxu0 0
  %160 = vmatpush1.bf16.msra.mxu0 0
  %161 = vmatprep.subr.bf16.mxu0 0
  %162 = vmatpush1.bf16.msra.mxu0 0
  %163 = vmatprep.subr.bf16.mxu0 0
  %164 = vmatpush1.bf16.msra.mxu0 0
  %165 = vmatprep.subr.bf16.mxu0 0
  %166 = vmatpush1.bf16.msra.mxu0 0
  %167 = vmatprep.subr.bf16.mxu0 0
  %168 = vmatpush1.bf16.msra.mxu0 0
  %169 = vmatprep.subr.bf16.mxu0 0
  %170 = vmatpush1.bf16.msra.mxu0 0
  %171 = vmatprep.subr.bf16.mxu0 0
  %172 = vmatpush1.bf16.msra.mxu0 0
  %173 = vmatprep.mubr.bf16.mxu0 0
  %174 = vmatmul.mubr.bf16.gmra.mrb[0].mxu0 %v57
  %v175 = vpop.f32.mrb[0].mxu0
  %v176 = vadd.f32 %v91, %v175
  %v177 = vpop.f32.mrb[0].mxu0
  %v178 = vpop.f32.mrb[0].mxu0
  %v179 = vadd.f32 %v91, %v178
  %v180 = vpop.f32.mrb[0].mxu0
  %181 = vmatprep.mubr.bf16.mxu0 0
  %182 = vmatmul.mubr.bf16.gmra.mrb[0].mxu0 %v58
  %v183 = vpop.f32.mrb[0].mxu0
  %v184 = vadd.f32 %v91, %v183
  %v185 = vpop.f32.mrb[0].mxu0
  %v186 = vpop.f32.mrb[0].mxu0
  %v187 = vadd.f32 %v91, %v186
  %v188 = vpop.f32.mrb[0].mxu0
  %189 = vmatprep.mubr.bf16.mxu0 0
  %190 = vmatmul.mubr.bf16.gmra.mrb[0].mxu0 %v59
  %v191 = vpop.f32.mrb[0].mxu0
  %v192 = vadd.f32 %v91, %v191
  %v193 = vpop.f32.mrb[0].mxu0
  %v194 = vpop.f32.mrb[0].mxu0
  %v195 = vadd.f32 %v91, %v194
  %v196 = vpop.f32.mrb[0].mxu0
  %197 = vmatprep.mubr.bf16.mxu0 0
  %198 = vmatmul.mubr.bf16.gmra.mrb[0].mxu0 %v60
  %v199 = vpop.f32.mrb[0].mxu0
  %v200 = vadd.f32 %v91, %v199
  %v201 = vpop.f32.mrb[0].mxu0
  %v202 = vpop.f32.mrb[0].mxu0
  %v203 = vadd.f32 %v91, %v202
  %v204 = vpop.f32.mrb[0].mxu0
  %205 = vmatprep.mubr.bf16.mxu0 0
  %206 = vmatmul.mubr.bf16.gmra.mrb[0].mxu0 %v61
  %v207 = vpop.f32.mrb[0].mxu0
  %v208 = vadd.f32 %v91, %v207
  %v209 = vpop.f32.mrb[0].mxu0
  %v210 = vpop.f32.mrb[0].mxu0
  %v211 = vadd.f32 %v91, %v210
  %v212 = vpop.f32.mrb[0].mxu0
  %213 = vmatprep.mubr.bf16.mxu0 0
  %214 = vmatmul.mubr.bf16.gmra.mrb[0].mxu0 %v62
  %v215 = vpop.f32.mrb[0].mxu0
  %v216 = vadd.f32 %v91, %v215
  %v217 = vpop.f32.mrb[0].mxu0
  %v218 = vpop.f32.mrb[0].mxu0
  %v219 = vadd.f32 %v91, %v218
  %v220 = vpop.f32.mrb[0].mxu0
  %221 = vmatprep.mubr.bf16.mxu0 0
  %222 = vmatmul.mubr.bf16.gmra.mrb[0].mxu0 %v63
  %v223 = vpop.f32.mrb[0].mxu0
  %v224 = vadd.f32 %v91, %v223
  %v225 = vpop.f32.mrb[0].mxu0
  %v226 = vpop.f32.mrb[0].mxu0
  %v227 = vadd.f32 %v91, %v226
  %v228 = vpop.f32.mrb[0].mxu0
  %229 = vmatprep.mubr.bf16.mxu0 0
  %230 = vmatmul.mubr.bf16.gmra.mrb[0].mxu0 %v64
  %v231 = vpop.f32.mrb[0].mxu0
  %v232 = vadd.f32 %v91, %v231
  %v233 = vpop.f32.mrb[0].mxu0
  %v234 = vpop.f32.mrb[0].mxu0
  %v235 = vadd.f32 %v91, %v234
  %v236 = vpop.f32.mrb[0].mxu0
  %237 = vmatprep.mubr.bf16.mxu0 0
  %238 = vmatmul.mubr.bf16.gmra.mrb[0].mxu0 %v65
  %v239 = vpop.f32.mrb[0].mxu0
  %v240 = vadd.f32 %v91, %v239
  %v241 = vpop.f32.mrb[0].mxu0
  %v242 = vpop.f32.mrb[0].mxu0
  %v243 = vadd.f32 %v91, %v242
  %v244 = vpop.f32.mrb[0].mxu0
  %245 = vmatprep.mubr.bf16.mxu0 0
  %246 = vmatmul.mubr.bf16.gmra.mrb[0].mxu0 %v66
  %v247 = vpop.f32.mrb[0].mxu0
  %v248 = vadd.f32 %v91, %v247
  %v249 = vpop.f32.mrb[0].mxu0
  %v250 = vpop.f32.mrb[0].mxu0
  %v251 = vadd.f32 %v91, %v250
  %v252 = vpop.f32.mrb[0].mxu0
  %253 = vmatprep.mubr.bf16.mxu0 0
  %254 = vmatmul.mubr.bf16.gmra.mrb[0].mxu0 %v67
  %v255 = vpop.f32.mrb[0].mxu0
  %v256 = vadd.f32 %v91, %v255
  %v257 = vpop.f32.mrb[0].mxu0
  %v258 = vpop.f32.mrb[0].mxu0
  %v259 = vadd.f32 %v91, %v258
  %v260 = vpop.f32.mrb[0].mxu0
  %261 = vmatprep.mubr.bf16.mxu0 0
  %262 = vmatmul.mubr.bf16.gmra.mrb[0].mxu0 %v68
  %v263 = vpop.f32.mrb[0].mxu0
  %v264 = vadd.f32 %v91, %v263
  %v265 = vpop.f32.mrb[0].mxu0
  %v266 = vpop.f32.mrb[0].mxu0
  %v267 = vadd.f32 %v91, %v266
  %v268 = vpop.f32.mrb[0].mxu0
  %269 = vmatprep.mubr.bf16.mxu0 0
  %270 = vmatmul.mubr.bf16.gmra.mrb[0].mxu0 %v69
  %v271 = vpop.f32.mrb[0].mxu0
  %v272 = vadd.f32 %v91, %v271
  %v273 = vpop.f32.mrb[0].mxu0
  %v274 = vpop.f32.mrb[0].mxu0
  %v275 = vpop.f32.mrb[0].mxu0
  %276 = vdwg.mxu0
  %v277 = vxor.u32 %v176, 2147483648
  %v278 = vxor.u32 %v179, 2147483648
  %v279 = vxor.u32 %v184, 2147483648
  %v280 = vxor.u32 %v187, 2147483648
  %v281 = vxor.u32 %v192, 2147483648
  %v282 = vxor.u32 %v195, 2147483648
  %v283 = vxor.u32 %v200, 2147483648
  %v284 = vxor.u32 %v203, 2147483648
  %v285 = vxor.u32 %v208, 2147483648
  %v286 = vxor.u32 %v211, 2147483648
  %v287 = vxor.u32 %v216, 2147483648
  %v288 = vxor.u32 %v219, 2147483648
  %v289 = vxor.u32 %v224, 2147483648
  %v290 = vxor.u32 %v227, 2147483648
  %v291 = vxor.u32 %v232, 2147483648
  %v292 = vxor.u32 %v235, 2147483648
  %v293 = vxor.u32 %v240, 2147483648
  %v294 = vxor.u32 %v243, 2147483648
  %v295 = vxor.u32 %v248, 2147483648
  %v296 = vxor.u32 %v251, 2147483648
  %v297 = vxor.u32 %v256, 2147483648
  %v298 = vxor.u32 %v259, 2147483648
  %v299 = vxor.u32 %v264, 2147483648
  %v300 = vxor.u32 %v267, 2147483648
  %v301 = vxor.u32 %v272, 2147483648
  %v302 = vmul.f32 %v277, 1.442695
  %v303 = vpow.pop %v302
  %v304 = vmul.f32 %v278, 1.442695
  %v305 = vpow.pop %v304
  %v306 = vmul.f32 %v279, 1.442695
  %v307 = vpow.pop %v306
  %v308 = vmul.f32 %v280, 1.442695
  %v309 = vpow.pop %v308
  %v310 = vmul.f32 %v281, 1.442695
  %v311 = vpow.pop %v310
  %v312 = vmul.f32 %v282, 1.442695
  %v313 = vpow.pop %v312
  %v314 = vmul.f32 %v283, 1.442695
  %v315 = vpow.pop %v314
  %v316 = vmul.f32 %v284, 1.442695
  %v317 = vpow.pop %v316
  %v318 = vmul.f32 %v285, 1.442695
  %v319 = vpow.pop %v318
  %v320 = vmul.f32 %v286, 1.442695
  %v321 = vpow.pop %v320
  %v322 = vmul.f32 %v287, 1.442695
  %v323 = vpow.pop %v322
  %v324 = vmul.f32 %v288, 1.442695
  %v325 = vpow.pop %v324
  %v326 = vmul.f32 %v289, 1.442695
  %v327 = vpow.pop %v326
  %v328 = vmul.f32 %v290, 1.442695
  %v329 = vpow.pop %v328
  %v330 = vmul.f32 %v291, 1.442695
  %v331 = vpow.pop %v330
  %v332 = vmul.f32 %v292, 1.442695
  %v333 = vpow.pop %v332
  %v334 = vmul.f32 %v293, 1.442695
  %v335 = vpow.pop %v334
  %v336 = vmul.f32 %v294, 1.442695
  %v337 = vpow.pop %v336
  %v338 = vmul.f32 %v295, 1.442695
  %v339 = vpow.pop %v338
  %v340 = vmul.f32 %v296, 1.442695
  %v341 = vpow.pop %v340
  %v342 = vmul.f32 %v297, 1.442695
  %v343 = vpow.pop %v342
  %v344 = vmul.f32 %v298, 1.442695
  %v345 = vpow.pop %v344
  %v346 = vmul.f32 %v299, 1.442695
  %v347 = vpow.pop %v346
  %v348 = vmul.f32 %v300, 1.442695
  %v349 = vpow.pop %v348
  %v350 = vmul.f32 %v301, 1.442695
  %v351 = vpow.pop %v350
  %v352 = vadd.f32 %v303, 1.0
  %v353 = vadd.f32 %v305, 1.0
  %v354 = vadd.f32 %v307, 1.0
  %v355 = vadd.f32 %v309, 1.0
  %v356 = vadd.f32 %v311, 1.0
  %v357 = vadd.f32 %v313, 1.0
  %v358 = vadd.f32 %v315, 1.0
  %v359 = vadd.f32 %v317, 1.0
  %v360 = vadd.f32 %v319, 1.0
  %v361 = vadd.f32 %v321, 1.0
  %v362 = vadd.f32 %v323, 1.0
  %v363 = vadd.f32 %v325, 1.0
  %v364 = vadd.f32 %v327, 1.0
  %v365 = vadd.f32 %v329, 1.0
  %v366 = vadd.f32 %v331, 1.0
  %v367 = vadd.f32 %v333, 1.0
  %v368 = vadd.f32 %v335, 1.0
  %v369 = vadd.f32 %v337, 1.0
  %v370 = vadd.f32 %v339, 1.0
  %v371 = vadd.f32 %v341, 1.0
  %v372 = vadd.f32 %v343, 1.0
  %v373 = vadd.f32 %v345, 1.0
  %v374 = vadd.f32 %v347, 1.0
  %v375 = vadd.f32 %v349, 1.0
  %v376 = vadd.f32 %v351, 1.0
  %v377 = vrcp.pop %v352
  %v378 = vmul.f32 1.0, %v377
  %v379 = vrcp.pop %v353
  %v380 = vmul.f32 1.0, %v379
  %v381 = vrcp.pop %v354
  %v382 = vmul.f32 1.0, %v381
  %v383 = vrcp.pop %v355
  %v384 = vmul.f32 1.0, %v383
  %v385 = vrcp.pop %v356
  %v386 = vmul.f32 1.0, %v385
  %v387 = vrcp.pop %v357
  %v388 = vmul.f32 1.0, %v387
  %v389 = vrcp.pop %v358
  %v390 = vmul.f32 1.0, %v389
  %v391 = vrcp.pop %v359
  %v392 = vmul.f32 1.0, %v391
  %v393 = vrcp.pop %v360
  %v394 = vmul.f32 1.0, %v393
  %v395 = vrcp.pop %v361
  %v396 = vmul.f32 1.0, %v395
  %v397 = vrcp.pop %v362
  %v398 = vmul.f32 1.0, %v397
  %v399 = vrcp.pop %v363
  %v400 = vmul.f32 1.0, %v399
  %v401 = vrcp.pop %v364
  %v402 = vmul.f32 1.0, %v401
  %v403 = vrcp.pop %v365
  %v404 = vmul.f32 1.0, %v403
  %v405 = vrcp.pop %v366
  %v406 = vmul.f32 1.0, %v405
  %v407 = vrcp.pop %v367
  %v408 = vmul.f32 1.0, %v407
  %v409 = vrcp.pop %v368
  %v410 = vmul.f32 1.0, %v409
  %v411 = vrcp.pop %v369
  %v412 = vmul.f32 1.0, %v411
  %v413 = vrcp.pop %v370
  %v414 = vmul.f32 1.0, %v413
  %v415 = vrcp.pop %v371
  %v416 = vmul.f32 1.0, %v415
  %v417 = vrcp.pop %v372
  %v418 = vmul.f32 1.0, %v417
  %v419 = vrcp.pop %v373
  %v420 = vmul.f32 1.0, %v419
  %v421 = vrcp.pop %v374
  %v422 = vmul.f32 1.0, %v421
  %v423 = vrcp.pop %v375
  %v424 = vmul.f32 1.0, %v423
  %v425 = vrcp.pop %v376
  %v426 = vmul.f32 1.0, %v425
  %v427 = vmul.f32 %v176, %v378
  %v428 = vmul.f32 %v179, %v380
  %v429 = vmul.f32 %v184, %v382
  %v430 = vmul.f32 %v187, %v384
  %v431 = vmul.f32 %v192, %v386
  %v432 = vmul.f32 %v195, %v388
  %v433 = vmul.f32 %v200, %v390
  %v434 = vmul.f32 %v203, %v392
  %v435 = vmul.f32 %v208, %v394
  %v436 = vmul.f32 %v211, %v396
  %v437 = vmul.f32 %v216, %v398
  %v438 = vmul.f32 %v219, %v400
  %v439 = vmul.f32 %v224, %v402
  %v440 = vmul.f32 %v227, %v404
  %v441 = vmul.f32 %v232, %v406
  %v442 = vmul.f32 %v235, %v408
  %v443 = vmul.f32 %v240, %v410
  %v444 = vmul.f32 %v243, %v412
  %v445 = vmul.f32 %v248, %v414
  %v446 = vmul.f32 %v251, %v416
  %v447 = vmul.f32 %v256, %v418
  %v448 = vmul.f32 %v259, %v420
  %v449 = vmul.f32 %v264, %v422
  %v450 = vmul.f32 %v267, %v424
  %v451 = vmul.f32 %v272, %v426
  %v452 = vld [vmem:[%s4] sm:$0xf]
  %v453 = vld [vmem:[%s4 + $0x4] sm:$0xf]
  %v454 = vld [vmem:[%s4 + $0x8] sm:$0xf]
  %v455 = vld [vmem:[%s4 + $0xc] sm:$0xf]
  %v456 = vld [vmem:[%s4 + $0x10] sm:$0xf]
  %v457 = vld [vmem:[%s4 + $0x14] sm:$0xf]
  %v458 = vld [vmem:[%s4 + $0x18] sm:$0xf]
  %v459 = vld [vmem:[%s4 + $0x1c] sm:$0xf]
  %v460 = vld [vmem:[%s4 + $0x20] sm:$0xf]
  %v461 = vld [vmem:[%s4 + $0x24] sm:$0xf]
  %v462 = vld [vmem:[%s4 + $0x28] sm:$0xf]
  %v463 = vld [vmem:[%s4 + $0x2c] sm:$0xf]
  %v464 = vld [vmem:[%s4 + $0x30] sm:$0xf]
  %v465 = vld [vmem:[%s4 + $0x34] sm:$0xf]
  %v466 = vld [vmem:[%s4 + $0x38] sm:$0xf]
  %v467 = vld [vmem:[%s4 + $0x3c] sm:$0xf]
  %v468 = vld [vmem:[%s5] sm:$0x1]
  %v470 = vlaneseq
  %v471 = vshrl.u32 %v470, 7
  %v472 = vsub.s32 0, %v471
  %v473 = vrot.slane %v468, %v472
  %v491 = vunpack.c.l.b16 %v452
  %v492 = vunpack.c.l.b16 %v453
  %v493 = vunpack.c.l.b16 %v454
  %v494 = vunpack.c.l.b16 %v455
  %v495 = vunpack.c.l.b16 %v456
  %v496 = vunpack.c.l.b16 %v457
  %v497 = vunpack.c.l.b16 %v458
  %v498 = vunpack.c.l.b16 %v459
  %v499 = vunpack.c.l.b16 %v460
  %v500 = vunpack.c.l.b16 %v461
  %v501 = vunpack.c.l.b16 %v462
  %v502 = vunpack.c.l.b16 %v463
  %v503 = vunpack.c.l.b16 %v464
  %v504 = vunpack.c.l.b16 %v465
  %v505 = vunpack.c.l.b16 %v466
  %v506 = vunpack.c.l.b16 %v467
  %v507 = vpack.c.b16 %v492, %v491
  %v508 = vpack.c.b16 %v494, %v493
  %v509 = vpack.c.b16 %v496, %v495
  %v510 = vpack.c.b16 %v498, %v497
  %v511 = vpack.c.b16 %v500, %v499
  %v512 = vpack.c.b16 %v502, %v501
  %v513 = vpack.c.b16 %v504, %v503
  %v514 = vpack.c.b16 %v506, %v505
  %523 = vmatprep.subr.bf16.mxu0 0
  %524 = vmatpush1.bf16.msra.mxu0 %v507
  %525 = vmatprep.subr.bf16.mxu0 0
  %526 = vmatpush1.bf16.msra.mxu0 %v508
  %527 = vmatprep.subr.bf16.mxu0 0
  %528 = vmatpush1.bf16.msra.mxu0 %v509
  %529 = vmatprep.subr.bf16.mxu0 0
  %530 = vmatpush1.bf16.msra.mxu0 %v510
  %531 = vmatprep.subr.bf16.mxu0 0
  %532 = vmatpush1.bf16.msra.mxu0 %v511
  %533 = vmatprep.subr.bf16.mxu0 0
  %534 = vmatpush1.bf16.msra.mxu0 %v512
  %535 = vmatprep.subr.bf16.mxu0 0
  %536 = vmatpush1.bf16.msra.mxu0 %v513
  %537 = vmatprep.subr.bf16.mxu0 0
  %538 = vmatpush1.bf16.msra.mxu0 %v514
  %539 = vmatprep.subr.bf16.mxu0 0
  %540 = vmatpush1.bf16.msra.mxu0 0
  %541 = vmatprep.subr.bf16.mxu0 0
  %542 = vmatpush1.bf16.msra.mxu0 0
  %543 = vmatprep.subr.bf16.mxu0 0
  %544 = vmatpush1.bf16.msra.mxu0 0
  %545 = vmatprep.subr.bf16.mxu0 0
  %546 = vmatpush1.bf16.msra.mxu0 0
  %547 = vmatprep.subr.bf16.mxu0 0
  %548 = vmatpush1.bf16.msra.mxu0 0
  %549 = vmatprep.subr.bf16.mxu0 0
  %550 = vmatpush1.bf16.msra.mxu0 0
  %551 = vmatprep.subr.bf16.mxu0 0
  %552 = vmatpush1.bf16.msra.mxu0 0
  %553 = vmatprep.subr.bf16.mxu0 0
  %554 = vmatpush1.bf16.msra.mxu0 0
  %555 = vmatprep.mubr.bf16.mxu0 0
  %556 = vmatmul.mubr.bf16.gmra.mrb[0].mxu0 %v57
  %v557 = vpop.f32.mrb[0].mxu0
  %v558 = vadd.f32 %v473, %v557
  %v559 = vpop.f32.mrb[0].mxu0
  %v560 = vpop.f32.mrb[0].mxu0
  %v561 = vadd.f32 %v473, %v560
  %v562 = vpop.f32.mrb[0].mxu0
  %563 = vmatprep.mubr.bf16.mxu0 0
  %564 = vmatmul.mubr.bf16.gmra.mrb[0].mxu0 %v58
  %v565 = vpop.f32.mrb[0].mxu0
  %v566 = vadd.f32 %v473, %v565
  %v567 = vpop.f32.mrb[0].mxu0
  %v568 = vpop.f32.mrb[0].mxu0
  %v569 = vadd.f32 %v473, %v568
  %v570 = vpop.f32.mrb[0].mxu0
  %571 = vmatprep.mubr.bf16.mxu0 0
  %572 = vmatmul.mubr.bf16.gmra.mrb[0].mxu0 %v59
  %v573 = vpop.f32.mrb[0].mxu0
  %v574 = vadd.f32 %v473, %v573
  %v575 = vpop.f32.mrb[0].mxu0
  %v576 = vpop.f32.mrb[0].mxu0
  %v577 = vadd.f32 %v473, %v576
  %v578 = vpop.f32.mrb[0].mxu0
  %579 = vmatprep.mubr.bf16.mxu0 0
  %580 = vmatmul.mubr.bf16.gmra.mrb[0].mxu0 %v60
  %v581 = vpop.f32.mrb[0].mxu0
  %v582 = vadd.f32 %v473, %v581
  %v583 = vpop.f32.mrb[0].mxu0
  %v584 = vpop.f32.mrb[0].mxu0
  %v585 = vadd.f32 %v473, %v584
  %v586 = vpop.f32.mrb[0].mxu0
  %587 = vmatprep.mubr.bf16.mxu0 0
  %588 = vmatmul.mubr.bf16.gmra.mrb[0].mxu0 %v61
  %v589 = vpop.f32.mrb[0].mxu0
  %v590 = vadd.f32 %v473, %v589
  %v591 = vpop.f32.mrb[0].mxu0
  %v592 = vpop.f32.mrb[0].mxu0
  %v593 = vadd.f32 %v473, %v592
  %v594 = vpop.f32.mrb[0].mxu0
  %595 = vmatprep.mubr.bf16.mxu0 0
  %596 = vmatmul.mubr.bf16.gmra.mrb[0].mxu0 %v62
  %v597 = vpop.f32.mrb[0].mxu0
  %v598 = vadd.f32 %v473, %v597
  %v599 = vpop.f32.mrb[0].mxu0
  %v600 = vpop.f32.mrb[0].mxu0
  %v601 = vadd.f32 %v473, %v600
  %v602 = vpop.f32.mrb[0].mxu0
  %603 = vmatprep.mubr.bf16.mxu0 0
  %604 = vmatmul.mubr.bf16.gmra.mrb[0].mxu0 %v63
  %v605 = vpop.f32.mrb[0].mxu0
  %v606 = vadd.f32 %v473, %v605
  %v607 = vpop.f32.mrb[0].mxu0
  %v608 = vpop.f32.mrb[0].mxu0
  %v609 = vadd.f32 %v473, %v608
  %v610 = vpop.f32.mrb[0].mxu0
  %611 = vmatprep.mubr.bf16.mxu0 0
  %612 = vmatmul.mubr.bf16.gmra.mrb[0].mxu0 %v64
  %v613 = vpop.f32.mrb[0].mxu0
  %v614 = vadd.f32 %v473, %v613
  %v615 = vpop.f32.mrb[0].mxu0
  %v616 = vpop.f32.mrb[0].mxu0
  %v617 = vadd.f32 %v473, %v616
  %v618 = vpop.f32.mrb[0].mxu0
  %619 = vmatprep.mubr.bf16.mxu0 0
  %620 = vmatmul.mubr.bf16.gmra.mrb[0].mxu0 %v65
  %v621 = vpop.f32.mrb[0].mxu0
  %v622 = vadd.f32 %v473, %v621
  %v623 = vpop.f32.mrb[0].mxu0
  %v624 = vpop.f32.mrb[0].mxu0
  %v625 = vadd.f32 %v473, %v624
  %v626 = vpop.f32.mrb[0].mxu0
  %627 = vmatprep.mubr.bf16.mxu0 0
  %628 = vmatmul.mubr.bf16.gmra.mrb[0].mxu0 %v66
  %v629 = vpop.f32.mrb[0].mxu0
  %v630 = vadd.f32 %v473, %v629
  %v631 = vpop.f32.mrb[0].mxu0
  %v632 = vpop.f32.mrb[0].mxu0
  %v633 = vadd.f32 %v473, %v632
  %v634 = vpop.f32.mrb[0].mxu0
  %635 = vmatprep.mubr.bf16.mxu0 0
  %636 = vmatmul.mubr.bf16.gmra.mrb[0].mxu0 %v67
  %v637 = vpop.f32.mrb[0].mxu0
  %v638 = vadd.f32 %v473, %v637
  %v639 = vpop.f32.mrb[0].mxu0
  %v640 = vpop.f32.mrb[0].mxu0
  %v641 = vadd.f32 %v473, %v640
  %v642 = vpop.f32.mrb[0].mxu0
  %643 = vmatprep.mubr.bf16.mxu0 0
  %644 = vmatmul.mubr.bf16.gmra.mrb[0].mxu0 %v68
  %v645 = vpop.f32.mrb[0].mxu0
  %v646 = vadd.f32 %v473, %v645
  %v647 = vpop.f32.mrb[0].mxu0
  %v648 = vpop.f32.mrb[0].mxu0
  %v649 = vadd.f32 %v473, %v648
  %v650 = vpop.f32.mrb[0].mxu0
  %651 = vmatprep.mubr.bf16.mxu0 0
  %652 = vmatmul.mubr.bf16.gmra.mrb[0].mxu0 %v69
  %v653 = vpop.f32.mrb[0].mxu0
  %v654 = vadd.f32 %v473, %v653
  %v655 = vpop.f32.mrb[0].mxu0
  %v656 = vpop.f32.mrb[0].mxu0
  %v657 = vpop.f32.mrb[0].mxu0
  %658 = vdwg.mxu0
  %v659 = vxor.u32 %v558, 2147483648
  %v660 = vxor.u32 %v561, 2147483648
  %v661 = vxor.u32 %v566, 2147483648
  %v662 = vxor.u32 %v569, 2147483648
  %v663 = vxor.u32 %v574, 2147483648
  %v664 = vxor.u32 %v577, 2147483648
  %v665 = vxor.u32 %v582, 2147483648
  %v666 = vxor.u32 %v585, 2147483648
  %v667 = vxor.u32 %v590, 2147483648
  %v668 = vxor.u32 %v593, 2147483648
  %v669 = vxor.u32 %v598, 2147483648
  %v670 = vxor.u32 %v601, 2147483648
  %v671 = vxor.u32 %v606, 2147483648
  %v672 = vxor.u32 %v609, 2147483648
  %v673 = vxor.u32 %v614, 2147483648
  %v674 = vxor.u32 %v617, 2147483648
  %v675 = vxor.u32 %v622, 2147483648
  %v676 = vxor.u32 %v625, 2147483648
  %v677 = vxor.u32 %v630, 2147483648
  %v678 = vxor.u32 %v633, 2147483648
  %v679 = vxor.u32 %v638, 2147483648
  %v680 = vxor.u32 %v641, 2147483648
  %v681 = vxor.u32 %v646, 2147483648
  %v682 = vxor.u32 %v649, 2147483648
  %v683 = vxor.u32 %v654, 2147483648
  %v684 = vmul.f32 %v659, 1.442695
  %v685 = vpow.pop %v684
  %v686 = vmul.f32 %v660, 1.442695
  %v687 = vpow.pop %v686
  %v688 = vmul.f32 %v661, 1.442695
  %v689 = vpow.pop %v688
  %v690 = vmul.f32 %v662, 1.442695
  %v691 = vpow.pop %v690
  %v692 = vmul.f32 %v663, 1.442695
  %v693 = vpow.pop %v692
  %v694 = vmul.f32 %v664, 1.442695
  %v695 = vpow.pop %v694
  %v696 = vmul.f32 %v665, 1.442695
  %v697 = vpow.pop %v696
  %v698 = vmul.f32 %v666, 1.442695
  %v699 = vpow.pop %v698
  %v700 = vmul.f32 %v667, 1.442695
  %v701 = vpow.pop %v700
  %v702 = vmul.f32 %v668, 1.442695
  %v703 = vpow.pop %v702
  %v704 = vmul.f32 %v669, 1.442695
  %v705 = vpow.pop %v704
  %v706 = vmul.f32 %v670, 1.442695
  %v707 = vpow.pop %v706
  %v708 = vmul.f32 %v671, 1.442695
  %v709 = vpow.pop %v708
  %v710 = vmul.f32 %v672, 1.442695
  %v711 = vpow.pop %v710
  %v712 = vmul.f32 %v673, 1.442695
  %v713 = vpow.pop %v712
  %v714 = vmul.f32 %v674, 1.442695
  %v715 = vpow.pop %v714
  %v716 = vmul.f32 %v675, 1.442695
  %v717 = vpow.pop %v716
  %v718 = vmul.f32 %v676, 1.442695
  %v719 = vpow.pop %v718
  %v720 = vmul.f32 %v677, 1.442695
  %v721 = vpow.pop %v720
  %v722 = vmul.f32 %v678, 1.442695
  %v723 = vpow.pop %v722
  %v724 = vmul.f32 %v679, 1.442695
  %v725 = vpow.pop %v724
  %v726 = vmul.f32 %v680, 1.442695
  %v727 = vpow.pop %v726
  %v728 = vmul.f32 %v681, 1.442695
  %v729 = vpow.pop %v728
  %v730 = vmul.f32 %v682, 1.442695
  %v731 = vpow.pop %v730
  %v732 = vmul.f32 %v683, 1.442695
  %v733 = vpow.pop %v732
  %v734 = vadd.f32 %v685, 1.0
  %v735 = vadd.f32 %v687, 1.0
  %v736 = vadd.f32 %v689, 1.0
  %v737 = vadd.f32 %v691, 1.0
  %v738 = vadd.f32 %v693, 1.0
  %v739 = vadd.f32 %v695, 1.0
  %v740 = vadd.f32 %v697, 1.0
  %v741 = vadd.f32 %v699, 1.0
  %v742 = vadd.f32 %v701, 1.0
  %v743 = vadd.f32 %v703, 1.0
  %v744 = vadd.f32 %v705, 1.0
  %v745 = vadd.f32 %v707, 1.0
  %v746 = vadd.f32 %v709, 1.0
  %v747 = vadd.f32 %v711, 1.0
  %v748 = vadd.f32 %v713, 1.0
  %v749 = vadd.f32 %v715, 1.0
  %v750 = vadd.f32 %v717, 1.0
  %v751 = vadd.f32 %v719, 1.0
  %v752 = vadd.f32 %v721, 1.0
  %v753 = vadd.f32 %v723, 1.0
  %v754 = vadd.f32 %v725, 1.0
  %v755 = vadd.f32 %v727, 1.0
  %v756 = vadd.f32 %v729, 1.0
  %v757 = vadd.f32 %v731, 1.0
  %v758 = vadd.f32 %v733, 1.0
  %v759 = vrcp.pop %v734
  %v760 = vmul.f32 1.0, %v759
  %v761 = vrcp.pop %v735
  %v762 = vmul.f32 1.0, %v761
  %v763 = vrcp.pop %v736
  %v764 = vmul.f32 1.0, %v763
  %v765 = vrcp.pop %v737
  %v766 = vmul.f32 1.0, %v765
  %v767 = vrcp.pop %v738
  %v768 = vmul.f32 1.0, %v767
  %v769 = vrcp.pop %v739
  %v770 = vmul.f32 1.0, %v769
  %v771 = vrcp.pop %v740
  %v772 = vmul.f32 1.0, %v771
  %v773 = vrcp.pop %v741
  %v774 = vmul.f32 1.0, %v773
  %v775 = vrcp.pop %v742
  %v776 = vmul.f32 1.0, %v775
  %v777 = vrcp.pop %v743
  %v778 = vmul.f32 1.0, %v777
  %v779 = vrcp.pop %v744
  %v780 = vmul.f32 1.0, %v779
  %v781 = vrcp.pop %v745
  %v782 = vmul.f32 1.0, %v781
  %v783 = vrcp.pop %v746
  %v784 = vmul.f32 1.0, %v783
  %v785 = vrcp.pop %v747
  %v786 = vmul.f32 1.0, %v785
  %v787 = vrcp.pop %v748
  %v788 = vmul.f32 1.0, %v787
  %v789 = vrcp.pop %v749
  %v790 = vmul.f32 1.0, %v789
  %v791 = vrcp.pop %v750
  %v792 = vmul.f32 1.0, %v791
  %v793 = vrcp.pop %v751
  %v794 = vmul.f32 1.0, %v793
  %v795 = vrcp.pop %v752
  %v796 = vmul.f32 1.0, %v795
  %v797 = vrcp.pop %v753
  %v798 = vmul.f32 1.0, %v797
  %v799 = vrcp.pop %v754
  %v800 = vmul.f32 1.0, %v799
  %v801 = vrcp.pop %v755
  %v802 = vmul.f32 1.0, %v801
  %v803 = vrcp.pop %v756
  %v804 = vmul.f32 1.0, %v803
  %v805 = vrcp.pop %v757
  %v806 = vmul.f32 1.0, %v805
  %v807 = vrcp.pop %v758
  %v808 = vmul.f32 1.0, %v807
  %v809 = vmul.f32 %v558, %v760
  %v810 = vmul.f32 %v561, %v762
  %v811 = vmul.f32 %v566, %v764
  %v812 = vmul.f32 %v569, %v766
  %v813 = vmul.f32 %v574, %v768
  %v814 = vmul.f32 %v577, %v770
  %v815 = vmul.f32 %v582, %v772
  %v816 = vmul.f32 %v585, %v774
  %v817 = vmul.f32 %v590, %v776
  %v818 = vmul.f32 %v593, %v778
  %v819 = vmul.f32 %v598, %v780
  %v820 = vmul.f32 %v601, %v782
  %v821 = vmul.f32 %v606, %v784
  %v822 = vmul.f32 %v609, %v786
  %v823 = vmul.f32 %v614, %v788
  %v824 = vmul.f32 %v617, %v790
  %v825 = vmul.f32 %v622, %v792
  %v826 = vmul.f32 %v625, %v794
  %v827 = vmul.f32 %v630, %v796
  %v828 = vmul.f32 %v633, %v798
  %v829 = vmul.f32 %v638, %v800
  %v830 = vmul.f32 %v641, %v802
  %v831 = vmul.f32 %v646, %v804
  %v832 = vmul.f32 %v649, %v806
  %v833 = vmul.f32 %v654, %v808
  %v834 = vld [vmem:[%s1] sm:$0xff]
  %v835 = vld [vmem:[%s1 + $0x8] sm:$0xff]
  %v836 = vld [vmem:[%s1 + $0x10] sm:$0xff]
  %v837 = vld [vmem:[%s1 + $0x18] sm:$0xff]
  %v838 = vld [vmem:[%s1 + $0x20] sm:$0xff]
  %v839 = vld [vmem:[%s1 + $0x28] sm:$0xff]
  %v840 = vld [vmem:[%s1 + $0x30] sm:$0xff]
  %v841 = vld [vmem:[%s1 + $0x38] sm:$0xff]
  %v842 = vld [vmem:[%s1 + $0x40] sm:$0xff]
  %v843 = vld [vmem:[%s1 + $0x48] sm:$0xff]
  %v844 = vld [vmem:[%s1 + $0x50] sm:$0xff]
  %v845 = vld [vmem:[%s1 + $0x58] sm:$0xff]
  %v846 = vld [vmem:[%s1 + $0x60] sm:$0xff]
  %v847 = vld [vmem:[%s1 + $0x68] sm:$0xff]
  %v848 = vld [vmem:[%s1 + $0x70] sm:$0xff]
  %v849 = vld [vmem:[%s1 + $0x78] sm:$0xff]
  %v850 = vld [vmem:[%s1 + $0x80] sm:$0xff]
  %v851 = vld [vmem:[%s1 + $0x88] sm:$0xff]
  %v852 = vld [vmem:[%s1 + $0x90] sm:$0xff]
  %v853 = vld [vmem:[%s1 + $0x98] sm:$0xff]
  %v854 = vld [vmem:[%s1 + $0xa0] sm:$0xff]
  %v855 = vld [vmem:[%s1 + $0xa8] sm:$0xff]
  %v856 = vld [vmem:[%s1 + $0xb0] sm:$0xff]
  %v857 = vld [vmem:[%s1 + $0xb8] sm:$0xff]
  %v858 = vld [vmem:[%s1 + $0xc0] sm:$0xff]
  %v859 = vpack.c.bf16 %v835, %v834
  %v860 = vpack.c.bf16 %v837, %v836
  %v861 = vpack.c.bf16 %v839, %v838
  %v862 = vpack.c.bf16 %v841, %v840
  %v863 = vpack.c.bf16 %v843, %v842
  %v864 = vpack.c.bf16 %v845, %v844
  %v865 = vpack.c.bf16 %v847, %v846
  %v866 = vpack.c.bf16 %v849, %v848
  %v867 = vpack.c.bf16 %v851, %v850
  %v868 = vpack.c.bf16 %v853, %v852
  %v869 = vpack.c.bf16 %v855, %v854
  %v870 = vpack.c.bf16 %v857, %v856
  %v871 = vpack.c.bf16 %v858, %v858
  %v872 = vld [vmem:[%s6] sm:$0xf]
  %vm873 = vcmask 64512
  %v875 = vsel %vm873, %v859, 0
  %v878 = vsel %vm873, %v860, 0
  %v881 = vsel %vm873, %v861, 0
  %v884 = vsel %vm873, %v862, 0
  %v887 = vsel %vm873, %v863, 0
  %v890 = vsel %vm873, %v864, 0
  %v893 = vsel %vm873, %v865, 0
  %v896 = vsel %vm873, %v866, 0
  %v899 = vsel %vm873, %v867, 0
  %v902 = vsel %vm873, %v868, 0
  %v905 = vsel %vm873, %v869, 0
  %v908 = vsel %vm873, %v870, 0
  %v911 = vsel %vm873, %v871, 0
  %vm913 = vcmask 1043456
  %v915 = vsel %vm913, %v872, 0
  %917 = vmatprep.subr.bf16.mxu0 0
  %918 = vmatpush1.bf16.msra.mxu0 %v915
  %919 = vmatprep.subr.bf16.mxu0 0
  %920 = vmatpush1.bf16.msra.mxu0 0
  %921 = vmatprep.subr.bf16.mxu0 0
  %922 = vmatpush1.bf16.msra.mxu0 0
  %923 = vmatprep.subr.bf16.mxu0 0
  %924 = vmatpush1.bf16.msra.mxu0 0
  %925 = vmatprep.subr.bf16.mxu0 0
  %926 = vmatpush1.bf16.msra.mxu0 0
  %927 = vmatprep.subr.bf16.mxu0 0
  %928 = vmatpush1.bf16.msra.mxu0 0
  %929 = vmatprep.subr.bf16.mxu0 0
  %930 = vmatpush1.bf16.msra.mxu0 0
  %931 = vmatprep.subr.bf16.mxu0 0
  %932 = vmatpush1.bf16.msra.mxu0 0
  %933 = vmatprep.subr.bf16.mxu0 0
  %934 = vmatpush1.bf16.msra.mxu0 0
  %935 = vmatprep.subr.bf16.mxu0 0
  %936 = vmatpush1.bf16.msra.mxu0 0
  %937 = vmatprep.subr.bf16.mxu0 0
  %938 = vmatpush1.bf16.msra.mxu0 0
  %939 = vmatprep.subr.bf16.mxu0 0
  %940 = vmatpush1.bf16.msra.mxu0 0
  %941 = vmatprep.subr.bf16.mxu0 0
  %942 = vmatpush1.bf16.msra.mxu0 0
  %943 = vmatprep.subr.bf16.mxu0 0
  %944 = vmatpush1.bf16.msra.mxu0 0
  %945 = vmatprep.subr.bf16.mxu0 0
  %946 = vmatpush1.bf16.msra.mxu0 0
  %947 = vmatprep.subr.bf16.mxu0 0
  %948 = vmatpush1.bf16.msra.mxu0 0
  %949 = vmatprep.mubr.bf16.mxu0 0
  %950 = vmatmul.mubr.bf16.gmra.mrb[0].mxu0 %v875
  %v951 = vpop.f32.mrb[0].mxu0
  %v952 = vadd.f32 0.0, %v951
  %v953 = vpop.f32.mrb[0].mxu0
  %v954 = vpop.f32.mrb[0].mxu0
  %v955 = vadd.f32 0.0, %v954
  %v956 = vpop.f32.mrb[0].mxu0
  %957 = vmatprep.mubr.bf16.mxu0 0
  %958 = vmatmul.mubr.bf16.gmra.mrb[0].mxu0 %v878
  %v959 = vpop.f32.mrb[0].mxu0
  %v960 = vadd.f32 0.0, %v959
  %v961 = vpop.f32.mrb[0].mxu0
  %v962 = vpop.f32.mrb[0].mxu0
  %v963 = vadd.f32 0.0, %v962
  %v964 = vpop.f32.mrb[0].mxu0
  %965 = vmatprep.mubr.bf16.mxu0 0
  %966 = vmatmul.mubr.bf16.gmra.mrb[0].mxu0 %v881
  %v967 = vpop.f32.mrb[0].mxu0
  %v968 = vadd.f32 0.0, %v967
  %v969 = vpop.f32.mrb[0].mxu0
  %v970 = vpop.f32.mrb[0].mxu0
  %v971 = vadd.f32 0.0, %v970
  %v972 = vpop.f32.mrb[0].mxu0
  %973 = vmatprep.mubr.bf16.mxu0 0
  %974 = vmatmul.mubr.bf16.gmra.mrb[0].mxu0 %v884
  %v975 = vpop.f32.mrb[0].mxu0
  %v976 = vadd.f32 0.0, %v975
  %v977 = vpop.f32.mrb[0].mxu0
  %v978 = vpop.f32.mrb[0].mxu0
  %v979 = vadd.f32 0.0, %v978
  %v980 = vpop.f32.mrb[0].mxu0
  %981 = vmatprep.mubr.bf16.mxu0 0
  %982 = vmatmul.mubr.bf16.gmra.mrb[0].mxu0 %v887
  %v983 = vpop.f32.mrb[0].mxu0
  %v984 = vadd.f32 0.0, %v983
  %v985 = vpop.f32.mrb[0].mxu0
  %v986 = vpop.f32.mrb[0].mxu0
  %v987 = vadd.f32 0.0, %v986
  %v988 = vpop.f32.mrb[0].mxu0
  %989 = vmatprep.mubr.bf16.mxu0 0
  %990 = vmatmul.mubr.bf16.gmra.mrb[0].mxu0 %v890
  %v991 = vpop.f32.mrb[0].mxu0
  %v992 = vadd.f32 0.0, %v991
  %v993 = vpop.f32.mrb[0].mxu0
  %v994 = vpop.f32.mrb[0].mxu0
  %v995 = vadd.f32 0.0, %v994
  %v996 = vpop.f32.mrb[0].mxu0
  %997 = vmatprep.mubr.bf16.mxu0 0
  %998 = vmatmul.mubr.bf16.gmra.mrb[0].mxu0 %v893
  %v999 = vpop.f32.mrb[0].mxu0
  %v1000 = vadd.f32 0.0, %v999
  %v1001 = vpop.f32.mrb[0].mxu0
  %v1002 = vpop.f32.mrb[0].mxu0
  %v1003 = vadd.f32 0.0, %v1002
  %v1004 = vpop.f32.mrb[0].mxu0
  %1005 = vmatprep.mubr.bf16.mxu0 0
  %1006 = vmatmul.mubr.bf16.gmra.mrb[0].mxu0 %v896
  %v1007 = vpop.f32.mrb[0].mxu0
  %v1008 = vadd.f32 0.0, %v1007
  %v1009 = vpop.f32.mrb[0].mxu0
  %v1010 = vpop.f32.mrb[0].mxu0
  %v1011 = vadd.f32 0.0, %v1010
  %v1012 = vpop.f32.mrb[0].mxu0
  %1013 = vmatprep.mubr.bf16.mxu0 0
  %1014 = vmatmul.mubr.bf16.gmra.mrb[0].mxu0 %v899
  %v1015 = vpop.f32.mrb[0].mxu0
  %v1016 = vadd.f32 0.0, %v1015
  %v1017 = vpop.f32.mrb[0].mxu0
  %v1018 = vpop.f32.mrb[0].mxu0
  %v1019 = vadd.f32 0.0, %v1018
  %v1020 = vpop.f32.mrb[0].mxu0
  %1021 = vmatprep.mubr.bf16.mxu0 0
  %1022 = vmatmul.mubr.bf16.gmra.mrb[0].mxu0 %v902
  %v1023 = vpop.f32.mrb[0].mxu0
  %v1024 = vadd.f32 0.0, %v1023
  %v1025 = vpop.f32.mrb[0].mxu0
  %v1026 = vpop.f32.mrb[0].mxu0
  %v1027 = vadd.f32 0.0, %v1026
  %v1028 = vpop.f32.mrb[0].mxu0
  %1029 = vmatprep.mubr.bf16.mxu0 0
  %1030 = vmatmul.mubr.bf16.gmra.mrb[0].mxu0 %v905
  %v1031 = vpop.f32.mrb[0].mxu0
  %v1032 = vadd.f32 0.0, %v1031
  %v1033 = vpop.f32.mrb[0].mxu0
  %v1034 = vpop.f32.mrb[0].mxu0
  %v1035 = vadd.f32 0.0, %v1034
  %v1036 = vpop.f32.mrb[0].mxu0
  %1037 = vmatprep.mubr.bf16.mxu0 0
  %1038 = vmatmul.mubr.bf16.gmra.mrb[0].mxu0 %v908
  %v1039 = vpop.f32.mrb[0].mxu0
  %v1040 = vadd.f32 0.0, %v1039
  %v1041 = vpop.f32.mrb[0].mxu0
  %v1042 = vpop.f32.mrb[0].mxu0
  %v1043 = vadd.f32 0.0, %v1042
  %v1044 = vpop.f32.mrb[0].mxu0
  %1045 = vmatprep.mubr.bf16.mxu0 0
  %1046 = vmatmul.mubr.bf16.gmra.mrb[0].mxu0 %v911
  %v1047 = vpop.f32.mrb[0].mxu0
  %v1048 = vadd.f32 0.0, %v1047
  %v1049 = vpop.f32.mrb[0].mxu0
  %v1050 = vpop.f32.mrb[0].mxu0
  %v1051 = vpop.f32.mrb[0].mxu0
  %1052 = vdwg.mxu0
  %1053 = vst [vmem:[%s8] sm:$0xff] %v427
  %1054 = vst [vmem:[%s8 + $0x8] sm:$0xff] %v428
  %1055 = vst [vmem:[%s8 + $0x10] sm:$0xff] %v429
  %1056 = vst [vmem:[%s8 + $0x18] sm:$0xff] %v430
  %1057 = vst [vmem:[%s8 + $0x20] sm:$0xff] %v431
  %1058 = vst [vmem:[%s8 + $0x28] sm:$0xff] %v432
  %1059 = vst [vmem:[%s8 + $0x30] sm:$0xff] %v433
  %1060 = vst [vmem:[%s8 + $0x38] sm:$0xff] %v434
  %1061 = vst [vmem:[%s8 + $0x40] sm:$0xff] %v435
  %1062 = vst [vmem:[%s8 + $0x48] sm:$0xff] %v436
  %1063 = vst [vmem:[%s8 + $0x50] sm:$0xff] %v437
  %1064 = vst [vmem:[%s8 + $0x58] sm:$0xff] %v438
  %1065 = vst [vmem:[%s8 + $0x60] sm:$0xff] %v439
  %1066 = vst [vmem:[%s8 + $0x68] sm:$0xff] %v440
  %1067 = vst [vmem:[%s8 + $0x70] sm:$0xff] %v441
  %1068 = vst [vmem:[%s8 + $0x78] sm:$0xff] %v442
  %1069 = vst [vmem:[%s8 + $0x80] sm:$0xff] %v443
  %1070 = vst [vmem:[%s8 + $0x88] sm:$0xff] %v444
  %1071 = vst [vmem:[%s8 + $0x90] sm:$0xff] %v445
  %1072 = vst [vmem:[%s8 + $0x98] sm:$0xff] %v446
  %1073 = vst [vmem:[%s8 + $0xa0] sm:$0xff] %v447
  %1074 = vst [vmem:[%s8 + $0xa8] sm:$0xff] %v448
  %1075 = vst [vmem:[%s8 + $0xb0] sm:$0xff] %v449
  %1076 = vst [vmem:[%s8 + $0xb8] sm:$0xff] %v450
  %1077 = vst [vmem:[%s8 + $0xc0] sm:$0xff] %v451
  %v1078 = vmul.f32 %v809, %v952
  %v1079 = vmul.f32 %v810, %v955
  %v1080 = vmul.f32 %v811, %v960
  %v1081 = vmul.f32 %v812, %v963
  %v1082 = vmul.f32 %v813, %v968
  %v1083 = vmul.f32 %v814, %v971
  %v1084 = vmul.f32 %v815, %v976
  %v1085 = vmul.f32 %v816, %v979
  %v1086 = vmul.f32 %v817, %v984
  %v1087 = vmul.f32 %v818, %v987
  %v1088 = vmul.f32 %v819, %v992
  %v1089 = vmul.f32 %v820, %v995
  %v1090 = vmul.f32 %v821, %v1000
  %v1091 = vmul.f32 %v822, %v1003
  %v1092 = vmul.f32 %v823, %v1008
  %v1093 = vmul.f32 %v824, %v1011
  %v1094 = vmul.f32 %v825, %v1016
  %v1095 = vmul.f32 %v826, %v1019
  %v1096 = vmul.f32 %v827, %v1024
  %v1097 = vmul.f32 %v828, %v1027
  %v1098 = vmul.f32 %v829, %v1032
  %v1099 = vmul.f32 %v830, %v1035
  %v1100 = vmul.f32 %v831, %v1040
  %v1101 = vmul.f32 %v832, %v1043
  %v1102 = vmul.f32 %v833, %v1048
  %v1103 = vpack.c.bf16 %v1079, %v1078
  %v1104 = vpack.c.bf16 %v1081, %v1080
  %v1105 = vpack.c.bf16 %v1083, %v1082
  %v1106 = vpack.c.bf16 %v1085, %v1084
  %v1107 = vpack.c.bf16 %v1087, %v1086
  %v1108 = vpack.c.bf16 %v1089, %v1088
  %v1109 = vpack.c.bf16 %v1091, %v1090
  %v1110 = vpack.c.bf16 %v1093, %v1092
  %v1111 = vpack.c.bf16 %v1095, %v1094
  %v1112 = vpack.c.bf16 %v1097, %v1096
  %v1113 = vpack.c.bf16 %v1099, %v1098
  %v1114 = vpack.c.bf16 %v1101, %v1100
  %v1115 = vpack.c.bf16 %v1102, %v1102
  %v1116 = vld [vmem:[%s7] sm:$0xf]
  %v1117 = vld [vmem:[%s7 + $0x4] sm:$0xf]
  %v1118 = vld [vmem:[%s7 + $0x8] sm:$0xf]
  %v1119 = vld [vmem:[%s7 + $0xc] sm:$0xf]
  %v1120 = vld [vmem:[%s7 + $0x10] sm:$0xf]
  %v1121 = vld [vmem:[%s7 + $0x14] sm:$0xf]
  %v1122 = vld [vmem:[%s7 + $0x18] sm:$0xf]
  %v1123 = vld [vmem:[%s7 + $0x1c] sm:$0xf]
  %v1124 = vld [vmem:[%s7 + $0x20] sm:$0xf]
  %v1125 = vld [vmem:[%s7 + $0x24] sm:$0xf]
  %v1126 = vld [vmem:[%s7 + $0x28] sm:$0xf]
  %v1127 = vld [vmem:[%s7 + $0x2c] sm:$0xf]
  %v1128 = vld [vmem:[%s7 + $0x30] sm:$0xf]
  %v1129 = vld [vmem:[%s7 + $0x34] sm:$0xf]
  %v1130 = vld [vmem:[%s7 + $0x38] sm:$0xf]
  %v1131 = vld [vmem:[%s7 + $0x3c] sm:$0xf]
  %v1148 = vunpack.c.l.b16 %v1116
  %v1149 = vunpack.c.l.b16 %v1117
  %v1150 = vunpack.c.l.b16 %v1118
  %v1151 = vunpack.c.l.b16 %v1119
  %v1152 = vunpack.c.l.b16 %v1120
  %v1153 = vunpack.c.l.b16 %v1121
  %v1154 = vunpack.c.l.b16 %v1122
  %v1155 = vunpack.c.l.b16 %v1123
  %v1156 = vunpack.c.l.b16 %v1124
  %v1157 = vunpack.c.l.b16 %v1125
  %v1158 = vunpack.c.l.b16 %v1126
  %v1159 = vunpack.c.l.b16 %v1127
  %v1160 = vunpack.c.l.b16 %v1128
  %v1161 = vunpack.c.l.b16 %v1129
  %v1162 = vunpack.c.l.b16 %v1130
  %v1163 = vunpack.c.l.b16 %v1131
  %v1164 = vpack.c.b16 %v1149, %v1148
  %v1165 = vpack.c.b16 %v1151, %v1150
  %v1166 = vpack.c.b16 %v1153, %v1152
  %v1167 = vpack.c.b16 %v1155, %v1154
  %v1168 = vpack.c.b16 %v1157, %v1156
  %v1169 = vpack.c.b16 %v1159, %v1158
  %v1170 = vpack.c.b16 %v1161, %v1160
  %v1171 = vpack.c.b16 %v1163, %v1162
  %1180 = vmatprep.subr.bf16.mxu0 0
  %1181 = vmatpush1.bf16.msra.mxu0 %v1164
  %1182 = vmatprep.subr.bf16.mxu0 0
  %1183 = vmatpush1.bf16.msra.mxu0 %v1165
  %1184 = vmatprep.subr.bf16.mxu0 0
  %1185 = vmatpush1.bf16.msra.mxu0 %v1166
  %1186 = vmatprep.subr.bf16.mxu0 0
  %1187 = vmatpush1.bf16.msra.mxu0 %v1167
  %1188 = vmatprep.subr.bf16.mxu0 0
  %1189 = vmatpush1.bf16.msra.mxu0 %v1168
  %1190 = vmatprep.subr.bf16.mxu0 0
  %1191 = vmatpush1.bf16.msra.mxu0 %v1169
  %1192 = vmatprep.subr.bf16.mxu0 0
  %1193 = vmatpush1.bf16.msra.mxu0 %v1170
  %1194 = vmatprep.subr.bf16.mxu0 0
  %1195 = vmatpush1.bf16.msra.mxu0 %v1171
  %1196 = vmatprep.subr.bf16.mxu0 0
  %1197 = vmatpush1.bf16.msra.mxu0 0
  %1198 = vmatprep.subr.bf16.mxu0 0
  %1199 = vmatpush1.bf16.msra.mxu0 0
  %1200 = vmatprep.subr.bf16.mxu0 0
  %1201 = vmatpush1.bf16.msra.mxu0 0
  %1202 = vmatprep.subr.bf16.mxu0 0
  %1203 = vmatpush1.bf16.msra.mxu0 0
  %1204 = vmatprep.subr.bf16.mxu0 0
  %1205 = vmatpush1.bf16.msra.mxu0 0
  %1206 = vmatprep.subr.bf16.mxu0 0
  %1207 = vmatpush1.bf16.msra.mxu0 0
  %1208 = vmatprep.subr.bf16.mxu0 0
  %1209 = vmatpush1.bf16.msra.mxu0 0
  %1210 = vmatprep.subr.bf16.mxu0 0
  %1211 = vmatpush1.bf16.msra.mxu0 0
  %1212 = vmatprep.mubr.bf16.mxu0 0
  %1213 = vmatmul.mubr.bf16.gmra.mrb[0].mxu0 %v1103
  %v1214 = vpop.f32.mrb[0].mxu0
  %v1215 = vadd.f32 0.0, %v1214
  %v1216 = vpop.f32.mrb[0].mxu0
  %v1217 = vpop.f32.mrb[0].mxu0
  %v1218 = vadd.f32 0.0, %v1217
  %v1219 = vpop.f32.mrb[0].mxu0
  %1220 = vmatprep.mubr.bf16.mxu0 0
  %1221 = vmatmul.mubr.bf16.gmra.mrb[0].mxu0 %v1104
  %v1222 = vpop.f32.mrb[0].mxu0
  %v1223 = vadd.f32 0.0, %v1222
  %v1224 = vpop.f32.mrb[0].mxu0
  %v1225 = vpop.f32.mrb[0].mxu0
  %v1226 = vadd.f32 0.0, %v1225
  %v1227 = vpop.f32.mrb[0].mxu0
  %1228 = vmatprep.mubr.bf16.mxu0 0
  %1229 = vmatmul.mubr.bf16.gmra.mrb[0].mxu0 %v1105
  %v1230 = vpop.f32.mrb[0].mxu0
  %v1231 = vadd.f32 0.0, %v1230
  %v1232 = vpop.f32.mrb[0].mxu0
  %v1233 = vpop.f32.mrb[0].mxu0
  %v1234 = vadd.f32 0.0, %v1233
  %v1235 = vpop.f32.mrb[0].mxu0
  %1236 = vmatprep.mubr.bf16.mxu0 0
  %1237 = vmatmul.mubr.bf16.gmra.mrb[0].mxu0 %v1106
  %v1238 = vpop.f32.mrb[0].mxu0
  %v1239 = vadd.f32 0.0, %v1238
  %v1240 = vpop.f32.mrb[0].mxu0
  %v1241 = vpop.f32.mrb[0].mxu0
  %v1242 = vadd.f32 0.0, %v1241
  %v1243 = vpop.f32.mrb[0].mxu0
  %1244 = vmatprep.mubr.bf16.mxu0 0
  %1245 = vmatmul.mubr.bf16.gmra.mrb[0].mxu0 %v1107
  %v1246 = vpop.f32.mrb[0].mxu0
  %v1247 = vadd.f32 0.0, %v1246
  %v1248 = vpop.f32.mrb[0].mxu0
  %v1249 = vpop.f32.mrb[0].mxu0
  %v1250 = vadd.f32 0.0, %v1249
  %v1251 = vpop.f32.mrb[0].mxu0
  %1252 = vmatprep.mubr.bf16.mxu0 0
  %1253 = vmatmul.mubr.bf16.gmra.mrb[0].mxu0 %v1108
  %v1254 = vpop.f32.mrb[0].mxu0
  %v1255 = vadd.f32 0.0, %v1254
  %v1256 = vpop.f32.mrb[0].mxu0
  %v1257 = vpop.f32.mrb[0].mxu0
  %v1258 = vadd.f32 0.0, %v1257
  %v1259 = vpop.f32.mrb[0].mxu0
  %1260 = vmatprep.mubr.bf16.mxu0 0
  %1261 = vmatmul.mubr.bf16.gmra.mrb[0].mxu0 %v1109
  %v1262 = vpop.f32.mrb[0].mxu0
  %v1263 = vadd.f32 0.0, %v1262
  %v1264 = vpop.f32.mrb[0].mxu0
  %v1265 = vpop.f32.mrb[0].mxu0
  %v1266 = vadd.f32 0.0, %v1265
  %v1267 = vpop.f32.mrb[0].mxu0
  %1268 = vmatprep.mubr.bf16.mxu0 0
  %1269 = vmatmul.mubr.bf16.gmra.mrb[0].mxu0 %v1110
  %v1270 = vpop.f32.mrb[0].mxu0
  %v1271 = vadd.f32 0.0, %v1270
  %v1272 = vpop.f32.mrb[0].mxu0
  %v1273 = vpop.f32.mrb[0].mxu0
  %v1274 = vadd.f32 0.0, %v1273
  %v1275 = vpop.f32.mrb[0].mxu0
  %1276 = vmatprep.mubr.bf16.mxu0 0
  %1277 = vmatmul.mubr.bf16.gmra.mrb[0].mxu0 %v1111
  %v1278 = vpop.f32.mrb[0].mxu0
  %v1279 = vadd.f32 0.0, %v1278
  %v1280 = vpop.f32.mrb[0].mxu0
  %v1281 = vpop.f32.mrb[0].mxu0
  %v1282 = vadd.f32 0.0, %v1281
  %v1283 = vpop.f32.mrb[0].mxu0
  %1284 = vmatprep.mubr.bf16.mxu0 0
  %1285 = vmatmul.mubr.bf16.gmra.mrb[0].mxu0 %v1112
  %v1286 = vpop.f32.mrb[0].mxu0
  %v1287 = vadd.f32 0.0, %v1286
  %v1288 = vpop.f32.mrb[0].mxu0
  %v1289 = vpop.f32.mrb[0].mxu0
  %v1290 = vadd.f32 0.0, %v1289
  %v1291 = vpop.f32.mrb[0].mxu0
  %1292 = vmatprep.mubr.bf16.mxu0 0
  %1293 = vmatmul.mubr.bf16.gmra.mrb[0].mxu0 %v1113
  %v1294 = vpop.f32.mrb[0].mxu0
  %v1295 = vadd.f32 0.0, %v1294
  %v1296 = vpop.f32.mrb[0].mxu0
  %v1297 = vpop.f32.mrb[0].mxu0
  %v1298 = vadd.f32 0.0, %v1297
  %v1299 = vpop.f32.mrb[0].mxu0
  %1300 = vmatprep.mubr.bf16.mxu0 0
  %1301 = vmatmul.mubr.bf16.gmra.mrb[0].mxu0 %v1114
  %v1302 = vpop.f32.mrb[0].mxu0
  %v1303 = vadd.f32 0.0, %v1302
  %v1304 = vpop.f32.mrb[0].mxu0
  %v1305 = vpop.f32.mrb[0].mxu0
  %v1306 = vadd.f32 0.0, %v1305
  %v1307 = vpop.f32.mrb[0].mxu0
  %1308 = vmatprep.mubr.bf16.mxu0 0
  %1309 = vmatmul.mubr.bf16.gmra.mrb[0].mxu0 %v1115
  %v1310 = vpop.f32.mrb[0].mxu0
  %v1311 = vadd.f32 0.0, %v1310
  %v1312 = vpop.f32.mrb[0].mxu0
  %v1313 = vpop.f32.mrb[0].mxu0
  %v1314 = vpop.f32.mrb[0].mxu0
  %1315 = vdwg.mxu0
  %v1316 = vxor.u32 %v1215, 2147483648
  %v1317 = vxor.u32 %v1218, 2147483648
  %v1318 = vxor.u32 %v1223, 2147483648
  %v1319 = vxor.u32 %v1226, 2147483648
  %v1320 = vxor.u32 %v1231, 2147483648
  %v1321 = vxor.u32 %v1234, 2147483648
  %v1322 = vxor.u32 %v1239, 2147483648
  %v1323 = vxor.u32 %v1242, 2147483648
  %v1324 = vxor.u32 %v1247, 2147483648
  %v1325 = vxor.u32 %v1250, 2147483648
  %v1326 = vxor.u32 %v1255, 2147483648
  %v1327 = vxor.u32 %v1258, 2147483648
  %v1328 = vxor.u32 %v1263, 2147483648
  %v1329 = vxor.u32 %v1266, 2147483648
  %v1330 = vxor.u32 %v1271, 2147483648
  %v1331 = vxor.u32 %v1274, 2147483648
  %v1332 = vxor.u32 %v1279, 2147483648
  %v1333 = vxor.u32 %v1282, 2147483648
  %v1334 = vxor.u32 %v1287, 2147483648
  %v1335 = vxor.u32 %v1290, 2147483648
  %v1336 = vxor.u32 %v1295, 2147483648
  %v1337 = vxor.u32 %v1298, 2147483648
  %v1338 = vxor.u32 %v1303, 2147483648
  %v1339 = vxor.u32 %v1306, 2147483648
  %v1340 = vxor.u32 %v1311, 2147483648
  %v1341 = vmul.f32 %v1316, 1.442695
  %v1342 = vpow.pop %v1341
  %v1343 = vmul.f32 %v1317, 1.442695
  %v1344 = vpow.pop %v1343
  %v1345 = vmul.f32 %v1318, 1.442695
  %v1346 = vpow.pop %v1345
  %v1347 = vmul.f32 %v1319, 1.442695
  %v1348 = vpow.pop %v1347
  %v1349 = vmul.f32 %v1320, 1.442695
  %v1350 = vpow.pop %v1349
  %v1351 = vmul.f32 %v1321, 1.442695
  %v1352 = vpow.pop %v1351
  %v1353 = vmul.f32 %v1322, 1.442695
  %v1354 = vpow.pop %v1353
  %v1355 = vmul.f32 %v1323, 1.442695
  %v1356 = vpow.pop %v1355
  %v1357 = vmul.f32 %v1324, 1.442695
  %v1358 = vpow.pop %v1357
  %v1359 = vmul.f32 %v1325, 1.442695
  %v1360 = vpow.pop %v1359
  %v1361 = vmul.f32 %v1326, 1.442695
  %v1362 = vpow.pop %v1361
  %v1363 = vmul.f32 %v1327, 1.442695
  %v1364 = vpow.pop %v1363
  %v1365 = vmul.f32 %v1328, 1.442695
  %v1366 = vpow.pop %v1365
  %v1367 = vmul.f32 %v1329, 1.442695
  %v1368 = vpow.pop %v1367
  %v1369 = vmul.f32 %v1330, 1.442695
  %v1370 = vpow.pop %v1369
  %v1371 = vmul.f32 %v1331, 1.442695
  %v1372 = vpow.pop %v1371
  %v1373 = vmul.f32 %v1332, 1.442695
  %v1374 = vpow.pop %v1373
  %v1375 = vmul.f32 %v1333, 1.442695
  %v1376 = vpow.pop %v1375
  %v1377 = vmul.f32 %v1334, 1.442695
  %v1378 = vpow.pop %v1377
  %v1379 = vmul.f32 %v1335, 1.442695
  %v1380 = vpow.pop %v1379
  %v1381 = vmul.f32 %v1336, 1.442695
  %v1382 = vpow.pop %v1381
  %v1383 = vmul.f32 %v1337, 1.442695
  %v1384 = vpow.pop %v1383
  %v1385 = vmul.f32 %v1338, 1.442695
  %v1386 = vpow.pop %v1385
  %v1387 = vmul.f32 %v1339, 1.442695
  %v1388 = vpow.pop %v1387
  %v1389 = vmul.f32 %v1340, 1.442695
  %v1390 = vpow.pop %v1389
  %v1391 = vadd.f32 %v1342, 1.0
  %v1392 = vadd.f32 %v1344, 1.0
  %v1393 = vadd.f32 %v1346, 1.0
  %v1394 = vadd.f32 %v1348, 1.0
  %v1395 = vadd.f32 %v1350, 1.0
  %v1396 = vadd.f32 %v1352, 1.0
  %v1397 = vadd.f32 %v1354, 1.0
  %v1398 = vadd.f32 %v1356, 1.0
  %v1399 = vadd.f32 %v1358, 1.0
  %v1400 = vadd.f32 %v1360, 1.0
  %v1401 = vadd.f32 %v1362, 1.0
  %v1402 = vadd.f32 %v1364, 1.0
  %v1403 = vadd.f32 %v1366, 1.0
  %v1404 = vadd.f32 %v1368, 1.0
  %v1405 = vadd.f32 %v1370, 1.0
  %v1406 = vadd.f32 %v1372, 1.0
  %v1407 = vadd.f32 %v1374, 1.0
  %v1408 = vadd.f32 %v1376, 1.0
  %v1409 = vadd.f32 %v1378, 1.0
  %v1410 = vadd.f32 %v1380, 1.0
  %v1411 = vadd.f32 %v1382, 1.0
  %v1412 = vadd.f32 %v1384, 1.0
  %v1413 = vadd.f32 %v1386, 1.0
  %v1414 = vadd.f32 %v1388, 1.0
  %v1415 = vadd.f32 %v1390, 1.0
  %v1416 = vrcp.pop %v1391
  %v1417 = vmul.f32 1.0, %v1416
  %v1418 = vrcp.pop %v1392
  %v1419 = vmul.f32 1.0, %v1418
  %v1420 = vrcp.pop %v1393
  %v1421 = vmul.f32 1.0, %v1420
  %v1422 = vrcp.pop %v1394
  %v1423 = vmul.f32 1.0, %v1422
  %v1424 = vrcp.pop %v1395
  %v1425 = vmul.f32 1.0, %v1424
  %v1426 = vrcp.pop %v1396
  %v1427 = vmul.f32 1.0, %v1426
  %v1428 = vrcp.pop %v1397
  %v1429 = vmul.f32 1.0, %v1428
  %v1430 = vrcp.pop %v1398
  %v1431 = vmul.f32 1.0, %v1430
  %v1432 = vrcp.pop %v1399
  %v1433 = vmul.f32 1.0, %v1432
  %v1434 = vrcp.pop %v1400
  %v1435 = vmul.f32 1.0, %v1434
  %v1436 = vrcp.pop %v1401
  %v1437 = vmul.f32 1.0, %v1436
  %v1438 = vrcp.pop %v1402
  %v1439 = vmul.f32 1.0, %v1438
  %v1440 = vrcp.pop %v1403
  %v1441 = vmul.f32 1.0, %v1440
  %v1442 = vrcp.pop %v1404
  %v1443 = vmul.f32 1.0, %v1442
  %v1444 = vrcp.pop %v1405
  %v1445 = vmul.f32 1.0, %v1444
  %v1446 = vrcp.pop %v1406
  %v1447 = vmul.f32 1.0, %v1446
  %v1448 = vrcp.pop %v1407
  %v1449 = vmul.f32 1.0, %v1448
  %v1450 = vrcp.pop %v1408
  %v1451 = vmul.f32 1.0, %v1450
  %v1452 = vrcp.pop %v1409
  %v1453 = vmul.f32 1.0, %v1452
  %v1454 = vrcp.pop %v1410
  %v1455 = vmul.f32 1.0, %v1454
  %v1456 = vrcp.pop %v1411
  %v1457 = vmul.f32 1.0, %v1456
  %v1458 = vrcp.pop %v1412
  %v1459 = vmul.f32 1.0, %v1458
  %v1460 = vrcp.pop %v1413
  %v1461 = vmul.f32 1.0, %v1460
  %v1462 = vrcp.pop %v1414
  %v1463 = vmul.f32 1.0, %v1462
  %v1464 = vrcp.pop %v1415
  %v1465 = vmul.f32 1.0, %v1464
  %v1466 = vmul.f32 %v1215, %v1417
  %v1467 = vmul.f32 %v1218, %v1419
  %v1468 = vmul.f32 %v1223, %v1421
  %v1469 = vmul.f32 %v1226, %v1423
  %v1470 = vmul.f32 %v1231, %v1425
  %v1471 = vmul.f32 %v1234, %v1427
  %v1472 = vmul.f32 %v1239, %v1429
  %v1473 = vmul.f32 %v1242, %v1431
  %v1474 = vmul.f32 %v1247, %v1433
  %v1475 = vmul.f32 %v1250, %v1435
  %v1476 = vmul.f32 %v1255, %v1437
  %v1477 = vmul.f32 %v1258, %v1439
  %v1478 = vmul.f32 %v1263, %v1441
  %v1479 = vmul.f32 %v1266, %v1443
  %v1480 = vmul.f32 %v1271, %v1445
  %v1481 = vmul.f32 %v1274, %v1447
  %v1482 = vmul.f32 %v1279, %v1449
  %v1483 = vmul.f32 %v1282, %v1451
  %v1484 = vmul.f32 %v1287, %v1453
  %v1485 = vmul.f32 %v1290, %v1455
  %v1486 = vmul.f32 %v1295, %v1457
  %v1487 = vmul.f32 %v1298, %v1459
  %v1488 = vmul.f32 %v1303, %v1461
  %v1489 = vmul.f32 %v1306, %v1463
  %v1490 = vmul.f32 %v1311, %v1465
  %vm1491 = vcmask 523264
  %1492 = vst.msk [vmem:[%s9] sm:$0xff] %vm1491, %v1466
  %1493 = vst.msk [vmem:[%s9 + $0x8] sm:$0xff] %vm1491, %v1467
  %1494 = vst.msk [vmem:[%s9 + $0x10] sm:$0xff] %vm1491, %v1468
  %1495 = vst.msk [vmem:[%s9 + $0x18] sm:$0xff] %vm1491, %v1469
  %1496 = vst.msk [vmem:[%s9 + $0x20] sm:$0xff] %vm1491, %v1470
  %1497 = vst.msk [vmem:[%s9 + $0x28] sm:$0xff] %vm1491, %v1471
  %1498 = vst.msk [vmem:[%s9 + $0x30] sm:$0xff] %vm1491, %v1472
  %1499 = vst.msk [vmem:[%s9 + $0x38] sm:$0xff] %vm1491, %v1473
  %1500 = vst.msk [vmem:[%s9 + $0x40] sm:$0xff] %vm1491, %v1474
  %1501 = vst.msk [vmem:[%s9 + $0x48] sm:$0xff] %vm1491, %v1475
  %1502 = vst.msk [vmem:[%s9 + $0x50] sm:$0xff] %vm1491, %v1476
  %1503 = vst.msk [vmem:[%s9 + $0x58] sm:$0xff] %vm1491, %v1477
  %1504 = vst.msk [vmem:[%s9 + $0x60] sm:$0xff] %vm1491, %v1478
  %1505 = vst.msk [vmem:[%s9 + $0x68] sm:$0xff] %vm1491, %v1479
  %1506 = vst.msk [vmem:[%s9 + $0x70] sm:$0xff] %vm1491, %v1480
  %1507 = vst.msk [vmem:[%s9 + $0x78] sm:$0xff] %vm1491, %v1481
  %1508 = vst.msk [vmem:[%s9 + $0x80] sm:$0xff] %vm1491, %v1482
  %1509 = vst.msk [vmem:[%s9 + $0x88] sm:$0xff] %vm1491, %v1483
  %1510 = vst.msk [vmem:[%s9 + $0x90] sm:$0xff] %vm1491, %v1484
  %1511 = vst.msk [vmem:[%s9 + $0x98] sm:$0xff] %vm1491, %v1485
  %1512 = vst.msk [vmem:[%s9 + $0xa0] sm:$0xff] %vm1491, %v1486
  %1513 = vst.msk [vmem:[%s9 + $0xa8] sm:$0xff] %vm1491, %v1487
  %1514 = vst.msk [vmem:[%s9 + $0xb0] sm:$0xff] %vm1491, %v1488
  %1515 = vst.msk [vmem:[%s9 + $0xb8] sm:$0xff] %vm1491, %v1489
  %1516 = vst.msk [vmem:[%s9 + $0xc0] sm:$0xff] %vm1491, %v1490
  // Predicated region
  $region34: #{update_e_forward.3} parent=0 // pred_check
    _
  $region35: #{update_e_forward.3} parent=0 // pred_check_branch
    %1518 = sbr.rel (0) target = $region37
  $region36: #{update_e_forward.3} parent=0 // pred_region
    _
  $region37: #{update_e_forward.3} parent=0 // pred_fallthru
    _
  // Predicated region
  $region38: #{update_e_forward.3} parent=0 // pred_check
    _
  $region39: #{update_e_forward.3} parent=0 // pred_check_branch
    %1520 = sbr.rel (0) target = $region41
  $region40: #{update_e_forward.3} parent=0 // pred_region
    _
  $region41: #{update_e_forward.3} parent=0 // pred_fallthru
    _
  // Predicated region
  $region42: #{update_e_forward.3} parent=0 // pred_check
    _
  $region43: #{update_e_forward.3} parent=0 // pred_check_branch
    %1522 = sbr.rel (0) target = $region45
  $region44: #{update_e_forward.3} parent=0 // pred_region
    _
  $region45: #{update_e_forward.3} parent=0 // pred_fallthru
    _
  // Predicated region
  $region46: #{update_e_forward.3} parent=0 // pred_check
    _
  $region47: #{update_e_forward.3} parent=0 // pred_check_branch
    %1524 = sbr.rel (0) target = $region49
  $region48: #{update_e_forward.3} parent=0 // pred_region
    _
  $region49: #{update_e_forward.3} parent=0 // pred_fallthru
    _

// kernel: update_e_forward.5
$region0: #{update_e_forward.5}
  #allocation0 [shape = 'u32[]', space=smem, size = 0x4, offset = 0x4, fixed_abs, tag = 'smem constant byte address 0x4 - core index']
  #allocation1 [shape = 'u32[144,128]{1,0:T(1,128)}', space=vmem, size = 0x12000, scoped, tag = 'internal scratch']
  %s0 = inlined_call_operand.vmem [shape: f32[200,128], index: 0, kind: input, shape index: {}]
  %s1 = inlined_call_operand.vmem [shape: f32[200,64], index: 1, kind: input, shape index: {}]
  %s2 = inlined_call_operand.vmem [shape: f32[200,128], index: 2, kind: input, shape index: {}]
  %s3 = inlined_call_operand.vmem [shape: f32[200,8], index: 3, kind: input, shape index: {}]
  %s4 = inlined_call_operand.vmem [shape: bf16[64,128], index: 4, kind: input, shape index: {}]
  %s5 = inlined_call_operand.vmem [shape: bf16[128,128], index: 5, kind: input, shape index: {}]
  %s6 = inlined_call_operand.vmem [shape: f32[1,128], index: 6, kind: input, shape index: {}]
  %s7 = inlined_call_operand.vmem [shape: bf16[128,128], index: 7, kind: input, shape index: {}]
  %s8 = inlined_call_operand.vmem [shape: f32[1,128], index: 8, kind: input, shape index: {}]
  %s9 = inlined_call_operand.vmem [shape: bf16[128,128], index: 9, kind: input, shape index: {}]
  %s10 = inlined_call_operand.vmem [shape: f32[1,128], index: 10, kind: input, shape index: {}]
  %s11 = inlined_call_operand.vmem [shape: bf16[128,128], index: 11, kind: input, shape index: {}]
  %s12 = inlined_call_operand.vmem [shape: f32[1,128], index: 12, kind: input, shape index: {}]
  %s13 = inlined_call_operand.vmem [shape: bf16[128,128], index: 13, kind: input, shape index: {}]
  %s14 = inlined_call_operand.vmem [shape: f32[1,128], index: 14, kind: input, shape index: {}]
  %s15 = inlined_call_operand.vmem [shape: bf16[8,128], index: 15, kind: input, shape index: {}]
  %s16 = inlined_call_operand.hbm [shape: f32[200,128], index: 16, kind: output, shape index: {0}]
  %s17 = inlined_call_operand.hbm [shape: f32[200,128], index: 17, kind: output, shape index: {1}]
  %18 = xla_tuple %s16, %s17
  %s19 = sld [smem:[#allocation0]]
  $region82: #{update_e_forward.5} parent=0
    _
  %s21 = ssub.s32 1, %s19
  %s22 = scalar_select 0, %s21, %s19
  $region1: #{update_e_forward.5} parent=0
    #allocation2 [shape = 'u8[102400]{0}', space=vmem, size = 0x19000, scoped, tag = 'output window, operand 0, single buffered']
    #allocation3 [shape = 's32[1]{0}', space=sflag, size = 0x4, scoped, tag = 'scoped memory for update_e_forward.5']
    #allocation4 [shape = 'u8[102400]{0}', space=vmem, size = 0x19000, scoped, tag = 'output window, operand 1, single buffered']
    #allocation5 [shape = 's32[1]{0}', space=sflag, size = 0x4, scoped, tag = 'scoped memory for update_e_forward.5']
    %23 = vsyncpa [#allocation3], 0
    %24 = vsyncpa [#allocation5], 0
    // Predicated region
    $region2: #{update_e_forward.5} parent=1 // pred_check
      _
    $region3: #{update_e_forward.5} parent=1 // pred_check_branch
      %26 = sbr.rel (0) target = $region5
    $region4: #{update_e_forward.5} parent=1 // pred_region
      _
    $region5: #{update_e_forward.5} parent=1 // pred_fallthru
      _
    // Predicated region
    $region6: #{update_e_forward.5} parent=1 // pred_check
      _
    $region7: #{update_e_forward.5} parent=1 // pred_check_branch
      %28 = sbr.rel (0) target = $region9
    $region8: #{update_e_forward.5} parent=1 // pred_region
      _
    $region9: #{update_e_forward.5} parent=1 // pred_fallthru
      _
    // Predicated region
    $region10: #{update_e_forward.5} parent=1 // pred_check
      _
    $region11: #{update_e_forward.5} parent=1 // pred_check_branch
      %30 = sbr.rel (0) target = $region13
    $region12: #{update_e_forward.5} parent=1 // pred_region
      _
    $region13: #{update_e_forward.5} parent=1 // pred_fallthru
      _
    // Predicated region
    $region14: #{update_e_forward.5} parent=1 // pred_check
      _
    $region15: #{update_e_forward.5} parent=1 // pred_check_branch
      %32 = sbr.rel (0) target = $region17
    $region16: #{update_e_forward.5} parent=1 // pred_region
      _
    $region17: #{update_e_forward.5} parent=1 // pred_fallthru
      _
    // Predicated region
    $region18: #{update_e_forward.5} parent=1 // pred_check
      _
    $region19: #{update_e_forward.5} parent=1 // pred_check_branch
      %34 = sbr.rel (0) target = $region21
    $region20: #{update_e_forward.5} parent=1 // pred_region
      _
    $region21: #{update_e_forward.5} parent=1 // pred_fallthru
      _
    // Predicated region
    $region22: #{update_e_forward.5} parent=1 // pred_check
      _
    $region23: #{update_e_forward.5} parent=1 // pred_check_branch
      %36 = sbr.rel (0) target = $region25
    $region24: #{update_e_forward.5} parent=1 // pred_region
      _
    $region25: #{update_e_forward.5} parent=1 // pred_fallthru
      _
    // Predicated region
    $region26: #{update_e_forward.5} parent=1 // pred_check
      _
    $region27: #{update_e_forward.5} parent=1 // pred_check_branch
      %38 = sbr.rel (0) target = $region29
    $region28: #{update_e_forward.5} parent=1 // pred_region
      _
    $region29: #{update_e_forward.5} parent=1 // pred_fallthru
      _
    // Predicated region
    $region30: #{update_e_forward.5} parent=1 // pred_check
      _
    $region31: #{update_e_forward.5} parent=1 // pred_check_branch
      %40 = sbr.rel (0) target = $region33
    $region32: #{update_e_forward.5} parent=1 // pred_region
      _
    $region33: #{update_e_forward.5} parent=1 // pred_fallthru
      _
    // Predicated region
    $region34: #{update_e_forward.5} parent=1 // pred_check
      _
    $region35: #{update_e_forward.5} parent=1 // pred_check_branch
      %42 = sbr.rel (0) target = $region37
    $region36: #{update_e_forward.5} parent=1 // pred_region
      _
    $region37: #{update_e_forward.5} parent=1 // pred_fallthru
      _
    // Predicated region
    $region38: #{update_e_forward.5} parent=1 // pred_check
      _
    $region39: #{update_e_forward.5} parent=1 // pred_check_branch
      %44 = sbr.rel (0) target = $region41
    $region40: #{update_e_forward.5} parent=1 // pred_region
      _
    $region41: #{update_e_forward.5} parent=1 // pred_fallthru
      _
    // Predicated region
    $region42: #{update_e_forward.5} parent=1 // pred_check
      _
    $region43: #{update_e_forward.5} parent=1 // pred_check_branch
      %46 = sbr.rel (0) target = $region45
    $region44: #{update_e_forward.5} parent=1 // pred_region
      _
    $region45: #{update_e_forward.5} parent=1 // pred_fallthru
      _
    // Predicated region
    $region46: #{update_e_forward.5} parent=1 // pred_check
      _
    $region47: #{update_e_forward.5} parent=1 // pred_check_branch
      %48 = sbr.rel (0) target = $region49
    $region48: #{update_e_forward.5} parent=1 // pred_region
      _
    $region49: #{update_e_forward.5} parent=1 // pred_fallthru
      _
    // Predicated region
    $region50: #{update_e_forward.5} parent=1 // pred_check
      _
    $region51: #{update_e_forward.5} parent=1 // pred_check_branch
      %50 = sbr.rel (0) target = $region53
    $region52: #{update_e_forward.5} parent=1 // pred_region
      _
    $region53: #{update_e_forward.5} parent=1 // pred_fallthru
      _
    // Predicated region
    $region54: #{update_e_forward.5} parent=1 // pred_check
      _
    $region55: #{update_e_forward.5} parent=1 // pred_check_branch
      %52 = sbr.rel (0) target = $region57
    $region56: #{update_e_forward.5} parent=1 // pred_region
      _
    $region57: #{update_e_forward.5} parent=1 // pred_fallthru
      _
    // Predicated region
    $region58: #{update_e_forward.5} parent=1 // pred_check
      _
    $region59: #{update_e_forward.5} parent=1 // pred_check_branch
      %54 = sbr.rel (0) target = $region61
    $region60: #{update_e_forward.5} parent=1 // pred_region
      _
    $region61: #{update_e_forward.5} parent=1 // pred_fallthru
      _
    // Predicated region
    $region62: #{update_e_forward.5} parent=1 // pred_check
      _
    $region63: #{update_e_forward.5} parent=1 // pred_check_branch
      %56 = sbr.rel (0) target = $region65
    $region64: #{update_e_forward.5} parent=1 // pred_region
      _
    $region65: #{update_e_forward.5} parent=1 // pred_fallthru
      _
    %v58 = vld [vmem:[%s1] sm:$0xff]
    %v59 = vld [vmem:[%s1 + $0x8] sm:$0xff]
    %v60 = vld [vmem:[%s1 + $0x10] sm:$0xff]
    %v61 = vld [vmem:[%s1 + $0x18] sm:$0xff]
    %v62 = vld [vmem:[%s1 + $0x20] sm:$0xff]
    %v63 = vld [vmem:[%s1 + $0x28] sm:$0xff]
    %v64 = vld [vmem:[%s1 + $0x30] sm:$0xff]
    %v65 = vld [vmem:[%s1 + $0x38] sm:$0xff]
    %v66 = vld [vmem:[%s1 + $0x40] sm:$0xff]
    %v67 = vld [vmem:[%s1 + $0x48] sm:$0xff]
    %v68 = vld [vmem:[%s1 + $0x50] sm:$0xff]
    %v69 = vld [vmem:[%s1 + $0x58] sm:$0xff]
    %v70 = vld [vmem:[%s1 + $0x60] sm:$0xff]
    %v71 = vld [vmem:[%s1 + $0x68] sm:$0xff]
    %v72 = vld [vmem:[%s1 + $0x70] sm:$0xff]
    %v73 = vld [vmem:[%s1 + $0x78] sm:$0xff]
    %v74 = vld [vmem:[%s1 + $0x80] sm:$0xff]
    %v75 = vld [vmem:[%s1 + $0x88] sm:$0xff]
    %v76 = vld [vmem:[%s1 + $0x90] sm:$0xff]
    %v77 = vld [vmem:[%s1 + $0x98] sm:$0xff]
    %v78 = vld [vmem:[%s1 + $0xa0] sm:$0xff]
    %v79 = vld [vmem:[%s1 + $0xa8] sm:$0xff]
    %v80 = vld [vmem:[%s1 + $0xb0] sm:$0xff]
    %v81 = vld [vmem:[%s1 + $0xb8] sm:$0xff]
    %v82 = vld [vmem:[%s1 + $0xc0] sm:$0xff]
    %v83 = vpack.c.bf16 %v59, %v58
    %v84 = vpack.c.bf16 %v61, %v60
    %v85 = vpack.c.bf16 %v63, %v62
    %v86 = vpack.c.bf16 %v65, %v64
    %v87 = vpack.c.bf16 %v67, %v66
    %v88 = vpack.c.bf16 %v69, %v68
    %v89 = vpack.c.bf16 %v71, %v70
    %v90 = vpack.c.bf16 %v73, %v72
    %v91 = vpack.c.bf16 %v75, %v74
    %v92 = vpack.c.bf16 %v77, %v76
    %v93 = vpack.c.bf16 %v79, %v78
    %v94 = vpack.c.bf16 %v81, %v80
    %v95 = vpack.c.bf16 %v82, %v82
    %v96 = vld [vmem:[%s4] sm:$0xf]
    %v97 = vld [vmem:[%s4 + $0x4] sm:$0xf]
    %v98 = vld [vmem:[%s4 + $0x8] sm:$0xf]
    %v99 = vld [vmem:[%s4 + $0xc] sm:$0xf]
    %v100 = vld [vmem:[%s4 + $0x10] sm:$0xf]
    %v101 = vld [vmem:[%s4 + $0x14] sm:$0xf]
    %v102 = vld [vmem:[%s4 + $0x18] sm:$0xf]
    %v103 = vld [vmem:[%s4 + $0x1c] sm:$0xf]
    %v112 = vunpack.c.l.b16 %v96
    %v113 = vunpack.c.l.b16 %v97
    %v114 = vunpack.c.l.b16 %v98
    %v115 = vunpack.c.l.b16 %v99
    %v116 = vunpack.c.l.b16 %v100
    %v117 = vunpack.c.l.b16 %v101
    %v118 = vunpack.c.l.b16 %v102
    %v119 = vunpack.c.l.b16 %v103
    %v120 = vpack.c.b16 %v113, %v112
    %v121 = vpack.c.b16 %v115, %v114
    %v122 = vpack.c.b16 %v117, %v116
    %v123 = vpack.c.b16 %v119, %v118
    %vm128 = vcmask 523264
    %v130 = vsel %vm128, %v83, 0
    %v133 = vsel %vm128, %v84, 0
    %v136 = vsel %vm128, %v85, 0
    %v139 = vsel %vm128, %v86, 0
    %v142 = vsel %vm128, %v87, 0
    %v145 = vsel %vm128, %v88, 0
    %v148 = vsel %vm128, %v89, 0
    %v151 = vsel %vm128, %v90, 0
    %v154 = vsel %vm128, %v91, 0
    %v157 = vsel %vm128, %v92, 0
    %v160 = vsel %vm128, %v93, 0
    %v163 = vsel %vm128, %v94, 0
    %v166 = vsel %vm128, %v95, 0
    %168 = vmatprep.subr.bf16.mxu0 0
    %169 = vmatpush1.bf16.msra.mxu0 %v120
    %170 = vmatprep.subr.bf16.mxu0 0
    %171 = vmatpush1.bf16.msra.mxu0 %v121
    %172 = vmatprep.subr.bf16.mxu0 0
    %173 = vmatpush1.bf16.msra.mxu0 %v122
    %174 = vmatprep.subr.bf16.mxu0 0
    %175 = vmatpush1.bf16.msra.mxu0 %v123
    %176 = vmatprep.subr.bf16.mxu0 0
    %177 = vmatpush1.bf16.msra.mxu0 0
    %178 = vmatprep.subr.bf16.mxu0 0
    %179 = vmatpush1.bf16.msra.mxu0 0
    %180 = vmatprep.subr.bf16.mxu0 0
    %181 = vmatpush1.bf16.msra.mxu0 0
    %182 = vmatprep.subr.bf16.mxu0 0
    %183 = vmatpush1.bf16.msra.mxu0 0
    %184 = vmatprep.subr.bf16.mxu0 0
    %185 = vmatpush1.bf16.msra.mxu0 0
    %186 = vmatprep.subr.bf16.mxu0 0
    %187 = vmatpush1.bf16.msra.mxu0 0
    %188 = vmatprep.subr.bf16.mxu0 0
    %189 = vmatpush1.bf16.msra.mxu0 0
    %190 = vmatprep.subr.bf16.mxu0 0
    %191 = vmatpush1.bf16.msra.mxu0 0
    %192 = vmatprep.subr.bf16.mxu0 0
    %193 = vmatpush1.bf16.msra.mxu0 0
    %194 = vmatprep.subr.bf16.mxu0 0
    %195 = vmatpush1.bf16.msra.mxu0 0
    %196 = vmatprep.subr.bf16.mxu0 0
    %197 = vmatpush1.bf16.msra.mxu0 0
    %198 = vmatprep.subr.bf16.mxu0 0
    %199 = vmatpush1.bf16.msra.mxu0 0
    %200 = vmatprep.mubr.bf16.mxu0 0
    %201 = vmatmul.mubr.bf16.gmra.mrb[0].mxu0 %v130
    %v202 = vpop.f32.mrb[0].mxu0
    %v203 = vadd.f32 0.0, %v202
    %v204 = vpop.f32.mrb[0].mxu0
    %v205 = vpop.f32.mrb[0].mxu0
    %v206 = vadd.f32 0.0, %v205
    %v207 = vpop.f32.mrb[0].mxu0
    %208 = vmatprep.mubr.bf16.mxu0 0
    %209 = vmatmul.mubr.bf16.gmra.mrb[0].mxu0 %v133
    %v210 = vpop.f32.mrb[0].mxu0
    %v211 = vadd.f32 0.0, %v210
    %v212 = vpop.f32.mrb[0].mxu0
    %v213 = vpop.f32.mrb[0].mxu0
    %v214 = vadd.f32 0.0, %v213
    %v215 = vpop.f32.mrb[0].mxu0
    %216 = vmatprep.mubr.bf16.mxu0 0
    %217 = vmatmul.mubr.bf16.gmra.mrb[0].mxu0 %v136
    %v218 = vpop.f32.mrb[0].mxu0
    %v219 = vadd.f32 0.0, %v218
    %v220 = vpop.f32.mrb[0].mxu0
    %v221 = vpop.f32.mrb[0].mxu0
    %v222 = vadd.f32 0.0, %v221
    %v223 = vpop.f32.mrb[0].mxu0
    %224 = vmatprep.mubr.bf16.mxu0 0
    %225 = vmatmul.mubr.bf16.gmra.mrb[0].mxu0 %v139
    %v226 = vpop.f32.mrb[0].mxu0
    %v227 = vadd.f32 0.0, %v226
    %v228 = vpop.f32.mrb[0].mxu0
    %v229 = vpop.f32.mrb[0].mxu0
    %v230 = vadd.f32 0.0, %v229
    %v231 = vpop.f32.mrb[0].mxu0
    %232 = vmatprep.mubr.bf16.mxu0 0
    %233 = vmatmul.mubr.bf16.gmra.mrb[0].mxu0 %v142
    %v234 = vpop.f32.mrb[0].mxu0
    %v235 = vadd.f32 0.0, %v234
    %v236 = vpop.f32.mrb[0].mxu0
    %v237 = vpop.f32.mrb[0].mxu0
    %v238 = vadd.f32 0.0, %v237
    %v239 = vpop.f32.mrb[0].mxu0
    %240 = vmatprep.mubr.bf16.mxu0 0
    %241 = vmatmul.mubr.bf16.gmra.mrb[0].mxu0 %v145
    %v242 = vpop.f32.mrb[0].mxu0
    %v243 = vadd.f32 0.0, %v242
    %v244 = vpop.f32.mrb[0].mxu0
    %v245 = vpop.f32.mrb[0].mxu0
    %v246 = vadd.f32 0.0, %v245
    %v247 = vpop.f32.mrb[0].mxu0
    %248 = vmatprep.mubr.bf16.mxu0 0
    %249 = vmatmul.mubr.bf16.gmra.mrb[0].mxu0 %v148
    %v250 = vpop.f32.mrb[0].mxu0
    %v251 = vadd.f32 0.0, %v250
    %v252 = vpop.f32.mrb[0].mxu0
    %v253 = vpop.f32.mrb[0].mxu0
    %v254 = vadd.f32 0.0, %v253
    %v255 = vpop.f32.mrb[0].mxu0
    %256 = vmatprep.mubr.bf16.mxu0 0
    %257 = vmatmul.mubr.bf16.gmra.mrb[0].mxu0 %v151
    %v258 = vpop.f32.mrb[0].mxu0
    %v259 = vadd.f32 0.0, %v258
    %v260 = vpop.f32.mrb[0].mxu0
    %v261 = vpop.f32.mrb[0].mxu0
    %v262 = vadd.f32 0.0, %v261
    %v263 = vpop.f32.mrb[0].mxu0
    %264 = vmatprep.mubr.bf16.mxu0 0
    %265 = vmatmul.mubr.bf16.gmra.mrb[0].mxu0 %v154
    %v266 = vpop.f32.mrb[0].mxu0
    %v267 = vadd.f32 0.0, %v266
    %v268 = vpop.f32.mrb[0].mxu0
    %v269 = vpop.f32.mrb[0].mxu0
    %v270 = vadd.f32 0.0, %v269
    %v271 = vpop.f32.mrb[0].mxu0
    %272 = vmatprep.mubr.bf16.mxu0 0
    %273 = vmatmul.mubr.bf16.gmra.mrb[0].mxu0 %v157
    %v274 = vpop.f32.mrb[0].mxu0
    %v275 = vadd.f32 0.0, %v274
    %v276 = vpop.f32.mrb[0].mxu0
    %v277 = vpop.f32.mrb[0].mxu0
    %v278 = vadd.f32 0.0, %v277
    %v279 = vpop.f32.mrb[0].mxu0
    %280 = vmatprep.mubr.bf16.mxu0 0
    %281 = vmatmul.mubr.bf16.gmra.mrb[0].mxu0 %v160
    %v282 = vpop.f32.mrb[0].mxu0
    %v283 = vadd.f32 0.0, %v282
    %v284 = vpop.f32.mrb[0].mxu0
    %v285 = vpop.f32.mrb[0].mxu0
    %v286 = vadd.f32 0.0, %v285
    %v287 = vpop.f32.mrb[0].mxu0
    %288 = vmatprep.mubr.bf16.mxu0 0
    %289 = vmatmul.mubr.bf16.gmra.mrb[0].mxu0 %v163
    %v290 = vpop.f32.mrb[0].mxu0
    %v291 = vadd.f32 0.0, %v290
    %v292 = vpop.f32.mrb[0].mxu0
    %v293 = vpop.f32.mrb[0].mxu0
    %v294 = vadd.f32 0.0, %v293
    %v295 = vpop.f32.mrb[0].mxu0
    %296 = vmatprep.mubr.bf16.mxu0 0
    %297 = vmatmul.mubr.bf16.gmra.mrb[0].mxu0 %v166
    %v298 = vpop.f32.mrb[0].mxu0
    %v299 = vadd.f32 0.0, %v298
    %v300 = vpop.f32.mrb[0].mxu0
    %v301 = vpop.f32.mrb[0].mxu0
    %v302 = vpop.f32.mrb[0].mxu0
    %303 = vdwg.mxu0
    %v304 = vxor.u32 %v203, 2147483648
    %v305 = vxor.u32 %v206, 2147483648
    %v306 = vxor.u32 %v211, 2147483648
    %v307 = vxor.u32 %v214, 2147483648
    %v308 = vxor.u32 %v219, 2147483648
    %v309 = vxor.u32 %v222, 2147483648
    %v310 = vxor.u32 %v227, 2147483648
    %v311 = vxor.u32 %v230, 2147483648
    %v312 = vxor.u32 %v235, 2147483648
    %v313 = vxor.u32 %v238, 2147483648
    %v314 = vxor.u32 %v243, 2147483648
    %v315 = vxor.u32 %v246, 2147483648
    %v316 = vxor.u32 %v251, 2147483648
    %v317 = vxor.u32 %v254, 2147483648
    %v318 = vxor.u32 %v259, 2147483648
    %v319 = vxor.u32 %v262, 2147483648
    %v320 = vxor.u32 %v267, 2147483648
    %v321 = vxor.u32 %v270, 2147483648
    %v322 = vxor.u32 %v275, 2147483648
    %v323 = vxor.u32 %v278, 2147483648
    %v324 = vxor.u32 %v283, 2147483648
    %v325 = vxor.u32 %v286, 2147483648
    %v326 = vxor.u32 %v291, 2147483648
    %v327 = vxor.u32 %v294, 2147483648
    %v328 = vxor.u32 %v299, 2147483648
    %v329 = vmul.f32 %v304, 1.442695
    %v330 = vpow.pop %v329
    %v331 = vmul.f32 %v305, 1.442695
    %v332 = vpow.pop %v331
    %v333 = vmul.f32 %v306, 1.442695
    %v334 = vpow.pop %v333
    %v335 = vmul.f32 %v307, 1.442695
    %v336 = vpow.pop %v335
    %v337 = vmul.f32 %v308, 1.442695
    %v338 = vpow.pop %v337
    %v339 = vmul.f32 %v309, 1.442695
    %v340 = vpow.pop %v339
    %v341 = vmul.f32 %v310, 1.442695
    %v342 = vpow.pop %v341
    %v343 = vmul.f32 %v311, 1.442695
    %v344 = vpow.pop %v343
    %v345 = vmul.f32 %v312, 1.442695
    %v346 = vpow.pop %v345
    %v347 = vmul.f32 %v313, 1.442695
    %v348 = vpow.pop %v347
    %v349 = vmul.f32 %v314, 1.442695
    %v350 = vpow.pop %v349
    %v351 = vmul.f32 %v315, 1.442695
    %v352 = vpow.pop %v351
    %v353 = vmul.f32 %v316, 1.442695
    %v354 = vpow.pop %v353
    %v355 = vmul.f32 %v317, 1.442695
    %v356 = vpow.pop %v355
    %v357 = vmul.f32 %v318, 1.442695
    %v358 = vpow.pop %v357
    %v359 = vmul.f32 %v319, 1.442695
    %v360 = vpow.pop %v359
    %v361 = vmul.f32 %v320, 1.442695
    %v362 = vpow.pop %v361
    %v363 = vmul.f32 %v321, 1.442695
    %v364 = vpow.pop %v363
    %v365 = vmul.f32 %v322, 1.442695
    %v366 = vpow.pop %v365
    %v367 = vmul.f32 %v323, 1.442695
    %v368 = vpow.pop %v367
    %v369 = vmul.f32 %v324, 1.442695
    %v370 = vpow.pop %v369
    %v371 = vmul.f32 %v325, 1.442695
    %v372 = vpow.pop %v371
    %v373 = vmul.f32 %v326, 1.442695
    %v374 = vpow.pop %v373
    %v375 = vmul.f32 %v327, 1.442695
    %v376 = vpow.pop %v375
    %v377 = vmul.f32 %v328, 1.442695
    %v378 = vpow.pop %v377
    %v379 = vadd.f32 %v330, 1.0
    %v380 = vadd.f32 %v332, 1.0
    %v381 = vadd.f32 %v334, 1.0
    %v382 = vadd.f32 %v336, 1.0
    %v383 = vadd.f32 %v338, 1.0
    %v384 = vadd.f32 %v340, 1.0
    %v385 = vadd.f32 %v342, 1.0
    %v386 = vadd.f32 %v344, 1.0
    %v387 = vadd.f32 %v346, 1.0
    %v388 = vadd.f32 %v348, 1.0
    %v389 = vadd.f32 %v350, 1.0
    %v390 = vadd.f32 %v352, 1.0
    %v391 = vadd.f32 %v354, 1.0
    %v392 = vadd.f32 %v356, 1.0
    %v393 = vadd.f32 %v358, 1.0
    %v394 = vadd.f32 %v360, 1.0
    %v395 = vadd.f32 %v362, 1.0
    %v396 = vadd.f32 %v364, 1.0
    %v397 = vadd.f32 %v366, 1.0
    %v398 = vadd.f32 %v368, 1.0
    %v399 = vadd.f32 %v370, 1.0
    %v400 = vadd.f32 %v372, 1.0
    %v401 = vadd.f32 %v374, 1.0
    %v402 = vadd.f32 %v376, 1.0
    %v403 = vadd.f32 %v378, 1.0
    %v404 = vrcp.pop %v379
    %v405 = vmul.f32 1.0, %v404
    %v406 = vrcp.pop %v380
    %v407 = vmul.f32 1.0, %v406
    %v408 = vrcp.pop %v381
    %v409 = vmul.f32 1.0, %v408
    %v410 = vrcp.pop %v382
    %v411 = vmul.f32 1.0, %v410
    %v412 = vrcp.pop %v383
    %v413 = vmul.f32 1.0, %v412
    %v414 = vrcp.pop %v384
    %v415 = vmul.f32 1.0, %v414
    %v416 = vrcp.pop %v385
    %v417 = vmul.f32 1.0, %v416
    %v418 = vrcp.pop %v386
    %v419 = vmul.f32 1.0, %v418
    %v420 = vrcp.pop %v387
    %v421 = vmul.f32 1.0, %v420
    %v422 = vrcp.pop %v388
    %v423 = vmul.f32 1.0, %v422
    %v424 = vrcp.pop %v389
    %v425 = vmul.f32 1.0, %v424
    %v426 = vrcp.pop %v390
    %v427 = vmul.f32 1.0, %v426
    %v428 = vrcp.pop %v391
    %v429 = vmul.f32 1.0, %v428
    %v430 = vrcp.pop %v392
    %v431 = vmul.f32 1.0, %v430
    %v432 = vrcp.pop %v393
    %v433 = vmul.f32 1.0, %v432
    %v434 = vrcp.pop %v394
    %v435 = vmul.f32 1.0, %v434
    %v436 = vrcp.pop %v395
    %v437 = vmul.f32 1.0, %v436
    %v438 = vrcp.pop %v396
    %v439 = vmul.f32 1.0, %v438
    %v440 = vrcp.pop %v397
    %v441 = vmul.f32 1.0, %v440
    %v442 = vrcp.pop %v398
    %v443 = vmul.f32 1.0, %v442
    %v444 = vrcp.pop %v399
    %v445 = vmul.f32 1.0, %v444
    %v446 = vrcp.pop %v400
    %v447 = vmul.f32 1.0, %v446
    %v448 = vrcp.pop %v401
    %v449 = vmul.f32 1.0, %v448
    %v450 = vrcp.pop %v402
    %v451 = vmul.f32 1.0, %v450
    %v452 = vrcp.pop %v403
    %v453 = vmul.f32 1.0, %v452
    %v454 = vmul.f32 %v203, %v405
    %v455 = vmul.f32 %v206, %v407
    %v456 = vmul.f32 %v211, %v409
    %v457 = vmul.f32 %v214, %v411
    %v458 = vmul.f32 %v219, %v413
    %v459 = vmul.f32 %v222, %v415
    %v460 = vmul.f32 %v227, %v417
    %v461 = vmul.f32 %v230, %v419
    %v462 = vmul.f32 %v235, %v421
    %v463 = vmul.f32 %v238, %v423
    %v464 = vmul.f32 %v243, %v425
    %v465 = vmul.f32 %v246, %v427
    %v466 = vmul.f32 %v251, %v429
    %v467 = vmul.f32 %v254, %v431
    %v468 = vmul.f32 %v259, %v433
    %v469 = vmul.f32 %v262, %v435
    %v470 = vmul.f32 %v267, %v437
    %v471 = vmul.f32 %v270, %v439
    %v472 = vmul.f32 %v275, %v441
    %v473 = vmul.f32 %v278, %v443
    %v474 = vmul.f32 %v283, %v445
    %v475 = vmul.f32 %v286, %v447
    %v476 = vmul.f32 %v291, %v449
    %v477 = vmul.f32 %v294, %v451
    %v478 = vmul.f32 %v299, %v453
    %v479 = vld [vmem:[%s0] sm:$0xff]
    %v480 = vld [vmem:[%s0 + $0x8] sm:$0xff]
    %v481 = vld [vmem:[%s0 + $0x10] sm:$0xff]
    %v482 = vld [vmem:[%s0 + $0x18] sm:$0xff]
    %v483 = vld [vmem:[%s0 + $0x20] sm:$0xff]
    %v484 = vld [vmem:[%s0 + $0x28] sm:$0xff]
    %v485 = vld [vmem:[%s0 + $0x30] sm:$0xff]
    %v486 = vld [vmem:[%s0 + $0x38] sm:$0xff]
    %v487 = vld [vmem:[%s0 + $0x40] sm:$0xff]
    %v488 = vld [vmem:[%s0 + $0x48] sm:$0xff]
    %v489 = vld [vmem:[%s0 + $0x50] sm:$0xff]
    %v490 = vld [vmem:[%s0 + $0x58] sm:$0xff]
    %v491 = vld [vmem:[%s0 + $0x60] sm:$0xff]
    %v492 = vld [vmem:[%s0 + $0x68] sm:$0xff]
    %v493 = vld [vmem:[%s0 + $0x70] sm:$0xff]
    %v494 = vld [vmem:[%s0 + $0x78] sm:$0xff]
    %v495 = vld [vmem:[%s0 + $0x80] sm:$0xff]
    %v496 = vld [vmem:[%s0 + $0x88] sm:$0xff]
    %v497 = vld [vmem:[%s0 + $0x90] sm:$0xff]
    %v498 = vld [vmem:[%s0 + $0x98] sm:$0xff]
    %v499 = vld [vmem:[%s0 + $0xa0] sm:$0xff]
    %v500 = vld [vmem:[%s0 + $0xa8] sm:$0xff]
    %v501 = vld [vmem:[%s0 + $0xb0] sm:$0xff]
    %v502 = vld [vmem:[%s0 + $0xb8] sm:$0xff]
    %v503 = vld [vmem:[%s0 + $0xc0] sm:$0xff]
    %v504 = vadd.f32 %v479, %v454
    %v505 = vadd.f32 %v480, %v455
    %v506 = vadd.f32 %v481, %v456
    %v507 = vadd.f32 %v482, %v457
    %v508 = vadd.f32 %v483, %v458
    %v509 = vadd.f32 %v484, %v459
    %v510 = vadd.f32 %v485, %v460
    %v511 = vadd.f32 %v486, %v461
    %v512 = vadd.f32 %v487, %v462
    %v513 = vadd.f32 %v488, %v463
    %v514 = vadd.f32 %v489, %v464
    %v515 = vadd.f32 %v490, %v465
    %v516 = vadd.f32 %v491, %v466
    %v517 = vadd.f32 %v492, %v467
    %v518 = vadd.f32 %v493, %v468
    %v519 = vadd.f32 %v494, %v469
    %v520 = vadd.f32 %v495, %v470
    %v521 = vadd.f32 %v496, %v471
    %v522 = vadd.f32 %v497, %v472
    %v523 = vadd.f32 %v498, %v473
    %v524 = vadd.f32 %v499, %v474
    %v525 = vadd.f32 %v500, %v475
    %v526 = vadd.f32 %v501, %v476
    %v527 = vadd.f32 %v502, %v477
    %v528 = vadd.f32 %v503, %v478
    %v529 = vpack.c.bf16 %v505, %v504
    %v530 = vpack.c.bf16 %v507, %v506
    %v531 = vpack.c.bf16 %v509, %v508
    %v532 = vpack.c.bf16 %v511, %v510
    %v533 = vpack.c.bf16 %v513, %v512
    %v534 = vpack.c.bf16 %v515, %v514
    %v535 = vpack.c.bf16 %v517, %v516
    %v536 = vpack.c.bf16 %v519, %v518
    %v537 = vpack.c.bf16 %v521, %v520
    %v538 = vpack.c.bf16 %v523, %v522
    %v539 = vpack.c.bf16 %v525, %v524
    %v540 = vpack.c.bf16 %v527, %v526
    %v541 = vpack.c.bf16 %v528, %v528
    %v542 = vld [vmem:[%s5] sm:$0xf]
    %v543 = vld [vmem:[%s5 + $0x4] sm:$0xf]
    %v544 = vld [vmem:[%s5 + $0x8] sm:$0xf]
    %v545 = vld [vmem:[%s5 + $0xc] sm:$0xf]
    %v546 = vld [vmem:[%s5 + $0x10] sm:$0xf]
    %v547 = vld [vmem:[%s5 + $0x14] sm:$0xf]
    %v548 = vld [vmem:[%s5 + $0x18] sm:$0xf]
    %v549 = vld [vmem:[%s5 + $0x1c] sm:$0xf]
    %v550 = vld [vmem:[%s5 + $0x20] sm:$0xf]
    %v551 = vld [vmem:[%s5 + $0x24] sm:$0xf]
    %v552 = vld [vmem:[%s5 + $0x28] sm:$0xf]
    %v553 = vld [vmem:[%s5 + $0x2c] sm:$0xf]
    %v554 = vld [vmem:[%s5 + $0x30] sm:$0xf]
    %v555 = vld [vmem:[%s5 + $0x34] sm:$0xf]
    %v556 = vld [vmem:[%s5 + $0x38] sm:$0xf]
    %v557 = vld [vmem:[%s5 + $0x3c] sm:$0xf]
    %v558 = vld [vmem:[%s6] sm:$0x1]
    %v560 = vlaneseq
    %v561 = vshrl.u32 %v560, 7
    %v562 = vsub.s32 0, %v561
    %v563 = vrot.slane %v558, %v562
    %v581 = vunpack.c.l.b16 %v542
    %v582 = vunpack.c.l.b16 %v543
    %v583 = vunpack.c.l.b16 %v544
    %v584 = vunpack.c.l.b16 %v545
    %v585 = vunpack.c.l.b16 %v546
    %v586 = vunpack.c.l.b16 %v547
    %v587 = vunpack.c.l.b16 %v548
    %v588 = vunpack.c.l.b16 %v549
    %v589 = vunpack.c.l.b16 %v550
    %v590 = vunpack.c.l.b16 %v551
    %v591 = vunpack.c.l.b16 %v552
    %v592 = vunpack.c.l.b16 %v553
    %v593 = vunpack.c.l.b16 %v554
    %v594 = vunpack.c.l.b16 %v555
    %v595 = vunpack.c.l.b16 %v556
    %v596 = vunpack.c.l.b16 %v557
    %v597 = vpack.c.b16 %v582, %v581
    %v598 = vpack.c.b16 %v584, %v583
    %v599 = vpack.c.b16 %v586, %v585
    %v600 = vpack.c.b16 %v588, %v587
    %v601 = vpack.c.b16 %v590, %v589
    %v602 = vpack.c.b16 %v592, %v591
    %v603 = vpack.c.b16 %v594, %v593
    %v604 = vpack.c.b16 %v596, %v595
    %613 = vmatprep.subr.bf16.mxu0 0
    %614 = vmatpush1.bf16.msra.mxu0 %v597
    %615 = vmatprep.subr.bf16.mxu0 0
    %616 = vmatpush1.bf16.msra.mxu0 %v598
    %617 = vmatprep.subr.bf16.mxu0 0
    %618 = vmatpush1.bf16.msra.mxu0 %v599
    %619 = vmatprep.subr.bf16.mxu0 0
    %620 = vmatpush1.bf16.msra.mxu0 %v600
    %621 = vmatprep.subr.bf16.mxu0 0
    %622 = vmatpush1.bf16.msra.mxu0 %v601
    %623 = vmatprep.subr.bf16.mxu0 0
    %624 = vmatpush1.bf16.msra.mxu0 %v602
    %625 = vmatprep.subr.bf16.mxu0 0
    %626 = vmatpush1.bf16.msra.mxu0 %v603
    %627 = vmatprep.subr.bf16.mxu0 0
    %628 = vmatpush1.bf16.msra.mxu0 %v604
    %629 = vmatprep.subr.bf16.mxu0 0
    %630 = vmatpush1.bf16.msra.mxu0 0
    %631 = vmatprep.subr.bf16.mxu0 0
    %632 = vmatpush1.bf16.msra.mxu0 0
    %633 = vmatprep.subr.bf16.mxu0 0
    %634 = vmatpush1.bf16.msra.mxu0 0
    %635 = vmatprep.subr.bf16.mxu0 0
    %636 = vmatpush1.bf16.msra.mxu0 0
    %637 = vmatprep.subr.bf16.mxu0 0
    %638 = vmatpush1.bf16.msra.mxu0 0
    %639 = vmatprep.subr.bf16.mxu0 0
    %640 = vmatpush1.bf16.msra.mxu0 0
    %641 = vmatprep.subr.bf16.mxu0 0
    %642 = vmatpush1.bf16.msra.mxu0 0
    %643 = vmatprep.subr.bf16.mxu0 0
    %644 = vmatpush1.bf16.msra.mxu0 0
    %645 = vmatprep.mubr.bf16.mxu0 0
    %646 = vmatmul.mubr.bf16.gmra.mrb[0].mxu0 %v529
    %v647 = vpop.f32.mrb[0].mxu0
    %v648 = vadd.f32 %v563, %v647
    %v649 = vpop.f32.mrb[0].mxu0
    %v650 = vpop.f32.mrb[0].mxu0
    %v651 = vadd.f32 %v563, %v650
    %v652 = vpop.f32.mrb[0].mxu0
    %653 = vmatprep.mubr.bf16.mxu0 0
    %654 = vmatmul.mubr.bf16.gmra.mrb[0].mxu0 %v530
    %v655 = vpop.f32.mrb[0].mxu0
    %v656 = vadd.f32 %v563, %v655
    %v657 = vpop.f32.mrb[0].mxu0
    %v658 = vpop.f32.mrb[0].mxu0
    %v659 = vadd.f32 %v563, %v658
    %v660 = vpop.f32.mrb[0].mxu0
    %661 = vmatprep.mubr.bf16.mxu0 0
    %662 = vmatmul.mubr.bf16.gmra.mrb[0].mxu0 %v531
    %v663 = vpop.f32.mrb[0].mxu0
    %v664 = vadd.f32 %v563, %v663
    %v665 = vpop.f32.mrb[0].mxu0
    %v666 = vpop.f32.mrb[0].mxu0
    %v667 = vadd.f32 %v563, %v666
    %v668 = vpop.f32.mrb[0].mxu0
    %669 = vmatprep.mubr.bf16.mxu0 0
    %670 = vmatmul.mubr.bf16.gmra.mrb[0].mxu0 %v532
    %v671 = vpop.f32.mrb[0].mxu0
    %v672 = vadd.f32 %v563, %v671
    %v673 = vpop.f32.mrb[0].mxu0
    %v674 = vpop.f32.mrb[0].mxu0
    %v675 = vadd.f32 %v563, %v674
    %v676 = vpop.f32.mrb[0].mxu0
    %677 = vmatprep.mubr.bf16.mxu0 0
    %678 = vmatmul.mubr.bf16.gmra.mrb[0].mxu0 %v533
    %v679 = vpop.f32.mrb[0].mxu0
    %v680 = vadd.f32 %v563, %v679
    %v681 = vpop.f32.mrb[0].mxu0
    %v682 = vpop.f32.mrb[0].mxu0
    %v683 = vadd.f32 %v563, %v682
    %v684 = vpop.f32.mrb[0].mxu0
    %685 = vmatprep.mubr.bf16.mxu0 0
    %686 = vmatmul.mubr.bf16.gmra.mrb[0].mxu0 %v534
    %v687 = vpop.f32.mrb[0].mxu0
    %v688 = vadd.f32 %v563, %v687
    %v689 = vpop.f32.mrb[0].mxu0
    %v690 = vpop.f32.mrb[0].mxu0
    %v691 = vadd.f32 %v563, %v690
    %v692 = vpop.f32.mrb[0].mxu0
    %693 = vmatprep.mubr.bf16.mxu0 0
    %694 = vmatmul.mubr.bf16.gmra.mrb[0].mxu0 %v535
    %v695 = vpop.f32.mrb[0].mxu0
    %v696 = vadd.f32 %v563, %v695
    %v697 = vpop.f32.mrb[0].mxu0
    %v698 = vpop.f32.mrb[0].mxu0
    %v699 = vadd.f32 %v563, %v698
    %v700 = vpop.f32.mrb[0].mxu0
    %701 = vmatprep.mubr.bf16.mxu0 0
    %702 = vmatmul.mubr.bf16.gmra.mrb[0].mxu0 %v536
    %v703 = vpop.f32.mrb[0].mxu0
    %v704 = vadd.f32 %v563, %v703
    %v705 = vpop.f32.mrb[0].mxu0
    %v706 = vpop.f32.mrb[0].mxu0
    %v707 = vadd.f32 %v563, %v706
    %v708 = vpop.f32.mrb[0].mxu0
    %709 = vmatprep.mubr.bf16.mxu0 0
    %710 = vmatmul.mubr.bf16.gmra.mrb[0].mxu0 %v537
    %v711 = vpop.f32.mrb[0].mxu0
    %v712 = vadd.f32 %v563, %v711
    %v713 = vpop.f32.mrb[0].mxu0
    %v714 = vpop.f32.mrb[0].mxu0
    %v715 = vadd.f32 %v563, %v714
    %v716 = vpop.f32.mrb[0].mxu0
    %717 = vmatprep.mubr.bf16.mxu0 0
    %718 = vmatmul.mubr.bf16.gmra.mrb[0].mxu0 %v538
    %v719 = vpop.f32.mrb[0].mxu0
    %v720 = vadd.f32 %v563, %v719
    %v721 = vpop.f32.mrb[0].mxu0
    %v722 = vpop.f32.mrb[0].mxu0
    %v723 = vadd.f32 %v563, %v722
    %v724 = vpop.f32.mrb[0].mxu0
    %725 = vmatprep.mubr.bf16.mxu0 0
    %726 = vmatmul.mubr.bf16.gmra.mrb[0].mxu0 %v539
    %v727 = vpop.f32.mrb[0].mxu0
    %v728 = vadd.f32 %v563, %v727
    %v729 = vpop.f32.mrb[0].mxu0
    %v730 = vpop.f32.mrb[0].mxu0
    %v731 = vadd.f32 %v563, %v730
    %v732 = vpop.f32.mrb[0].mxu0
    %733 = vmatprep.mubr.bf16.mxu0 0
    %734 = vmatmul.mubr.bf16.gmra.mrb[0].mxu0 %v540
    %v735 = vpop.f32.mrb[0].mxu0
    %v736 = vadd.f32 %v563, %v735
    %v737 = vpop.f32.mrb[0].mxu0
    %v738 = vpop.f32.mrb[0].mxu0
    %v739 = vadd.f32 %v563, %v738
    %v740 = vpop.f32.mrb[0].mxu0
    %741 = vmatprep.mubr.bf16.mxu0 0
    %742 = vmatmul.mubr.bf16.gmra.mrb[0].mxu0 %v541
    %v743 = vpop.f32.mrb[0].mxu0
    %v744 = vadd.f32 %v563, %v743
    %v745 = vpop.f32.mrb[0].mxu0
    %v746 = vpop.f32.mrb[0].mxu0
    %v747 = vpop.f32.mrb[0].mxu0
    %748 = vdwg.mxu0
    %v749 = vxor.u32 %v648, 2147483648
    %v750 = vxor.u32 %v651, 2147483648
    %v751 = vxor.u32 %v656, 2147483648
    %v752 = vxor.u32 %v659, 2147483648
    %v753 = vxor.u32 %v664, 2147483648
    %v754 = vxor.u32 %v667, 2147483648
    %v755 = vxor.u32 %v672, 2147483648
    %v756 = vxor.u32 %v675, 2147483648
    %v757 = vxor.u32 %v680, 2147483648
    %v758 = vxor.u32 %v683, 2147483648
    %v759 = vxor.u32 %v688, 2147483648
    %v760 = vxor.u32 %v691, 2147483648
    %v761 = vxor.u32 %v696, 2147483648
    %v762 = vxor.u32 %v699, 2147483648
    %v763 = vxor.u32 %v704, 2147483648
    %v764 = vxor.u32 %v707, 2147483648
    %v765 = vxor.u32 %v712, 2147483648
    %v766 = vxor.u32 %v715, 2147483648
    %v767 = vxor.u32 %v720, 2147483648
    %v768 = vxor.u32 %v723, 2147483648
    %v769 = vxor.u32 %v728, 2147483648
    %v770 = vxor.u32 %v731, 2147483648
    %v771 = vxor.u32 %v736, 2147483648
    %v772 = vxor.u32 %v739, 2147483648
    %v773 = vxor.u32 %v744, 2147483648
    %v774 = vmul.f32 %v749, 1.442695
    %v775 = vpow.pop %v774
    %v776 = vmul.f32 %v750, 1.442695
    %v777 = vpow.pop %v776
    %v778 = vmul.f32 %v751, 1.442695
    %v779 = vpow.pop %v778
    %v780 = vmul.f32 %v752, 1.442695
    %v781 = vpow.pop %v780
    %v782 = vmul.f32 %v753, 1.442695
    %v783 = vpow.pop %v782
    %v784 = vmul.f32 %v754, 1.442695
    %v785 = vpow.pop %v784
    %v786 = vmul.f32 %v755, 1.442695
    %v787 = vpow.pop %v786
    %v788 = vmul.f32 %v756, 1.442695
    %v789 = vpow.pop %v788
    %v790 = vmul.f32 %v757, 1.442695
    %v791 = vpow.pop %v790
    %v792 = vmul.f32 %v758, 1.442695
    %v793 = vpow.pop %v792
    %v794 = vmul.f32 %v759, 1.442695
    %v795 = vpow.pop %v794
    %v796 = vmul.f32 %v760, 1.442695
    %v797 = vpow.pop %v796
    %v798 = vmul.f32 %v761, 1.442695
    %v799 = vpow.pop %v798
    %v800 = vmul.f32 %v762, 1.442695
    %v801 = vpow.pop %v800
    %v802 = vmul.f32 %v763, 1.442695
    %v803 = vpow.pop %v802
    %v804 = vmul.f32 %v764, 1.442695
    %v805 = vpow.pop %v804
    %v806 = vmul.f32 %v765, 1.442695
    %v807 = vpow.pop %v806
    %v808 = vmul.f32 %v766, 1.442695
    %v809 = vpow.pop %v808
    %v810 = vmul.f32 %v767, 1.442695
    %v811 = vpow.pop %v810
    %v812 = vmul.f32 %v768, 1.442695
    %v813 = vpow.pop %v812
    %v814 = vmul.f32 %v769, 1.442695
    %v815 = vpow.pop %v814
    %v816 = vmul.f32 %v770, 1.442695
    %v817 = vpow.pop %v816
    %v818 = vmul.f32 %v771, 1.442695
    %v819 = vpow.pop %v818
    %v820 = vmul.f32 %v772, 1.442695
    %v821 = vpow.pop %v820
    %v822 = vmul.f32 %v773, 1.442695
    %v823 = vpow.pop %v822
    %v824 = vadd.f32 %v775, 1.0
    %v825 = vadd.f32 %v777, 1.0
    %v826 = vadd.f32 %v779, 1.0
    %v827 = vadd.f32 %v781, 1.0
    %v828 = vadd.f32 %v783, 1.0
    %v829 = vadd.f32 %v785, 1.0
    %v830 = vadd.f32 %v787, 1.0
    %v831 = vadd.f32 %v789, 1.0
    %v832 = vadd.f32 %v791, 1.0
    %v833 = vadd.f32 %v793, 1.0
    %v834 = vadd.f32 %v795, 1.0
    %v835 = vadd.f32 %v797, 1.0
    %v836 = vadd.f32 %v799, 1.0
    %v837 = vadd.f32 %v801, 1.0
    %v838 = vadd.f32 %v803, 1.0
    %v839 = vadd.f32 %v805, 1.0
    %v840 = vadd.f32 %v807, 1.0
    %v841 = vadd.f32 %v809, 1.0
    %v842 = vadd.f32 %v811, 1.0
    %v843 = vadd.f32 %v813, 1.0
    %v844 = vadd.f32 %v815, 1.0
    %v845 = vadd.f32 %v817, 1.0
    %v846 = vadd.f32 %v819, 1.0
    %v847 = vadd.f32 %v821, 1.0
    %v848 = vadd.f32 %v823, 1.0
    %v849 = vrcp.pop %v824
    %v850 = vmul.f32 1.0, %v849
    %v851 = vrcp.pop %v825
    %v852 = vmul.f32 1.0, %v851
    %v853 = vrcp.pop %v826
    %v854 = vmul.f32 1.0, %v853
    %v855 = vrcp.pop %v827
    %v856 = vmul.f32 1.0, %v855
    %v857 = vrcp.pop %v828
    %v858 = vmul.f32 1.0, %v857
    %v859 = vrcp.pop %v829
    %v860 = vmul.f32 1.0, %v859
    %v861 = vrcp.pop %v830
    %v862 = vmul.f32 1.0, %v861
    %v863 = vrcp.pop %v831
    %v864 = vmul.f32 1.0, %v863
    %v865 = vrcp.pop %v832
    %v866 = vmul.f32 1.0, %v865
    %v867 = vrcp.pop %v833
    %v868 = vmul.f32 1.0, %v867
    %v869 = vrcp.pop %v834
    %v870 = vmul.f32 1.0, %v869
    %v871 = vrcp.pop %v835
    %v872 = vmul.f32 1.0, %v871
    %v873 = vrcp.pop %v836
    %v874 = vmul.f32 1.0, %v873
    %v875 = vrcp.pop %v837
    %v876 = vmul.f32 1.0, %v875
    %v877 = vrcp.pop %v838
    %v878 = vmul.f32 1.0, %v877
    %v879 = vrcp.pop %v839
    %v880 = vmul.f32 1.0, %v879
    %v881 = vrcp.pop %v840
    %v882 = vmul.f32 1.0, %v881
    %v883 = vrcp.pop %v841
    %v884 = vmul.f32 1.0, %v883
    %v885 = vrcp.pop %v842
    %v886 = vmul.f32 1.0, %v885
    %v887 = vrcp.pop %v843
    %v888 = vmul.f32 1.0, %v887
    %v889 = vrcp.pop %v844
    %v890 = vmul.f32 1.0, %v889
    %v891 = vrcp.pop %v845
    %v892 = vmul.f32 1.0, %v891
    %v893 = vrcp.pop %v846
    %v894 = vmul.f32 1.0, %v893
    %v895 = vrcp.pop %v847
    %v896 = vmul.f32 1.0, %v895
    %v897 = vrcp.pop %v848
    %v898 = vmul.f32 1.0, %v897
    %v899 = vmul.f32 %v648, %v850
    %v900 = vmul.f32 %v651, %v852
    %v901 = vmul.f32 %v656, %v854
    %v902 = vmul.f32 %v659, %v856
    %v903 = vmul.f32 %v664, %v858
    %v904 = vmul.f32 %v667, %v860
    %v905 = vmul.f32 %v672, %v862
    %v906 = vmul.f32 %v675, %v864
    %v907 = vmul.f32 %v680, %v866
    %v908 = vmul.f32 %v683, %v868
    %v909 = vmul.f32 %v688, %v870
    %v910 = vmul.f32 %v691, %v872
    %v911 = vmul.f32 %v696, %v874
    %v912 = vmul.f32 %v699, %v876
    %v913 = vmul.f32 %v704, %v878
    %v914 = vmul.f32 %v707, %v880
    %v915 = vmul.f32 %v712, %v882
    %v916 = vmul.f32 %v715, %v884
    %v917 = vmul.f32 %v720, %v886
    %v918 = vmul.f32 %v723, %v888
    %v919 = vmul.f32 %v728, %v890
    %v920 = vmul.f32 %v731, %v892
    %v921 = vmul.f32 %v736, %v894
    %v922 = vmul.f32 %v739, %v896
    %v923 = vmul.f32 %v744, %v898
    %v924 = vpack.c.bf16 %v900, %v899
    %v925 = vpack.c.bf16 %v902, %v901
    %v926 = vpack.c.bf16 %v904, %v903
    %v927 = vpack.c.bf16 %v906, %v905
    %v928 = vpack.c.bf16 %v908, %v907
    %v929 = vpack.c.bf16 %v910, %v909
    %v930 = vpack.c.bf16 %v912, %v911
    %v931 = vpack.c.bf16 %v914, %v913
    %v932 = vpack.c.bf16 %v916, %v915
    %v933 = vpack.c.bf16 %v918, %v917
    %v934 = vpack.c.bf16 %v920, %v919
    %v935 = vpack.c.bf16 %v922, %v921
    %v936 = vpack.c.bf16 %v923, %v923
    %v937 = vld [vmem:[%s7] sm:$0xf]
    %v938 = vld [vmem:[%s7 + $0x4] sm:$0xf]
    %v939 = vld [vmem:[%s7 + $0x8] sm:$0xf]
    %v940 = vld [vmem:[%s7 + $0xc] sm:$0xf]
    %v941 = vld [vmem:[%s7 + $0x10] sm:$0xf]
    %v942 = vld [vmem:[%s7 + $0x14] sm:$0xf]
    %v943 = vld [vmem:[%s7 + $0x18] sm:$0xf]
    %v944 = vld [vmem:[%s7 + $0x1c] sm:$0xf]
    %v945 = vld [vmem:[%s7 + $0x20] sm:$0xf]
    %v946 = vld [vmem:[%s7 + $0x24] sm:$0xf]
    %v947 = vld [vmem:[%s7 + $0x28] sm:$0xf]
    %v948 = vld [vmem:[%s7 + $0x2c] sm:$0xf]
    %v949 = vld [vmem:[%s7 + $0x30] sm:$0xf]
    %v950 = vld [vmem:[%s7 + $0x34] sm:$0xf]
    %v951 = vld [vmem:[%s7 + $0x38] sm:$0xf]
    %v952 = vld [vmem:[%s7 + $0x3c] sm:$0xf]
    %v953 = vld [vmem:[%s8] sm:$0x1]
    %v955 = vlaneseq
    %v956 = vshrl.u32 %v955, 7
    %v957 = vsub.s32 0, %v956
    %v958 = vrot.slane %v953, %v957
    %v976 = vunpack.c.l.b16 %v937
    %v977 = vunpack.c.l.b16 %v938
    %v978 = vunpack.c.l.b16 %v939
    %v979 = vunpack.c.l.b16 %v940
    %v980 = vunpack.c.l.b16 %v941
    %v981 = vunpack.c.l.b16 %v942
    %v982 = vunpack.c.l.b16 %v943
    %v983 = vunpack.c.l.b16 %v944
    %v984 = vunpack.c.l.b16 %v945
    %v985 = vunpack.c.l.b16 %v946
    %v986 = vunpack.c.l.b16 %v947
    %v987 = vunpack.c.l.b16 %v948
    %v988 = vunpack.c.l.b16 %v949
    %v989 = vunpack.c.l.b16 %v950
    %v990 = vunpack.c.l.b16 %v951
    %v991 = vunpack.c.l.b16 %v952
    %v992 = vpack.c.b16 %v977, %v976
    %v993 = vpack.c.b16 %v979, %v978
    %v994 = vpack.c.b16 %v981, %v980
    %v995 = vpack.c.b16 %v983, %v982
    %v996 = vpack.c.b16 %v985, %v984
    %v997 = vpack.c.b16 %v987, %v986
    %v998 = vpack.c.b16 %v989, %v988
    %v999 = vpack.c.b16 %v991, %v990
    %1008 = vmatprep.subr.bf16.mxu0 0
    %1009 = vmatpush1.bf16.msra.mxu0 %v992
    %1010 = vmatprep.subr.bf16.mxu0 0
    %1011 = vmatpush1.bf16.msra.mxu0 %v993
    %1012 = vmatprep.subr.bf16.mxu0 0
    %1013 = vmatpush1.bf16.msra.mxu0 %v994
    %1014 = vmatprep.subr.bf16.mxu0 0
    %1015 = vmatpush1.bf16.msra.mxu0 %v995
    %1016 = vmatprep.subr.bf16.mxu0 0
    %1017 = vmatpush1.bf16.msra.mxu0 %v996
    %1018 = vmatprep.subr.bf16.mxu0 0
    %1019 = vmatpush1.bf16.msra.mxu0 %v997
    %1020 = vmatprep.subr.bf16.mxu0 0
    %1021 = vmatpush1.bf16.msra.mxu0 %v998
    %1022 = vmatprep.subr.bf16.mxu0 0
    %1023 = vmatpush1.bf16.msra.mxu0 %v999
    %1024 = vmatprep.subr.bf16.mxu0 0
    %1025 = vmatpush1.bf16.msra.mxu0 0
    %1026 = vmatprep.subr.bf16.mxu0 0
    %1027 = vmatpush1.bf16.msra.mxu0 0
    %1028 = vmatprep.subr.bf16.mxu0 0
    %1029 = vmatpush1.bf16.msra.mxu0 0
    %1030 = vmatprep.subr.bf16.mxu0 0
    %1031 = vmatpush1.bf16.msra.mxu0 0
    %1032 = vmatprep.subr.bf16.mxu0 0
    %1033 = vmatpush1.bf16.msra.mxu0 0
    %1034 = vmatprep.subr.bf16.mxu0 0
    %1035 = vmatpush1.bf16.msra.mxu0 0
    %1036 = vmatprep.subr.bf16.mxu0 0
    %1037 = vmatpush1.bf16.msra.mxu0 0
    %1038 = vmatprep.subr.bf16.mxu0 0
    %1039 = vmatpush1.bf16.msra.mxu0 0
    %1040 = vmatprep.mubr.bf16.mxu0 0
    %1041 = vmatmul.mubr.bf16.gmra.mrb[0].mxu0 %v924
    %v1042 = vpop.f32.mrb[0].mxu0
    %v1043 = vadd.f32 %v958, %v1042
    %v1044 = vpop.f32.mrb[0].mxu0
    %v1045 = vpop.f32.mrb[0].mxu0
    %v1046 = vadd.f32 %v958, %v1045
    %v1047 = vpop.f32.mrb[0].mxu0
    %1048 = vmatprep.mubr.bf16.mxu0 0
    %1049 = vmatmul.mubr.bf16.gmra.mrb[0].mxu0 %v925
    %v1050 = vpop.f32.mrb[0].mxu0
    %v1051 = vadd.f32 %v958, %v1050
    %v1052 = vpop.f32.mrb[0].mxu0
    %v1053 = vpop.f32.mrb[0].mxu0
    %v1054 = vadd.f32 %v958, %v1053
    %v1055 = vpop.f32.mrb[0].mxu0
    %1056 = vmatprep.mubr.bf16.mxu0 0
    %1057 = vmatmul.mubr.bf16.gmra.mrb[0].mxu0 %v926
    %v1058 = vpop.f32.mrb[0].mxu0
    %v1059 = vadd.f32 %v958, %v1058
    %v1060 = vpop.f32.mrb[0].mxu0
    %v1061 = vpop.f32.mrb[0].mxu0
    %v1062 = vadd.f32 %v958, %v1061
    %v1063 = vpop.f32.mrb[0].mxu0
    %1064 = vmatprep.mubr.bf16.mxu0 0
    %1065 = vmatmul.mubr.bf16.gmra.mrb[0].mxu0 %v927
    %v1066 = vpop.f32.mrb[0].mxu0
    %v1067 = vadd.f32 %v958, %v1066
    %v1068 = vpop.f32.mrb[0].mxu0
    %v1069 = vpop.f32.mrb[0].mxu0
    %v1070 = vadd.f32 %v958, %v1069
    %v1071 = vpop.f32.mrb[0].mxu0
    %1072 = vmatprep.mubr.bf16.mxu0 0
    %1073 = vmatmul.mubr.bf16.gmra.mrb[0].mxu0 %v928
    %v1074 = vpop.f32.mrb[0].mxu0
    %v1075 = vadd.f32 %v958, %v1074
    %v1076 = vpop.f32.mrb[0].mxu0
    %v1077 = vpop.f32.mrb[0].mxu0
    %v1078 = vadd.f32 %v958, %v1077
    %v1079 = vpop.f32.mrb[0].mxu0
    %1080 = vmatprep.mubr.bf16.mxu0 0
    %1081 = vmatmul.mubr.bf16.gmra.mrb[0].mxu0 %v929
    %v1082 = vpop.f32.mrb[0].mxu0
    %v1083 = vadd.f32 %v958, %v1082
    %v1084 = vpop.f32.mrb[0].mxu0
    %v1085 = vpop.f32.mrb[0].mxu0
    %v1086 = vadd.f32 %v958, %v1085
    %v1087 = vpop.f32.mrb[0].mxu0
    %1088 = vmatprep.mubr.bf16.mxu0 0
    %1089 = vmatmul.mubr.bf16.gmra.mrb[0].mxu0 %v930
    %v1090 = vpop.f32.mrb[0].mxu0
    %v1091 = vadd.f32 %v958, %v1090
    %v1092 = vpop.f32.mrb[0].mxu0
    %v1093 = vpop.f32.mrb[0].mxu0
    %v1094 = vadd.f32 %v958, %v1093
    %v1095 = vpop.f32.mrb[0].mxu0
    %1096 = vmatprep.mubr.bf16.mxu0 0
    %1097 = vmatmul.mubr.bf16.gmra.mrb[0].mxu0 %v931
    %v1098 = vpop.f32.mrb[0].mxu0
    %v1099 = vadd.f32 %v958, %v1098
    %v1100 = vpop.f32.mrb[0].mxu0
    %v1101 = vpop.f32.mrb[0].mxu0
    %v1102 = vadd.f32 %v958, %v1101
    %v1103 = vpop.f32.mrb[0].mxu0
    %1104 = vmatprep.mubr.bf16.mxu0 0
    %1105 = vmatmul.mubr.bf16.gmra.mrb[0].mxu0 %v932
    %v1106 = vpop.f32.mrb[0].mxu0
    %v1107 = vadd.f32 %v958, %v1106
    %v1108 = vpop.f32.mrb[0].mxu0
    %v1109 = vpop.f32.mrb[0].mxu0
    %v1110 = vadd.f32 %v958, %v1109
    %v1111 = vpop.f32.mrb[0].mxu0
    %1112 = vmatprep.mubr.bf16.mxu0 0
    %1113 = vmatmul.mubr.bf16.gmra.mrb[0].mxu0 %v933
    %v1114 = vpop.f32.mrb[0].mxu0
    %v1115 = vadd.f32 %v958, %v1114
    %v1116 = vpop.f32.mrb[0].mxu0
    %v1117 = vpop.f32.mrb[0].mxu0
    %v1118 = vadd.f32 %v958, %v1117
    %v1119 = vpop.f32.mrb[0].mxu0
    %1120 = vmatprep.mubr.bf16.mxu0 0
    %1121 = vmatmul.mubr.bf16.gmra.mrb[0].mxu0 %v934
    %v1122 = vpop.f32.mrb[0].mxu0
    %v1123 = vadd.f32 %v958, %v1122
    %v1124 = vpop.f32.mrb[0].mxu0
    %v1125 = vpop.f32.mrb[0].mxu0
    %v1126 = vadd.f32 %v958, %v1125
    %v1127 = vpop.f32.mrb[0].mxu0
    %1128 = vmatprep.mubr.bf16.mxu0 0
    %1129 = vmatmul.mubr.bf16.gmra.mrb[0].mxu0 %v935
    %v1130 = vpop.f32.mrb[0].mxu0
    %v1131 = vadd.f32 %v958, %v1130
    %v1132 = vpop.f32.mrb[0].mxu0
    %v1133 = vpop.f32.mrb[0].mxu0
    %v1134 = vadd.f32 %v958, %v1133
    %v1135 = vpop.f32.mrb[0].mxu0
    %1136 = vmatprep.mubr.bf16.mxu0 0
    %1137 = vmatmul.mubr.bf16.gmra.mrb[0].mxu0 %v936
    %v1138 = vpop.f32.mrb[0].mxu0
    %v1139 = vadd.f32 %v958, %v1138
    %v1140 = vpop.f32.mrb[0].mxu0
    %v1141 = vpop.f32.mrb[0].mxu0
    %v1142 = vpop.f32.mrb[0].mxu0
    %1143 = vdwg.mxu0
    %v1144 = vxor.u32 %v1043, 2147483648
    %v1145 = vxor.u32 %v1046, 2147483648
    %v1146 = vxor.u32 %v1051, 2147483648
    %v1147 = vxor.u32 %v1054, 2147483648
    %v1148 = vxor.u32 %v1059, 2147483648
    %v1149 = vxor.u32 %v1062, 2147483648
    %v1150 = vxor.u32 %v1067, 2147483648
    %v1151 = vxor.u32 %v1070, 2147483648
    %v1152 = vxor.u32 %v1075, 2147483648
    %v1153 = vxor.u32 %v1078, 2147483648
    %v1154 = vxor.u32 %v1083, 2147483648
    %v1155 = vxor.u32 %v1086, 2147483648
    %v1156 = vxor.u32 %v1091, 2147483648
    %v1157 = vxor.u32 %v1094, 2147483648
    %v1158 = vxor.u32 %v1099, 2147483648
    %v1159 = vxor.u32 %v1102, 2147483648
    %v1160 = vxor.u32 %v1107, 2147483648
    %v1161 = vxor.u32 %v1110, 2147483648
    %v1162 = vxor.u32 %v1115, 2147483648
    %v1163 = vxor.u32 %v1118, 2147483648
    %v1164 = vxor.u32 %v1123, 2147483648
    %v1165 = vxor.u32 %v1126, 2147483648
    %v1166 = vxor.u32 %v1131, 2147483648
    %v1167 = vxor.u32 %v1134, 2147483648
    %v1168 = vxor.u32 %v1139, 2147483648
    %v1169 = vmul.f32 %v1144, 1.442695
    %v1170 = vpow.pop %v1169
    %v1171 = vmul.f32 %v1145, 1.442695
    %v1172 = vpow.pop %v1171
    %v1173 = vmul.f32 %v1146, 1.442695
    %v1174 = vpow.pop %v1173
    %v1175 = vmul.f32 %v1147, 1.442695
    %v1176 = vpow.pop %v1175
    %v1177 = vmul.f32 %v1148, 1.442695
    %v1178 = vpow.pop %v1177
    %v1179 = vmul.f32 %v1149, 1.442695
    %v1180 = vpow.pop %v1179
    %v1181 = vmul.f32 %v1150, 1.442695
    %v1182 = vpow.pop %v1181
    %v1183 = vmul.f32 %v1151, 1.442695
    %v1184 = vpow.pop %v1183
    %v1185 = vmul.f32 %v1152, 1.442695
    %v1186 = vpow.pop %v1185
    %v1187 = vmul.f32 %v1153, 1.442695
    %v1188 = vpow.pop %v1187
    %v1189 = vmul.f32 %v1154, 1.442695
    %v1190 = vpow.pop %v1189
    %v1191 = vmul.f32 %v1155, 1.442695
    %v1192 = vpow.pop %v1191
    %v1193 = vmul.f32 %v1156, 1.442695
    %v1194 = vpow.pop %v1193
    %v1195 = vmul.f32 %v1157, 1.442695
    %v1196 = vpow.pop %v1195
    %v1197 = vmul.f32 %v1158, 1.442695
    %v1198 = vpow.pop %v1197
    %v1199 = vmul.f32 %v1159, 1.442695
    %v1200 = vpow.pop %v1199
    %v1201 = vmul.f32 %v1160, 1.442695
    %v1202 = vpow.pop %v1201
    %v1203 = vmul.f32 %v1161, 1.442695
    %v1204 = vpow.pop %v1203
    %v1205 = vmul.f32 %v1162, 1.442695
    %v1206 = vpow.pop %v1205
    %v1207 = vmul.f32 %v1163, 1.442695
    %v1208 = vpow.pop %v1207
    %v1209 = vmul.f32 %v1164, 1.442695
    %v1210 = vpow.pop %v1209
    %v1211 = vmul.f32 %v1165, 1.442695
    %v1212 = vpow.pop %v1211
    %v1213 = vmul.f32 %v1166, 1.442695
    %v1214 = vpow.pop %v1213
    %v1215 = vmul.f32 %v1167, 1.442695
    %v1216 = vpow.pop %v1215
    %v1217 = vmul.f32 %v1168, 1.442695
    %v1218 = vpow.pop %v1217
    %v1219 = vadd.f32 %v1170, 1.0
    %v1220 = vadd.f32 %v1172, 1.0
    %v1221 = vadd.f32 %v1174, 1.0
    %v1222 = vadd.f32 %v1176, 1.0
    %v1223 = vadd.f32 %v1178, 1.0
    %v1224 = vadd.f32 %v1180, 1.0
    %v1225 = vadd.f32 %v1182, 1.0
    %v1226 = vadd.f32 %v1184, 1.0
    %v1227 = vadd.f32 %v1186, 1.0
    %v1228 = vadd.f32 %v1188, 1.0
    %v1229 = vadd.f32 %v1190, 1.0
    %v1230 = vadd.f32 %v1192, 1.0
    %v1231 = vadd.f32 %v1194, 1.0
    %v1232 = vadd.f32 %v1196, 1.0
    %v1233 = vadd.f32 %v1198, 1.0
    %v1234 = vadd.f32 %v1200, 1.0
    %v1235 = vadd.f32 %v1202, 1.0
    %v1236 = vadd.f32 %v1204, 1.0
    %v1237 = vadd.f32 %v1206, 1.0
    %v1238 = vadd.f32 %v1208, 1.0
    %v1239 = vadd.f32 %v1210, 1.0
    %v1240 = vadd.f32 %v1212, 1.0
    %v1241 = vadd.f32 %v1214, 1.0
    %v1242 = vadd.f32 %v1216, 1.0
    %v1243 = vadd.f32 %v1218, 1.0
    %v1244 = vrcp.pop %v1219
    %v1245 = vmul.f32 1.0, %v1244
    %v1246 = vrcp.pop %v1220
    %v1247 = vmul.f32 1.0, %v1246
    %v1248 = vrcp.pop %v1221
    %v1249 = vmul.f32 1.0, %v1248
    %v1250 = vrcp.pop %v1222
    %v1251 = vmul.f32 1.0, %v1250
    %v1252 = vrcp.pop %v1223
    %v1253 = vmul.f32 1.0, %v1252
    %v1254 = vrcp.pop %v1224
    %v1255 = vmul.f32 1.0, %v1254
    %v1256 = vrcp.pop %v1225
    %v1257 = vmul.f32 1.0, %v1256
    %v1258 = vrcp.pop %v1226
    %v1259 = vmul.f32 1.0, %v1258
    %v1260 = vrcp.pop %v1227
    %v1261 = vmul.f32 1.0, %v1260
    %v1262 = vrcp.pop %v1228
    %v1263 = vmul.f32 1.0, %v1262
    %v1264 = vrcp.pop %v1229
    %v1265 = vmul.f32 1.0, %v1264
    %v1266 = vrcp.pop %v1230
    %v1267 = vmul.f32 1.0, %v1266
    %v1268 = vrcp.pop %v1231
    %v1269 = vmul.f32 1.0, %v1268
    %v1270 = vrcp.pop %v1232
    %v1271 = vmul.f32 1.0, %v1270
    %v1272 = vrcp.pop %v1233
    %v1273 = vmul.f32 1.0, %v1272
    %v1274 = vrcp.pop %v1234
    %v1275 = vmul.f32 1.0, %v1274
    %v1276 = vrcp.pop %v1235
    %v1277 = vmul.f32 1.0, %v1276
    %v1278 = vrcp.pop %v1236
    %v1279 = vmul.f32 1.0, %v1278
    %v1280 = vrcp.pop %v1237
    %v1281 = vmul.f32 1.0, %v1280
    %v1282 = vrcp.pop %v1238
    %v1283 = vmul.f32 1.0, %v1282
    %v1284 = vrcp.pop %v1239
    %v1285 = vmul.f32 1.0, %v1284
    %v1286 = vrcp.pop %v1240
    %v1287 = vmul.f32 1.0, %v1286
    %v1288 = vrcp.pop %v1241
    %v1289 = vmul.f32 1.0, %v1288
    %v1290 = vrcp.pop %v1242
    %v1291 = vmul.f32 1.0, %v1290
    %v1292 = vrcp.pop %v1243
    %v1293 = vmul.f32 1.0, %v1292
    %v1294 = vmul.f32 %v1043, %v1245
    %v1295 = vmul.f32 %v1046, %v1247
    %v1296 = vmul.f32 %v1051, %v1249
    %v1297 = vmul.f32 %v1054, %v1251
    %v1298 = vmul.f32 %v1059, %v1253
    %v1299 = vmul.f32 %v1062, %v1255
    %v1300 = vmul.f32 %v1067, %v1257
    %v1301 = vmul.f32 %v1070, %v1259
    %v1302 = vmul.f32 %v1075, %v1261
    %v1303 = vmul.f32 %v1078, %v1263
    %v1304 = vmul.f32 %v1083, %v1265
    %v1305 = vmul.f32 %v1086, %v1267
    %v1306 = vmul.f32 %v1091, %v1269
    %v1307 = vmul.f32 %v1094, %v1271
    %v1308 = vmul.f32 %v1099, %v1273
    %v1309 = vmul.f32 %v1102, %v1275
    %v1310 = vmul.f32 %v1107, %v1277
    %v1311 = vmul.f32 %v1110, %v1279
    %v1312 = vmul.f32 %v1115, %v1281
    %v1313 = vmul.f32 %v1118, %v1283
    %v1314 = vmul.f32 %v1123, %v1285
    %v1315 = vmul.f32 %v1126, %v1287
    %v1316 = vmul.f32 %v1131, %v1289
    %v1317 = vmul.f32 %v1134, %v1291
    %v1318 = vmul.f32 %v1139, %v1293
    %v1319 = vadd.f32 %v504, %v1294
    %v1320 = vadd.f32 %v505, %v1295
    %v1321 = vadd.f32 %v506, %v1296
    %v1322 = vadd.f32 %v507, %v1297
    %v1323 = vadd.f32 %v508, %v1298
    %v1324 = vadd.f32 %v509, %v1299
    %v1325 = vadd.f32 %v510, %v1300
    %v1326 = vadd.f32 %v511, %v1301
    %v1327 = vadd.f32 %v512, %v1302
    %v1328 = vadd.f32 %v513, %v1303
    %v1329 = vadd.f32 %v514, %v1304
    %v1330 = vadd.f32 %v515, %v1305
    %v1331 = vadd.f32 %v516, %v1306
    %v1332 = vadd.f32 %v517, %v1307
    %v1333 = vadd.f32 %v518, %v1308
    %v1334 = vadd.f32 %v519, %v1309
    %v1335 = vadd.f32 %v520, %v1310
    %v1336 = vadd.f32 %v521, %v1311
    %v1337 = vadd.f32 %v522, %v1312
    %v1338 = vadd.f32 %v523, %v1313
    %v1339 = vadd.f32 %v524, %v1314
    %v1340 = vadd.f32 %v525, %v1315
    %v1341 = vadd.f32 %v526, %v1316
    %v1342 = vadd.f32 %v527, %v1317
    %v1343 = vadd.f32 %v528, %v1318
    %v1344 = vpack.c.bf16 %v1320, %v1319
    %v1345 = vpack.c.bf16 %v1322, %v1321
    %v1346 = vpack.c.bf16 %v1324, %v1323
    %v1347 = vpack.c.bf16 %v1326, %v1325
    %v1348 = vpack.c.bf16 %v1328, %v1327
    %v1349 = vpack.c.bf16 %v1330, %v1329
    %v1350 = vpack.c.bf16 %v1332, %v1331
    %v1351 = vpack.c.bf16 %v1334, %v1333
    %v1352 = vpack.c.bf16 %v1336, %v1335
    %v1353 = vpack.c.bf16 %v1338, %v1337
    %v1354 = vpack.c.bf16 %v1340, %v1339
    %v1355 = vpack.c.bf16 %v1342, %v1341
    %v1356 = vpack.c.bf16 %v1343, %v1343
    %v1357 = vld [vmem:[%s9] sm:$0xf]
    %v1358 = vld [vmem:[%s9 + $0x4] sm:$0xf]
    %v1359 = vld [vmem:[%s9 + $0x8] sm:$0xf]
    %v1360 = vld [vmem:[%s9 + $0xc] sm:$0xf]
    %v1361 = vld [vmem:[%s9 + $0x10] sm:$0xf]
    %v1362 = vld [vmem:[%s9 + $0x14] sm:$0xf]
    %v1363 = vld [vmem:[%s9 + $0x18] sm:$0xf]
    %v1364 = vld [vmem:[%s9 + $0x1c] sm:$0xf]
    %v1365 = vld [vmem:[%s9 + $0x20] sm:$0xf]
    %v1366 = vld [vmem:[%s9 + $0x24] sm:$0xf]
    %v1367 = vld [vmem:[%s9 + $0x28] sm:$0xf]
    %v1368 = vld [vmem:[%s9 + $0x2c] sm:$0xf]
    %v1369 = vld [vmem:[%s9 + $0x30] sm:$0xf]
    %v1370 = vld [vmem:[%s9 + $0x34] sm:$0xf]
    %v1371 = vld [vmem:[%s9 + $0x38] sm:$0xf]
    %v1372 = vld [vmem:[%s9 + $0x3c] sm:$0xf]
    %v1373 = vld [vmem:[%s10] sm:$0x1]
    %v1375 = vlaneseq
    %v1376 = vshrl.u32 %v1375, 7
    %v1377 = vsub.s32 0, %v1376
    %v1378 = vrot.slane %v1373, %v1377
    %v1396 = vunpack.c.l.b16 %v1357
    %v1397 = vunpack.c.l.b16 %v1358
    %v1398 = vunpack.c.l.b16 %v1359
    %v1399 = vunpack.c.l.b16 %v1360
    %v1400 = vunpack.c.l.b16 %v1361
    %v1401 = vunpack.c.l.b16 %v1362
    %v1402 = vunpack.c.l.b16 %v1363
    %v1403 = vunpack.c.l.b16 %v1364
    %v1404 = vunpack.c.l.b16 %v1365
    %v1405 = vunpack.c.l.b16 %v1366
    %v1406 = vunpack.c.l.b16 %v1367
    %v1407 = vunpack.c.l.b16 %v1368
    %v1408 = vunpack.c.l.b16 %v1369
    %v1409 = vunpack.c.l.b16 %v1370
    %v1410 = vunpack.c.l.b16 %v1371
    %v1411 = vunpack.c.l.b16 %v1372
    %v1412 = vpack.c.b16 %v1397, %v1396
    %v1413 = vpack.c.b16 %v1399, %v1398
    %v1414 = vpack.c.b16 %v1401, %v1400
    %v1415 = vpack.c.b16 %v1403, %v1402
    %v1416 = vpack.c.b16 %v1405, %v1404
    %v1417 = vpack.c.b16 %v1407, %v1406
    %v1418 = vpack.c.b16 %v1409, %v1408
    %v1419 = vpack.c.b16 %v1411, %v1410
    %1428 = vmatprep.subr.bf16.mxu0 0
    %1429 = vmatpush1.bf16.msra.mxu0 %v1412
    %1430 = vmatprep.subr.bf16.mxu0 0
    %1431 = vmatpush1.bf16.msra.mxu0 %v1413
    %1432 = vmatprep.subr.bf16.mxu0 0
    %1433 = vmatpush1.bf16.msra.mxu0 %v1414
    %1434 = vmatprep.subr.bf16.mxu0 0
    %1435 = vmatpush1.bf16.msra.mxu0 %v1415
    %1436 = vmatprep.subr.bf16.mxu0 0
    %1437 = vmatpush1.bf16.msra.mxu0 %v1416
    %1438 = vmatprep.subr.bf16.mxu0 0
    %1439 = vmatpush1.bf16.msra.mxu0 %v1417
    %1440 = vmatprep.subr.bf16.mxu0 0
    %1441 = vmatpush1.bf16.msra.mxu0 %v1418
    %1442 = vmatprep.subr.bf16.mxu0 0
    %1443 = vmatpush1.bf16.msra.mxu0 %v1419
    %1444 = vmatprep.subr.bf16.mxu0 0
    %1445 = vmatpush1.bf16.msra.mxu0 0
    %1446 = vmatprep.subr.bf16.mxu0 0
    %1447 = vmatpush1.bf16.msra.mxu0 0
    %1448 = vmatprep.subr.bf16.mxu0 0
    %1449 = vmatpush1.bf16.msra.mxu0 0
    %1450 = vmatprep.subr.bf16.mxu0 0
    %1451 = vmatpush1.bf16.msra.mxu0 0
    %1452 = vmatprep.subr.bf16.mxu0 0
    %1453 = vmatpush1.bf16.msra.mxu0 0
    %1454 = vmatprep.subr.bf16.mxu0 0
    %1455 = vmatpush1.bf16.msra.mxu0 0
    %1456 = vmatprep.subr.bf16.mxu0 0
    %1457 = vmatpush1.bf16.msra.mxu0 0
    %1458 = vmatprep.subr.bf16.mxu0 0
    %1459 = vmatpush1.bf16.msra.mxu0 0
    %1460 = vmatprep.mubr.bf16.mxu0 0
    %1461 = vmatmul.mubr.bf16.gmra.mrb[0].mxu0 %v1344
    %v1462 = vpop.f32.mrb[0].mxu0
    %v1463 = vadd.f32 %v1378, %v1462
    %v1464 = vpop.f32.mrb[0].mxu0
    %v1465 = vpop.f32.mrb[0].mxu0
    %v1466 = vadd.f32 %v1378, %v1465
    %v1467 = vpop.f32.mrb[0].mxu0
    %1468 = vmatprep.mubr.bf16.mxu0 0
    %1469 = vmatmul.mubr.bf16.gmra.mrb[0].mxu0 %v1345
    %v1470 = vpop.f32.mrb[0].mxu0
    %v1471 = vadd.f32 %v1378, %v1470
    %v1472 = vpop.f32.mrb[0].mxu0
    %v1473 = vpop.f32.mrb[0].mxu0
    %v1474 = vadd.f32 %v1378, %v1473
    %v1475 = vpop.f32.mrb[0].mxu0
    %1476 = vmatprep.mubr.bf16.mxu0 0
    %1477 = vmatmul.mubr.bf16.gmra.mrb[0].mxu0 %v1346
    %v1478 = vpop.f32.mrb[0].mxu0
    %v1479 = vadd.f32 %v1378, %v1478
    %v1480 = vpop.f32.mrb[0].mxu0
    %v1481 = vpop.f32.mrb[0].mxu0
    %v1482 = vadd.f32 %v1378, %v1481
    %v1483 = vpop.f32.mrb[0].mxu0
    %1484 = vmatprep.mubr.bf16.mxu0 0
    %1485 = vmatmul.mubr.bf16.gmra.mrb[0].mxu0 %v1347
    %v1486 = vpop.f32.mrb[0].mxu0
    %v1487 = vadd.f32 %v1378, %v1486
    %v1488 = vpop.f32.mrb[0].mxu0
    %v1489 = vpop.f32.mrb[0].mxu0
    %v1490 = vadd.f32 %v1378, %v1489
    %v1491 = vpop.f32.mrb[0].mxu0
    %1492 = vmatprep.mubr.bf16.mxu0 0
    %1493 = vmatmul.mubr.bf16.gmra.mrb[0].mxu0 %v1348
    %v1494 = vpop.f32.mrb[0].mxu0
    %v1495 = vadd.f32 %v1378, %v1494
    %v1496 = vpop.f32.mrb[0].mxu0
    %v1497 = vpop.f32.mrb[0].mxu0
    %v1498 = vadd.f32 %v1378, %v1497
    %v1499 = vpop.f32.mrb[0].mxu0
    %1500 = vmatprep.mubr.bf16.mxu0 0
    %1501 = vmatmul.mubr.bf16.gmra.mrb[0].mxu0 %v1349
    %v1502 = vpop.f32.mrb[0].mxu0
    %v1503 = vadd.f32 %v1378, %v1502
    %v1504 = vpop.f32.mrb[0].mxu0
    %v1505 = vpop.f32.mrb[0].mxu0
    %v1506 = vadd.f32 %v1378, %v1505
    %v1507 = vpop.f32.mrb[0].mxu0
    %1508 = vmatprep.mubr.bf16.mxu0 0
    %1509 = vmatmul.mubr.bf16.gmra.mrb[0].mxu0 %v1350
    %v1510 = vpop.f32.mrb[0].mxu0
    %v1511 = vadd.f32 %v1378, %v1510
    %v1512 = vpop.f32.mrb[0].mxu0
    %v1513 = vpop.f32.mrb[0].mxu0
    %v1514 = vadd.f32 %v1378, %v1513
    %v1515 = vpop.f32.mrb[0].mxu0
    %1516 = vmatprep.mubr.bf16.mxu0 0
    %1517 = vmatmul.mubr.bf16.gmra.mrb[0].mxu0 %v1351
    %v1518 = vpop.f32.mrb[0].mxu0
    %v1519 = vadd.f32 %v1378, %v1518
    %v1520 = vpop.f32.mrb[0].mxu0
    %v1521 = vpop.f32.mrb[0].mxu0
    %v1522 = vadd.f32 %v1378, %v1521
    %v1523 = vpop.f32.mrb[0].mxu0
    %1524 = vmatprep.mubr.bf16.mxu0 0
    %1525 = vmatmul.mubr.bf16.gmra.mrb[0].mxu0 %v1352
    %v1526 = vpop.f32.mrb[0].mxu0
    %v1527 = vadd.f32 %v1378, %v1526
    %v1528 = vpop.f32.mrb[0].mxu0
    %v1529 = vpop.f32.mrb[0].mxu0
    %v1530 = vadd.f32 %v1378, %v1529
    %v1531 = vpop.f32.mrb[0].mxu0
    %1532 = vmatprep.mubr.bf16.mxu0 0
    %1533 = vmatmul.mubr.bf16.gmra.mrb[0].mxu0 %v1353
    %v1534 = vpop.f32.mrb[0].mxu0
    %v1535 = vadd.f32 %v1378, %v1534
    %v1536 = vpop.f32.mrb[0].mxu0
    %v1537 = vpop.f32.mrb[0].mxu0
    %v1538 = vadd.f32 %v1378, %v1537
    %v1539 = vpop.f32.mrb[0].mxu0
    %1540 = vmatprep.mubr.bf16.mxu0 0
    %1541 = vmatmul.mubr.bf16.gmra.mrb[0].mxu0 %v1354
    %v1542 = vpop.f32.mrb[0].mxu0
    %v1543 = vadd.f32 %v1378, %v1542
    %v1544 = vpop.f32.mrb[0].mxu0
    %v1545 = vpop.f32.mrb[0].mxu0
    %v1546 = vadd.f32 %v1378, %v1545
    %v1547 = vpop.f32.mrb[0].mxu0
    %1548 = vmatprep.mubr.bf16.mxu0 0
    %1549 = vmatmul.mubr.bf16.gmra.mrb[0].mxu0 %v1355
    %v1550 = vpop.f32.mrb[0].mxu0
    %v1551 = vadd.f32 %v1378, %v1550
    %v1552 = vpop.f32.mrb[0].mxu0
    %v1553 = vpop.f32.mrb[0].mxu0
    %v1554 = vadd.f32 %v1378, %v1553
    %v1555 = vpop.f32.mrb[0].mxu0
    %1556 = vmatprep.mubr.bf16.mxu0 0
    %1557 = vmatmul.mubr.bf16.gmra.mrb[0].mxu0 %v1356
    %v1558 = vpop.f32.mrb[0].mxu0
    %v1559 = vadd.f32 %v1378, %v1558
    %v1560 = vpop.f32.mrb[0].mxu0
    %v1561 = vpop.f32.mrb[0].mxu0
    %v1562 = vpop.f32.mrb[0].mxu0
    %1563 = vdwg.mxu0
    %v1564 = vxor.u32 %v1463, 2147483648
    %v1565 = vxor.u32 %v1466, 2147483648
    %v1566 = vxor.u32 %v1471, 2147483648
    %v1567 = vxor.u32 %v1474, 2147483648
    %v1568 = vxor.u32 %v1479, 2147483648
    %v1569 = vxor.u32 %v1482, 2147483648
    %v1570 = vxor.u32 %v1487, 2147483648
    %v1571 = vxor.u32 %v1490, 2147483648
    %v1572 = vxor.u32 %v1495, 2147483648
    %v1573 = vxor.u32 %v1498, 2147483648
    %v1574 = vxor.u32 %v1503, 2147483648
    %v1575 = vxor.u32 %v1506, 2147483648
    %v1576 = vxor.u32 %v1511, 2147483648
    %v1577 = vxor.u32 %v1514, 2147483648
    %v1578 = vxor.u32 %v1519, 2147483648
    %v1579 = vxor.u32 %v1522, 2147483648
    %v1580 = vxor.u32 %v1527, 2147483648
    %v1581 = vxor.u32 %v1530, 2147483648
    %v1582 = vxor.u32 %v1535, 2147483648
    %v1583 = vxor.u32 %v1538, 2147483648
    %v1584 = vxor.u32 %v1543, 2147483648
    %v1585 = vxor.u32 %v1546, 2147483648
    %v1586 = vxor.u32 %v1551, 2147483648
    %v1587 = vxor.u32 %v1554, 2147483648
    %v1588 = vxor.u32 %v1559, 2147483648
    %v1589 = vmul.f32 %v1564, 1.442695
    %v1590 = vpow.pop %v1589
    %v1591 = vmul.f32 %v1565, 1.442695
    %v1592 = vpow.pop %v1591
    %v1593 = vmul.f32 %v1566, 1.442695
    %v1594 = vpow.pop %v1593
    %v1595 = vmul.f32 %v1567, 1.442695
    %v1596 = vpow.pop %v1595
    %v1597 = vmul.f32 %v1568, 1.442695
    %v1598 = vpow.pop %v1597
    %v1599 = vmul.f32 %v1569, 1.442695
    %v1600 = vpow.pop %v1599
    %v1601 = vmul.f32 %v1570, 1.442695
    %v1602 = vpow.pop %v1601
    %v1603 = vmul.f32 %v1571, 1.442695
    %v1604 = vpow.pop %v1603
    %v1605 = vmul.f32 %v1572, 1.442695
    %v1606 = vpow.pop %v1605
    %v1607 = vmul.f32 %v1573, 1.442695
    %v1608 = vpow.pop %v1607
    %v1609 = vmul.f32 %v1574, 1.442695
    %v1610 = vpow.pop %v1609
    %v1611 = vmul.f32 %v1575, 1.442695
    %v1612 = vpow.pop %v1611
    %v1613 = vmul.f32 %v1576, 1.442695
    %v1614 = vpow.pop %v1613
    %v1615 = vmul.f32 %v1577, 1.442695
    %v1616 = vpow.pop %v1615
    %v1617 = vmul.f32 %v1578, 1.442695
    %v1618 = vpow.pop %v1617
    %v1619 = vmul.f32 %v1579, 1.442695
    %v1620 = vpow.pop %v1619
    %v1621 = vmul.f32 %v1580, 1.442695
    %v1622 = vpow.pop %v1621
    %v1623 = vmul.f32 %v1581, 1.442695
    %v1624 = vpow.pop %v1623
    %v1625 = vmul.f32 %v1582, 1.442695
    %v1626 = vpow.pop %v1625
    %v1627 = vmul.f32 %v1583, 1.442695
    %v1628 = vpow.pop %v1627
    %v1629 = vmul.f32 %v1584, 1.442695
    %v1630 = vpow.pop %v1629
    %v1631 = vmul.f32 %v1585, 1.442695
    %v1632 = vpow.pop %v1631
    %v1633 = vmul.f32 %v1586, 1.442695
    %v1634 = vpow.pop %v1633
    %v1635 = vmul.f32 %v1587, 1.442695
    %v1636 = vpow.pop %v1635
    %v1637 = vmul.f32 %v1588, 1.442695
    %v1638 = vpow.pop %v1637
    %v1639 = vadd.f32 %v1590, 1.0
    %v1640 = vadd.f32 %v1592, 1.0
    %v1641 = vadd.f32 %v1594, 1.0
    %v1642 = vadd.f32 %v1596, 1.0
    %v1643 = vadd.f32 %v1598, 1.0
    %v1644 = vadd.f32 %v1600, 1.0
    %v1645 = vadd.f32 %v1602, 1.0
    %v1646 = vadd.f32 %v1604, 1.0
    %v1647 = vadd.f32 %v1606, 1.0
    %v1648 = vadd.f32 %v1608, 1.0
    %v1649 = vadd.f32 %v1610, 1.0
    %v1650 = vadd.f32 %v1612, 1.0
    %v1651 = vadd.f32 %v1614, 1.0
    %v1652 = vadd.f32 %v1616, 1.0
    %v1653 = vadd.f32 %v1618, 1.0
    %v1654 = vadd.f32 %v1620, 1.0
    %v1655 = vadd.f32 %v1622, 1.0
    %v1656 = vadd.f32 %v1624, 1.0
    %v1657 = vadd.f32 %v1626, 1.0
    %v1658 = vadd.f32 %v1628, 1.0
    %v1659 = vadd.f32 %v1630, 1.0
    %v1660 = vadd.f32 %v1632, 1.0
    %v1661 = vadd.f32 %v1634, 1.0
    %v1662 = vadd.f32 %v1636, 1.0
    %v1663 = vadd.f32 %v1638, 1.0
    %v1664 = vrcp.pop %v1639
    %v1665 = vmul.f32 1.0, %v1664
    %v1666 = vrcp.pop %v1640
    %v1667 = vmul.f32 1.0, %v1666
    %v1668 = vrcp.pop %v1641
    %v1669 = vmul.f32 1.0, %v1668
    %v1670 = vrcp.pop %v1642
    %v1671 = vmul.f32 1.0, %v1670
    %v1672 = vrcp.pop %v1643
    %v1673 = vmul.f32 1.0, %v1672
    %v1674 = vrcp.pop %v1644
    %v1675 = vmul.f32 1.0, %v1674
    %v1676 = vrcp.pop %v1645
    %v1677 = vmul.f32 1.0, %v1676
    %v1678 = vrcp.pop %v1646
    %v1679 = vmul.f32 1.0, %v1678
    %v1680 = vrcp.pop %v1647
    %v1681 = vmul.f32 1.0, %v1680
    %v1682 = vrcp.pop %v1648
    %v1683 = vmul.f32 1.0, %v1682
    %v1684 = vrcp.pop %v1649
    %v1685 = vmul.f32 1.0, %v1684
    %v1686 = vrcp.pop %v1650
    %v1687 = vmul.f32 1.0, %v1686
    %v1688 = vrcp.pop %v1651
    %v1689 = vmul.f32 1.0, %v1688
    %v1690 = vrcp.pop %v1652
    %v1691 = vmul.f32 1.0, %v1690
    %v1692 = vrcp.pop %v1653
    %v1693 = vmul.f32 1.0, %v1692
    %v1694 = vrcp.pop %v1654
    %v1695 = vmul.f32 1.0, %v1694
    %v1696 = vrcp.pop %v1655
    %v1697 = vmul.f32 1.0, %v1696
    %v1698 = vrcp.pop %v1656
    %v1699 = vmul.f32 1.0, %v1698
    %v1700 = vrcp.pop %v1657
    %v1701 = vmul.f32 1.0, %v1700
    %v1702 = vrcp.pop %v1658
    %v1703 = vmul.f32 1.0, %v1702
    %v1704 = vrcp.pop %v1659
    %v1705 = vmul.f32 1.0, %v1704
    %v1706 = vrcp.pop %v1660
    %v1707 = vmul.f32 1.0, %v1706
    %v1708 = vrcp.pop %v1661
    %v1709 = vmul.f32 1.0, %v1708
    %v1710 = vrcp.pop %v1662
    %v1711 = vmul.f32 1.0, %v1710
    %v1712 = vrcp.pop %v1663
    %v1713 = vmul.f32 1.0, %v1712
    %v1714 = vmul.f32 %v1463, %v1665
    %v1715 = vmul.f32 %v1466, %v1667
    %v1716 = vmul.f32 %v1471, %v1669
    %v1717 = vmul.f32 %v1474, %v1671
    %v1718 = vmul.f32 %v1479, %v1673
    %v1719 = vmul.f32 %v1482, %v1675
    %v1720 = vmul.f32 %v1487, %v1677
    %v1721 = vmul.f32 %v1490, %v1679
    %v1722 = vmul.f32 %v1495, %v1681
    %v1723 = vmul.f32 %v1498, %v1683
    %v1724 = vmul.f32 %v1503, %v1685
    %v1725 = vmul.f32 %v1506, %v1687
    %v1726 = vmul.f32 %v1511, %v1689
    %v1727 = vmul.f32 %v1514, %v1691
    %v1728 = vmul.f32 %v1519, %v1693
    %v1729 = vmul.f32 %v1522, %v1695
    %v1730 = vmul.f32 %v1527, %v1697
    %v1731 = vmul.f32 %v1530, %v1699
    %v1732 = vmul.f32 %v1535, %v1701
    %v1733 = vmul.f32 %v1538, %v1703
    %v1734 = vmul.f32 %v1543, %v1705
    %v1735 = vmul.f32 %v1546, %v1707
    %v1736 = vmul.f32 %v1551, %v1709
    %v1737 = vmul.f32 %v1554, %v1711
    %v1738 = vmul.f32 %v1559, %v1713
    %v1739 = vld [vmem:[%s2] sm:$0xff]
    %v1740 = vld [vmem:[%s2 + $0x8] sm:$0xff]
    %v1741 = vld [vmem:[%s2 + $0x10] sm:$0xff]
    %v1742 = vld [vmem:[%s2 + $0x18] sm:$0xff]
    %v1743 = vld [vmem:[%s2 + $0x20] sm:$0xff]
    %v1744 = vld [vmem:[%s2 + $0x28] sm:$0xff]
    %v1745 = vld [vmem:[%s2 + $0x30] sm:$0xff]
    %v1746 = vld [vmem:[%s2 + $0x38] sm:$0xff]
    %v1747 = vld [vmem:[%s2 + $0x40] sm:$0xff]
    %v1748 = vld [vmem:[%s2 + $0x48] sm:$0xff]
    %v1749 = vld [vmem:[%s2 + $0x50] sm:$0xff]
    %v1750 = vld [vmem:[%s2 + $0x58] sm:$0xff]
    %v1751 = vld [vmem:[%s2 + $0x60] sm:$0xff]
    %v1752 = vld [vmem:[%s2 + $0x68] sm:$0xff]
    %v1753 = vld [vmem:[%s2 + $0x70] sm:$0xff]
    %v1754 = vld [vmem:[%s2 + $0x78] sm:$0xff]
    %v1755 = vld [vmem:[%s2 + $0x80] sm:$0xff]
    %v1756 = vld [vmem:[%s2 + $0x88] sm:$0xff]
    %v1757 = vld [vmem:[%s2 + $0x90] sm:$0xff]
    %v1758 = vld [vmem:[%s2 + $0x98] sm:$0xff]
    %v1759 = vld [vmem:[%s2 + $0xa0] sm:$0xff]
    %v1760 = vld [vmem:[%s2 + $0xa8] sm:$0xff]
    %v1761 = vld [vmem:[%s2 + $0xb0] sm:$0xff]
    %v1762 = vld [vmem:[%s2 + $0xb8] sm:$0xff]
    %v1763 = vld [vmem:[%s2 + $0xc0] sm:$0xff]
    %v1764 = vadd.f32 %v1714, %v1739
    %v1765 = vadd.f32 %v1715, %v1740
    %v1766 = vadd.f32 %v1716, %v1741
    %v1767 = vadd.f32 %v1717, %v1742
    %v1768 = vadd.f32 %v1718, %v1743
    %v1769 = vadd.f32 %v1719, %v1744
    %v1770 = vadd.f32 %v1720, %v1745
    %v1771 = vadd.f32 %v1721, %v1746
    %v1772 = vadd.f32 %v1722, %v1747
    %v1773 = vadd.f32 %v1723, %v1748
    %v1774 = vadd.f32 %v1724, %v1749
    %v1775 = vadd.f32 %v1725, %v1750
    %v1776 = vadd.f32 %v1726, %v1751
    %v1777 = vadd.f32 %v1727, %v1752
    %v1778 = vadd.f32 %v1728, %v1753
    %v1779 = vadd.f32 %v1729, %v1754
    %v1780 = vadd.f32 %v1730, %v1755
    %v1781 = vadd.f32 %v1731, %v1756
    %v1782 = vadd.f32 %v1732, %v1757
    %v1783 = vadd.f32 %v1733, %v1758
    %v1784 = vadd.f32 %v1734, %v1759
    %v1785 = vadd.f32 %v1735, %v1760
    %v1786 = vadd.f32 %v1736, %v1761
    %v1787 = vadd.f32 %v1737, %v1762
    %v1788 = vadd.f32 %v1738, %v1763
    %v1789 = vpack.c.bf16 %v1765, %v1764
    %v1790 = vpack.c.bf16 %v1767, %v1766
    %v1791 = vpack.c.bf16 %v1769, %v1768
    %v1792 = vpack.c.bf16 %v1771, %v1770
    %v1793 = vpack.c.bf16 %v1773, %v1772
    %v1794 = vpack.c.bf16 %v1775, %v1774
    %v1795 = vpack.c.bf16 %v1777, %v1776
    %v1796 = vpack.c.bf16 %v1779, %v1778
    %v1797 = vpack.c.bf16 %v1781, %v1780
    %v1798 = vpack.c.bf16 %v1783, %v1782
    %v1799 = vpack.c.bf16 %v1785, %v1784
    %v1800 = vpack.c.bf16 %v1787, %v1786
    %v1801 = vpack.c.bf16 %v1788, %v1788
    %v1802 = vld [vmem:[%s11] sm:$0xf]
    %v1803 = vld [vmem:[%s11 + $0x4] sm:$0xf]
    %v1804 = vld [vmem:[%s11 + $0x8] sm:$0xf]
    %v1805 = vld [vmem:[%s11 + $0xc] sm:$0xf]
    %v1806 = vld [vmem:[%s11 + $0x10] sm:$0xf]
    %v1807 = vld [vmem:[%s11 + $0x14] sm:$0xf]
    %v1808 = vld [vmem:[%s11 + $0x18] sm:$0xf]
    %v1809 = vld [vmem:[%s11 + $0x1c] sm:$0xf]
    %v1810 = vld [vmem:[%s11 + $0x20] sm:$0xf]
    %v1811 = vld [vmem:[%s11 + $0x24] sm:$0xf]
    %v1812 = vld [vmem:[%s11 + $0x28] sm:$0xf]
    %v1813 = vld [vmem:[%s11 + $0x2c] sm:$0xf]
    %v1814 = vld [vmem:[%s11 + $0x30] sm:$0xf]
    %v1815 = vld [vmem:[%s11 + $0x34] sm:$0xf]
    %v1816 = vld [vmem:[%s11 + $0x38] sm:$0xf]
    %v1817 = vld [vmem:[%s11 + $0x3c] sm:$0xf]
    %v1818 = vld [vmem:[%s12] sm:$0x1]
    %v1820 = vlaneseq
    %v1821 = vshrl.u32 %v1820, 7
    %v1822 = vsub.s32 0, %v1821
    %v1823 = vrot.slane %v1818, %v1822
    %v1841 = vunpack.c.l.b16 %v1802
    %v1842 = vunpack.c.l.b16 %v1803
    %v1843 = vunpack.c.l.b16 %v1804
    %v1844 = vunpack.c.l.b16 %v1805
    %v1845 = vunpack.c.l.b16 %v1806
    %v1846 = vunpack.c.l.b16 %v1807
    %v1847 = vunpack.c.l.b16 %v1808
    %v1848 = vunpack.c.l.b16 %v1809
    %v1849 = vunpack.c.l.b16 %v1810
    %v1850 = vunpack.c.l.b16 %v1811
    %v1851 = vunpack.c.l.b16 %v1812
    %v1852 = vunpack.c.l.b16 %v1813
    %v1853 = vunpack.c.l.b16 %v1814
    %v1854 = vunpack.c.l.b16 %v1815
    %v1855 = vunpack.c.l.b16 %v1816
    %v1856 = vunpack.c.l.b16 %v1817
    %v1857 = vpack.c.b16 %v1842, %v1841
    %v1858 = vpack.c.b16 %v1844, %v1843
    %v1859 = vpack.c.b16 %v1846, %v1845
    %v1860 = vpack.c.b16 %v1848, %v1847
    %v1861 = vpack.c.b16 %v1850, %v1849
    %v1862 = vpack.c.b16 %v1852, %v1851
    %v1863 = vpack.c.b16 %v1854, %v1853
    %v1864 = vpack.c.b16 %v1856, %v1855
    %1873 = vmatprep.subr.bf16.mxu0 0
    %1874 = vmatpush1.bf16.msra.mxu0 %v1857
    %1875 = vmatprep.subr.bf16.mxu0 0
    %1876 = vmatpush1.bf16.msra.mxu0 %v1858
    %1877 = vmatprep.subr.bf16.mxu0 0
    %1878 = vmatpush1.bf16.msra.mxu0 %v1859
    %1879 = vmatprep.subr.bf16.mxu0 0
    %1880 = vmatpush1.bf16.msra.mxu0 %v1860
    %1881 = vmatprep.subr.bf16.mxu0 0
    %1882 = vmatpush1.bf16.msra.mxu0 %v1861
    %1883 = vmatprep.subr.bf16.mxu0 0
    %1884 = vmatpush1.bf16.msra.mxu0 %v1862
    %1885 = vmatprep.subr.bf16.mxu0 0
    %1886 = vmatpush1.bf16.msra.mxu0 %v1863
    %1887 = vmatprep.subr.bf16.mxu0 0
    %1888 = vmatpush1.bf16.msra.mxu0 %v1864
    %1889 = vmatprep.subr.bf16.mxu0 0
    %1890 = vmatpush1.bf16.msra.mxu0 0
    %1891 = vmatprep.subr.bf16.mxu0 0
    %1892 = vmatpush1.bf16.msra.mxu0 0
    %1893 = vmatprep.subr.bf16.mxu0 0
    %1894 = vmatpush1.bf16.msra.mxu0 0
    %1895 = vmatprep.subr.bf16.mxu0 0
    %1896 = vmatpush1.bf16.msra.mxu0 0
    %1897 = vmatprep.subr.bf16.mxu0 0
    %1898 = vmatpush1.bf16.msra.mxu0 0
    %1899 = vmatprep.subr.bf16.mxu0 0
    %1900 = vmatpush1.bf16.msra.mxu0 0
    %1901 = vmatprep.subr.bf16.mxu0 0
    %1902 = vmatpush1.bf16.msra.mxu0 0
    %1903 = vmatprep.subr.bf16.mxu0 0
    %1904 = vmatpush1.bf16.msra.mxu0 0
    %1905 = vmatprep.mubr.bf16.mxu0 0
    %1906 = vmatmul.mubr.bf16.gmra.mrb[0].mxu0 %v1789
    %v1907 = vpop.f32.mrb[0].mxu0
    %v1908 = vadd.f32 %v1823, %v1907
    %v1909 = vpop.f32.mrb[0].mxu0
    %v1910 = vpop.f32.mrb[0].mxu0
    %v1911 = vadd.f32 %v1823, %v1910
    %v1912 = vpop.f32.mrb[0].mxu0
    %1913 = vmatprep.mubr.bf16.mxu0 0
    %1914 = vmatmul.mubr.bf16.gmra.mrb[0].mxu0 %v1790
    %v1915 = vpop.f32.mrb[0].mxu0
    %v1916 = vadd.f32 %v1823, %v1915
    %v1917 = vpop.f32.mrb[0].mxu0
    %v1918 = vpop.f32.mrb[0].mxu0
    %v1919 = vadd.f32 %v1823, %v1918
    %v1920 = vpop.f32.mrb[0].mxu0
    %1921 = vmatprep.mubr.bf16.mxu0 0
    %1922 = vmatmul.mubr.bf16.gmra.mrb[0].mxu0 %v1791
    %v1923 = vpop.f32.mrb[0].mxu0
    %v1924 = vadd.f32 %v1823, %v1923
    %v1925 = vpop.f32.mrb[0].mxu0
    %v1926 = vpop.f32.mrb[0].mxu0
    %v1927 = vadd.f32 %v1823, %v1926
    %v1928 = vpop.f32.mrb[0].mxu0
    %1929 = vmatprep.mubr.bf16.mxu0 0
    %1930 = vmatmul.mubr.bf16.gmra.mrb[0].mxu0 %v1792
    %v1931 = vpop.f32.mrb[0].mxu0
    %v1932 = vadd.f32 %v1823, %v1931
    %v1933 = vpop.f32.mrb[0].mxu0
    %v1934 = vpop.f32.mrb[0].mxu0
    %v1935 = vadd.f32 %v1823, %v1934
    %v1936 = vpop.f32.mrb[0].mxu0
    %1937 = vmatprep.mubr.bf16.mxu0 0
    %1938 = vmatmul.mubr.bf16.gmra.mrb[0].mxu0 %v1793
    %v1939 = vpop.f32.mrb[0].mxu0
    %v1940 = vadd.f32 %v1823, %v1939
    %v1941 = vpop.f32.mrb[0].mxu0
    %v1942 = vpop.f32.mrb[0].mxu0
    %v1943 = vadd.f32 %v1823, %v1942
    %v1944 = vpop.f32.mrb[0].mxu0
    %1945 = vmatprep.mubr.bf16.mxu0 0
    %1946 = vmatmul.mubr.bf16.gmra.mrb[0].mxu0 %v1794
    %v1947 = vpop.f32.mrb[0].mxu0
    %v1948 = vadd.f32 %v1823, %v1947
    %v1949 = vpop.f32.mrb[0].mxu0
    %v1950 = vpop.f32.mrb[0].mxu0
    %v1951 = vadd.f32 %v1823, %v1950
    %v1952 = vpop.f32.mrb[0].mxu0
    %1953 = vmatprep.mubr.bf16.mxu0 0
    %1954 = vmatmul.mubr.bf16.gmra.mrb[0].mxu0 %v1795
    %v1955 = vpop.f32.mrb[0].mxu0
    %v1956 = vadd.f32 %v1823, %v1955
    %v1957 = vpop.f32.mrb[0].mxu0
    %v1958 = vpop.f32.mrb[0].mxu0
    %v1959 = vadd.f32 %v1823, %v1958
    %v1960 = vpop.f32.mrb[0].mxu0
    %1961 = vmatprep.mubr.bf16.mxu0 0
    %1962 = vmatmul.mubr.bf16.gmra.mrb[0].mxu0 %v1796
    %v1963 = vpop.f32.mrb[0].mxu0
    %v1964 = vadd.f32 %v1823, %v1963
    %v1965 = vpop.f32.mrb[0].mxu0
    %v1966 = vpop.f32.mrb[0].mxu0
    %v1967 = vadd.f32 %v1823, %v1966
    %v1968 = vpop.f32.mrb[0].mxu0
    %1969 = vmatprep.mubr.bf16.mxu0 0
    %1970 = vmatmul.mubr.bf16.gmra.mrb[0].mxu0 %v1797
    %v1971 = vpop.f32.mrb[0].mxu0
    %v1972 = vadd.f32 %v1823, %v1971
    %v1973 = vpop.f32.mrb[0].mxu0
    %v1974 = vpop.f32.mrb[0].mxu0
    %v1975 = vadd.f32 %v1823, %v1974
    %v1976 = vpop.f32.mrb[0].mxu0
    %1977 = vmatprep.mubr.bf16.mxu0 0
    %1978 = vmatmul.mubr.bf16.gmra.mrb[0].mxu0 %v1798
    %v1979 = vpop.f32.mrb[0].mxu0
    %v1980 = vadd.f32 %v1823, %v1979
    %v1981 = vpop.f32.mrb[0].mxu0
    %v1982 = vpop.f32.mrb[0].mxu0
    %v1983 = vadd.f32 %v1823, %v1982
    %v1984 = vpop.f32.mrb[0].mxu0
    %1985 = vmatprep.mubr.bf16.mxu0 0
    %1986 = vmatmul.mubr.bf16.gmra.mrb[0].mxu0 %v1799
    %v1987 = vpop.f32.mrb[0].mxu0
    %v1988 = vadd.f32 %v1823, %v1987
    %v1989 = vpop.f32.mrb[0].mxu0
    %v1990 = vpop.f32.mrb[0].mxu0
    %v1991 = vadd.f32 %v1823, %v1990
    %v1992 = vpop.f32.mrb[0].mxu0
    %1993 = vmatprep.mubr.bf16.mxu0 0
    %1994 = vmatmul.mubr.bf16.gmra.mrb[0].mxu0 %v1800
    %v1995 = vpop.f32.mrb[0].mxu0
    %v1996 = vadd.f32 %v1823, %v1995
    %v1997 = vpop.f32.mrb[0].mxu0
    %v1998 = vpop.f32.mrb[0].mxu0
    %v1999 = vadd.f32 %v1823, %v1998
    %v2000 = vpop.f32.mrb[0].mxu0
    %2001 = vmatprep.mubr.bf16.mxu0 0
    %2002 = vmatmul.mubr.bf16.gmra.mrb[0].mxu0 %v1801
    %v2003 = vpop.f32.mrb[0].mxu0
    %v2004 = vadd.f32 %v1823, %v2003
    %v2005 = vpop.f32.mrb[0].mxu0
    %v2006 = vpop.f32.mrb[0].mxu0
    %v2007 = vpop.f32.mrb[0].mxu0
    %2008 = vdwg.mxu0
    %v2009 = vxor.u32 %v1908, 2147483648
    %v2010 = vxor.u32 %v1911, 2147483648
    %v2011 = vxor.u32 %v1916, 2147483648
    %v2012 = vxor.u32 %v1919, 2147483648
    %v2013 = vxor.u32 %v1924, 2147483648
    %v2014 = vxor.u32 %v1927, 2147483648
    %v2015 = vxor.u32 %v1932, 2147483648
    %v2016 = vxor.u32 %v1935, 2147483648
    %v2017 = vxor.u32 %v1940, 2147483648
    %v2018 = vxor.u32 %v1943, 2147483648
    %v2019 = vxor.u32 %v1948, 2147483648
    %v2020 = vxor.u32 %v1951, 2147483648
    %v2021 = vxor.u32 %v1956, 2147483648
    %v2022 = vxor.u32 %v1959, 2147483648
    %v2023 = vxor.u32 %v1964, 2147483648
    %v2024 = vxor.u32 %v1967, 2147483648
    %v2025 = vxor.u32 %v1972, 2147483648
    %v2026 = vxor.u32 %v1975, 2147483648
    %v2027 = vxor.u32 %v1980, 2147483648
    %v2028 = vxor.u32 %v1983, 2147483648
    %v2029 = vxor.u32 %v1988, 2147483648
    %v2030 = vxor.u32 %v1991, 2147483648
    %v2031 = vxor.u32 %v1996, 2147483648
    %v2032 = vxor.u32 %v1999, 2147483648
    %v2033 = vxor.u32 %v2004, 2147483648
    %v2034 = vmul.f32 %v2009, 1.442695
    %v2035 = vpow.pop %v2034
    %v2036 = vmul.f32 %v2010, 1.442695
    %v2037 = vpow.pop %v2036
    %v2038 = vmul.f32 %v2011, 1.442695
    %v2039 = vpow.pop %v2038
    %v2040 = vmul.f32 %v2012, 1.442695
    %v2041 = vpow.pop %v2040
    %v2042 = vmul.f32 %v2013, 1.442695
    %v2043 = vpow.pop %v2042
    %v2044 = vmul.f32 %v2014, 1.442695
    %v2045 = vpow.pop %v2044
    %v2046 = vmul.f32 %v2015, 1.442695
    %v2047 = vpow.pop %v2046
    %v2048 = vmul.f32 %v2016, 1.442695
    %v2049 = vpow.pop %v2048
    %v2050 = vmul.f32 %v2017, 1.442695
    %v2051 = vpow.pop %v2050
    %v2052 = vmul.f32 %v2018, 1.442695
    %v2053 = vpow.pop %v2052
    %v2054 = vmul.f32 %v2019, 1.442695
    %v2055 = vpow.pop %v2054
    %v2056 = vmul.f32 %v2020, 1.442695
    %v2057 = vpow.pop %v2056
    %v2058 = vmul.f32 %v2021, 1.442695
    %v2059 = vpow.pop %v2058
    %v2060 = vmul.f32 %v2022, 1.442695
    %v2061 = vpow.pop %v2060
    %v2062 = vmul.f32 %v2023, 1.442695
    %v2063 = vpow.pop %v2062
    %v2064 = vmul.f32 %v2024, 1.442695
    %v2065 = vpow.pop %v2064
    %v2066 = vmul.f32 %v2025, 1.442695
    %v2067 = vpow.pop %v2066
    %v2068 = vmul.f32 %v2026, 1.442695
    %v2069 = vpow.pop %v2068
    %v2070 = vmul.f32 %v2027, 1.442695
    %v2071 = vpow.pop %v2070
    %v2072 = vmul.f32 %v2028, 1.442695
    %v2073 = vpow.pop %v2072
    %v2074 = vmul.f32 %v2029, 1.442695
    %v2075 = vpow.pop %v2074
    %v2076 = vmul.f32 %v2030, 1.442695
    %v2077 = vpow.pop %v2076
    %v2078 = vmul.f32 %v2031, 1.442695
    %v2079 = vpow.pop %v2078
    %v2080 = vmul.f32 %v2032, 1.442695
    %v2081 = vpow.pop %v2080
    %v2082 = vmul.f32 %v2033, 1.442695
    %v2083 = vpow.pop %v2082
    %v2084 = vadd.f32 %v2035, 1.0
    %v2085 = vadd.f32 %v2037, 1.0
    %v2086 = vadd.f32 %v2039, 1.0
    %v2087 = vadd.f32 %v2041, 1.0
    %v2088 = vadd.f32 %v2043, 1.0
    %v2089 = vadd.f32 %v2045, 1.0
    %v2090 = vadd.f32 %v2047, 1.0
    %v2091 = vadd.f32 %v2049, 1.0
    %v2092 = vadd.f32 %v2051, 1.0
    %v2093 = vadd.f32 %v2053, 1.0
    %v2094 = vadd.f32 %v2055, 1.0
    %v2095 = vadd.f32 %v2057, 1.0
    %v2096 = vadd.f32 %v2059, 1.0
    %v2097 = vadd.f32 %v2061, 1.0
    %v2098 = vadd.f32 %v2063, 1.0
    %v2099 = vadd.f32 %v2065, 1.0
    %v2100 = vadd.f32 %v2067, 1.0
    %v2101 = vadd.f32 %v2069, 1.0
    %v2102 = vadd.f32 %v2071, 1.0
    %v2103 = vadd.f32 %v2073, 1.0
    %v2104 = vadd.f32 %v2075, 1.0
    %v2105 = vadd.f32 %v2077, 1.0
    %v2106 = vadd.f32 %v2079, 1.0
    %v2107 = vadd.f32 %v2081, 1.0
    %v2108 = vadd.f32 %v2083, 1.0
    %v2109 = vrcp.pop %v2084
    %v2110 = vmul.f32 1.0, %v2109
    %v2111 = vrcp.pop %v2085
    %v2112 = vmul.f32 1.0, %v2111
    %v2113 = vrcp.pop %v2086
    %v2114 = vmul.f32 1.0, %v2113
    %v2115 = vrcp.pop %v2087
    %v2116 = vmul.f32 1.0, %v2115
    %v2117 = vrcp.pop %v2088
    %v2118 = vmul.f32 1.0, %v2117
    %v2119 = vrcp.pop %v2089
    %v2120 = vmul.f32 1.0, %v2119
    %v2121 = vrcp.pop %v2090
    %v2122 = vmul.f32 1.0, %v2121
    %v2123 = vrcp.pop %v2091
    %v2124 = vmul.f32 1.0, %v2123
    %v2125 = vrcp.pop %v2092
    %v2126 = vmul.f32 1.0, %v2125
    %v2127 = vrcp.pop %v2093
    %v2128 = vmul.f32 1.0, %v2127
    %v2129 = vrcp.pop %v2094
    %v2130 = vmul.f32 1.0, %v2129
    %v2131 = vrcp.pop %v2095
    %v2132 = vmul.f32 1.0, %v2131
    %v2133 = vrcp.pop %v2096
    %v2134 = vmul.f32 1.0, %v2133
    %v2135 = vrcp.pop %v2097
    %v2136 = vmul.f32 1.0, %v2135
    %v2137 = vrcp.pop %v2098
    %v2138 = vmul.f32 1.0, %v2137
    %v2139 = vrcp.pop %v2099
    %v2140 = vmul.f32 1.0, %v2139
    %v2141 = vrcp.pop %v2100
    %v2142 = vmul.f32 1.0, %v2141
    %v2143 = vrcp.pop %v2101
    %v2144 = vmul.f32 1.0, %v2143
    %v2145 = vrcp.pop %v2102
    %v2146 = vmul.f32 1.0, %v2145
    %v2147 = vrcp.pop %v2103
    %v2148 = vmul.f32 1.0, %v2147
    %v2149 = vrcp.pop %v2104
    %v2150 = vmul.f32 1.0, %v2149
    %v2151 = vrcp.pop %v2105
    %v2152 = vmul.f32 1.0, %v2151
    %v2153 = vrcp.pop %v2106
    %v2154 = vmul.f32 1.0, %v2153
    %v2155 = vrcp.pop %v2107
    %v2156 = vmul.f32 1.0, %v2155
    %v2157 = vrcp.pop %v2108
    %v2158 = vmul.f32 1.0, %v2157
    %v2159 = vmul.f32 %v1908, %v2110
    %v2160 = vmul.f32 %v1911, %v2112
    %v2161 = vmul.f32 %v1916, %v2114
    %v2162 = vmul.f32 %v1919, %v2116
    %v2163 = vmul.f32 %v1924, %v2118
    %v2164 = vmul.f32 %v1927, %v2120
    %v2165 = vmul.f32 %v1932, %v2122
    %v2166 = vmul.f32 %v1935, %v2124
    %v2167 = vmul.f32 %v1940, %v2126
    %v2168 = vmul.f32 %v1943, %v2128
    %v2169 = vmul.f32 %v1948, %v2130
    %v2170 = vmul.f32 %v1951, %v2132
    %v2171 = vmul.f32 %v1956, %v2134
    %v2172 = vmul.f32 %v1959, %v2136
    %v2173 = vmul.f32 %v1964, %v2138
    %v2174 = vmul.f32 %v1967, %v2140
    %v2175 = vmul.f32 %v1972, %v2142
    %v2176 = vmul.f32 %v1975, %v2144
    %v2177 = vmul.f32 %v1980, %v2146
    %v2178 = vmul.f32 %v1983, %v2148
    %v2179 = vmul.f32 %v1988, %v2150
    %v2180 = vmul.f32 %v1991, %v2152
    %v2181 = vmul.f32 %v1996, %v2154
    %v2182 = vmul.f32 %v1999, %v2156
    %v2183 = vmul.f32 %v2004, %v2158
    %v2184 = vpack.c.bf16 %v2160, %v2159
    %v2185 = vpack.c.bf16 %v2162, %v2161
    %v2186 = vpack.c.bf16 %v2164, %v2163
    %v2187 = vpack.c.bf16 %v2166, %v2165
    %v2188 = vpack.c.bf16 %v2168, %v2167
    %v2189 = vpack.c.bf16 %v2170, %v2169
    %v2190 = vpack.c.bf16 %v2172, %v2171
    %v2191 = vpack.c.bf16 %v2174, %v2173
    %v2192 = vpack.c.bf16 %v2176, %v2175
    %v2193 = vpack.c.bf16 %v2178, %v2177
    %v2194 = vpack.c.bf16 %v2180, %v2179
    %v2195 = vpack.c.bf16 %v2182, %v2181
    %v2196 = vpack.c.bf16 %v2183, %v2183
    %v2197 = vld [vmem:[%s13] sm:$0xf]
    %v2198 = vld [vmem:[%s13 + $0x4] sm:$0xf]
    %v2199 = vld [vmem:[%s13 + $0x8] sm:$0xf]
    %v2200 = vld [vmem:[%s13 + $0xc] sm:$0xf]
    %v2201 = vld [vmem:[%s13 + $0x10] sm:$0xf]
    %v2202 = vld [vmem:[%s13 + $0x14] sm:$0xf]
    %v2203 = vld [vmem:[%s13 + $0x18] sm:$0xf]
    %v2204 = vld [vmem:[%s13 + $0x1c] sm:$0xf]
    %v2205 = vld [vmem:[%s13 + $0x20] sm:$0xf]
    %v2206 = vld [vmem:[%s13 + $0x24] sm:$0xf]
    %v2207 = vld [vmem:[%s13 + $0x28] sm:$0xf]
    %v2208 = vld [vmem:[%s13 + $0x2c] sm:$0xf]
    %v2209 = vld [vmem:[%s13 + $0x30] sm:$0xf]
    %v2210 = vld [vmem:[%s13 + $0x34] sm:$0xf]
    %v2211 = vld [vmem:[%s13 + $0x38] sm:$0xf]
    %v2212 = vld [vmem:[%s13 + $0x3c] sm:$0xf]
    %v2213 = vld [vmem:[%s14] sm:$0x1]
    %v2215 = vlaneseq
    %v2216 = vshrl.u32 %v2215, 7
    %v2217 = vsub.s32 0, %v2216
    %v2218 = vrot.slane %v2213, %v2217
    %v2236 = vunpack.c.l.b16 %v2197
    %v2237 = vunpack.c.l.b16 %v2198
    %v2238 = vunpack.c.l.b16 %v2199
    %v2239 = vunpack.c.l.b16 %v2200
    %v2240 = vunpack.c.l.b16 %v2201
    %v2241 = vunpack.c.l.b16 %v2202
    %v2242 = vunpack.c.l.b16 %v2203
    %v2243 = vunpack.c.l.b16 %v2204
    %v2244 = vunpack.c.l.b16 %v2205
    %v2245 = vunpack.c.l.b16 %v2206
    %v2246 = vunpack.c.l.b16 %v2207
    %v2247 = vunpack.c.l.b16 %v2208
    %v2248 = vunpack.c.l.b16 %v2209
    %v2249 = vunpack.c.l.b16 %v2210
    %v2250 = vunpack.c.l.b16 %v2211
    %v2251 = vunpack.c.l.b16 %v2212
    %v2252 = vpack.c.b16 %v2237, %v2236
    %v2253 = vpack.c.b16 %v2239, %v2238
    %v2254 = vpack.c.b16 %v2241, %v2240
    %v2255 = vpack.c.b16 %v2243, %v2242
    %v2256 = vpack.c.b16 %v2245, %v2244
    %v2257 = vpack.c.b16 %v2247, %v2246
    %v2258 = vpack.c.b16 %v2249, %v2248
    %v2259 = vpack.c.b16 %v2251, %v2250
    %2268 = vmatprep.subr.bf16.mxu0 0
    %2269 = vmatpush1.bf16.msra.mxu0 %v2252
    %2270 = vmatprep.subr.bf16.mxu0 0
    %2271 = vmatpush1.bf16.msra.mxu0 %v2253
    %2272 = vmatprep.subr.bf16.mxu0 0
    %2273 = vmatpush1.bf16.msra.mxu0 %v2254
    %2274 = vmatprep.subr.bf16.mxu0 0
    %2275 = vmatpush1.bf16.msra.mxu0 %v2255
    %2276 = vmatprep.subr.bf16.mxu0 0
    %2277 = vmatpush1.bf16.msra.mxu0 %v2256
    %2278 = vmatprep.subr.bf16.mxu0 0
    %2279 = vmatpush1.bf16.msra.mxu0 %v2257
    %2280 = vmatprep.subr.bf16.mxu0 0
    %2281 = vmatpush1.bf16.msra.mxu0 %v2258
    %2282 = vmatprep.subr.bf16.mxu0 0
    %2283 = vmatpush1.bf16.msra.mxu0 %v2259
    %2284 = vmatprep.subr.bf16.mxu0 0
    %2285 = vmatpush1.bf16.msra.mxu0 0
    %2286 = vmatprep.subr.bf16.mxu0 0
    %2287 = vmatpush1.bf16.msra.mxu0 0
    %2288 = vmatprep.subr.bf16.mxu0 0
    %2289 = vmatpush1.bf16.msra.mxu0 0
    %2290 = vmatprep.subr.bf16.mxu0 0
    %2291 = vmatpush1.bf16.msra.mxu0 0
    %2292 = vmatprep.subr.bf16.mxu0 0
    %2293 = vmatpush1.bf16.msra.mxu0 0
    %2294 = vmatprep.subr.bf16.mxu0 0
    %2295 = vmatpush1.bf16.msra.mxu0 0
    %2296 = vmatprep.subr.bf16.mxu0 0
    %2297 = vmatpush1.bf16.msra.mxu0 0
    %2298 = vmatprep.subr.bf16.mxu0 0
    %2299 = vmatpush1.bf16.msra.mxu0 0
    %2300 = vmatprep.mubr.bf16.mxu0 0
    %2301 = vmatmul.mubr.bf16.gmra.mrb[0].mxu0 %v2184
    %v2302 = vpop.f32.mrb[0].mxu0
    %v2303 = vadd.f32 %v2218, %v2302
    %v2304 = vpop.f32.mrb[0].mxu0
    %v2305 = vpop.f32.mrb[0].mxu0
    %v2306 = vadd.f32 %v2218, %v2305
    %v2307 = vpop.f32.mrb[0].mxu0
    %2308 = vmatprep.mubr.bf16.mxu0 0
    %2309 = vmatmul.mubr.bf16.gmra.mrb[0].mxu0 %v2185
    %v2310 = vpop.f32.mrb[0].mxu0
    %v2311 = vadd.f32 %v2218, %v2310
    %v2312 = vpop.f32.mrb[0].mxu0
    %v2313 = vpop.f32.mrb[0].mxu0
    %v2314 = vadd.f32 %v2218, %v2313
    %v2315 = vpop.f32.mrb[0].mxu0
    %2316 = vmatprep.mubr.bf16.mxu0 0
    %2317 = vmatmul.mubr.bf16.gmra.mrb[0].mxu0 %v2186
    %v2318 = vpop.f32.mrb[0].mxu0
    %v2319 = vadd.f32 %v2218, %v2318
    %v2320 = vpop.f32.mrb[0].mxu0
    %v2321 = vpop.f32.mrb[0].mxu0
    %v2322 = vadd.f32 %v2218, %v2321
    %v2323 = vpop.f32.mrb[0].mxu0
    %2324 = vmatprep.mubr.bf16.mxu0 0
    %2325 = vmatmul.mubr.bf16.gmra.mrb[0].mxu0 %v2187
    %v2326 = vpop.f32.mrb[0].mxu0
    %v2327 = vadd.f32 %v2218, %v2326
    %v2328 = vpop.f32.mrb[0].mxu0
    %v2329 = vpop.f32.mrb[0].mxu0
    %v2330 = vadd.f32 %v2218, %v2329
    %v2331 = vpop.f32.mrb[0].mxu0
    %2332 = vmatprep.mubr.bf16.mxu0 0
    %2333 = vmatmul.mubr.bf16.gmra.mrb[0].mxu0 %v2188
    %v2334 = vpop.f32.mrb[0].mxu0
    %v2335 = vadd.f32 %v2218, %v2334
    %v2336 = vpop.f32.mrb[0].mxu0
    %v2337 = vpop.f32.mrb[0].mxu0
    %v2338 = vadd.f32 %v2218, %v2337
    %v2339 = vpop.f32.mrb[0].mxu0
    %2340 = vmatprep.mubr.bf16.mxu0 0
    %2341 = vmatmul.mubr.bf16.gmra.mrb[0].mxu0 %v2189
    %v2342 = vpop.f32.mrb[0].mxu0
    %v2343 = vadd.f32 %v2218, %v2342
    %v2344 = vpop.f32.mrb[0].mxu0
    %v2345 = vpop.f32.mrb[0].mxu0
    %v2346 = vadd.f32 %v2218, %v2345
    %v2347 = vpop.f32.mrb[0].mxu0
    %2348 = vmatprep.mubr.bf16.mxu0 0
    %2349 = vmatmul.mubr.bf16.gmra.mrb[0].mxu0 %v2190
    %v2350 = vpop.f32.mrb[0].mxu0
    %v2351 = vadd.f32 %v2218, %v2350
    %v2352 = vpop.f32.mrb[0].mxu0
    %v2353 = vpop.f32.mrb[0].mxu0
    %v2354 = vadd.f32 %v2218, %v2353
    %v2355 = vpop.f32.mrb[0].mxu0
    %2356 = vmatprep.mubr.bf16.mxu0 0
    %2357 = vmatmul.mubr.bf16.gmra.mrb[0].mxu0 %v2191
    %v2358 = vpop.f32.mrb[0].mxu0
    %v2359 = vadd.f32 %v2218, %v2358
    %v2360 = vpop.f32.mrb[0].mxu0
    %v2361 = vpop.f32.mrb[0].mxu0
    %v2362 = vadd.f32 %v2218, %v2361
    %v2363 = vpop.f32.mrb[0].mxu0
    %2364 = vmatprep.mubr.bf16.mxu0 0
    %2365 = vmatmul.mubr.bf16.gmra.mrb[0].mxu0 %v2192
    %v2366 = vpop.f32.mrb[0].mxu0
    %v2367 = vadd.f32 %v2218, %v2366
    %v2368 = vpop.f32.mrb[0].mxu0
    %v2369 = vpop.f32.mrb[0].mxu0
    %v2370 = vadd.f32 %v2218, %v2369
    %v2371 = vpop.f32.mrb[0].mxu0
    %2372 = vmatprep.mubr.bf16.mxu0 0
    %2373 = vmatmul.mubr.bf16.gmra.mrb[0].mxu0 %v2193
    %v2374 = vpop.f32.mrb[0].mxu0
    %v2375 = vadd.f32 %v2218, %v2374
    %v2376 = vpop.f32.mrb[0].mxu0
    %v2377 = vpop.f32.mrb[0].mxu0
    %v2378 = vadd.f32 %v2218, %v2377
    %v2379 = vpop.f32.mrb[0].mxu0
    %2380 = vmatprep.mubr.bf16.mxu0 0
    %2381 = vmatmul.mubr.bf16.gmra.mrb[0].mxu0 %v2194
    %v2382 = vpop.f32.mrb[0].mxu0
    %v2383 = vadd.f32 %v2218, %v2382
    %v2384 = vpop.f32.mrb[0].mxu0
    %v2385 = vpop.f32.mrb[0].mxu0
    %v2386 = vadd.f32 %v2218, %v2385
    %v2387 = vpop.f32.mrb[0].mxu0
    %2388 = vmatprep.mubr.bf16.mxu0 0
    %2389 = vmatmul.mubr.bf16.gmra.mrb[0].mxu0 %v2195
    %v2390 = vpop.f32.mrb[0].mxu0
    %v2391 = vadd.f32 %v2218, %v2390
    %v2392 = vpop.f32.mrb[0].mxu0
    %v2393 = vpop.f32.mrb[0].mxu0
    %v2394 = vadd.f32 %v2218, %v2393
    %v2395 = vpop.f32.mrb[0].mxu0
    %2396 = vmatprep.mubr.bf16.mxu0 0
    %2397 = vmatmul.mubr.bf16.gmra.mrb[0].mxu0 %v2196
    %v2398 = vpop.f32.mrb[0].mxu0
    %v2399 = vadd.f32 %v2218, %v2398
    %v2400 = vpop.f32.mrb[0].mxu0
    %v2401 = vpop.f32.mrb[0].mxu0
    %v2402 = vpop.f32.mrb[0].mxu0
    %2403 = vdwg.mxu0
    %v2404 = vxor.u32 %v2303, 2147483648
    %v2405 = vxor.u32 %v2306, 2147483648
    %v2406 = vxor.u32 %v2311, 2147483648
    %v2407 = vxor.u32 %v2314, 2147483648
    %v2408 = vxor.u32 %v2319, 2147483648
    %v2409 = vxor.u32 %v2322, 2147483648
    %v2410 = vxor.u32 %v2327, 2147483648
    %v2411 = vxor.u32 %v2330, 2147483648
    %v2412 = vxor.u32 %v2335, 2147483648
    %v2413 = vxor.u32 %v2338, 2147483648
    %v2414 = vxor.u32 %v2343, 2147483648
    %v2415 = vxor.u32 %v2346, 2147483648
    %v2416 = vxor.u32 %v2351, 2147483648
    %v2417 = vxor.u32 %v2354, 2147483648
    %v2418 = vxor.u32 %v2359, 2147483648
    %v2419 = vxor.u32 %v2362, 2147483648
    %v2420 = vxor.u32 %v2367, 2147483648
    %v2421 = vxor.u32 %v2370, 2147483648
    %v2422 = vxor.u32 %v2375, 2147483648
    %v2423 = vxor.u32 %v2378, 2147483648
    %v2424 = vxor.u32 %v2383, 2147483648
    %v2425 = vxor.u32 %v2386, 2147483648
    %v2426 = vxor.u32 %v2391, 2147483648
    %v2427 = vxor.u32 %v2394, 2147483648
    %v2428 = vxor.u32 %v2399, 2147483648
    %v2429 = vmul.f32 %v2404, 1.442695
    %v2430 = vpow.pop %v2429
    %v2431 = vmul.f32 %v2405, 1.442695
    %v2432 = vpow.pop %v2431
    %v2433 = vmul.f32 %v2406, 1.442695
    %v2434 = vpow.pop %v2433
    %v2435 = vmul.f32 %v2407, 1.442695
    %v2436 = vpow.pop %v2435
    %v2437 = vmul.f32 %v2408, 1.442695
    %v2438 = vpow.pop %v2437
    %v2439 = vmul.f32 %v2409, 1.442695
    %v2440 = vpow.pop %v2439
    %v2441 = vmul.f32 %v2410, 1.442695
    %v2442 = vpow.pop %v2441
    %v2443 = vmul.f32 %v2411, 1.442695
    %v2444 = vpow.pop %v2443
    %v2445 = vmul.f32 %v2412, 1.442695
    %v2446 = vpow.pop %v2445
    %v2447 = vmul.f32 %v2413, 1.442695
    %v2448 = vpow.pop %v2447
    %v2449 = vmul.f32 %v2414, 1.442695
    %v2450 = vpow.pop %v2449
    %v2451 = vmul.f32 %v2415, 1.442695
    %v2452 = vpow.pop %v2451
    %v2453 = vmul.f32 %v2416, 1.442695
    %v2454 = vpow.pop %v2453
    %v2455 = vmul.f32 %v2417, 1.442695
    %v2456 = vpow.pop %v2455
    %v2457 = vmul.f32 %v2418, 1.442695
    %v2458 = vpow.pop %v2457
    %v2459 = vmul.f32 %v2419, 1.442695
    %v2460 = vpow.pop %v2459
    %v2461 = vmul.f32 %v2420, 1.442695
    %v2462 = vpow.pop %v2461
    %v2463 = vmul.f32 %v2421, 1.442695
    %v2464 = vpow.pop %v2463
    %v2465 = vmul.f32 %v2422, 1.442695
    %v2466 = vpow.pop %v2465
    %v2467 = vmul.f32 %v2423, 1.442695
    %v2468 = vpow.pop %v2467
    %v2469 = vmul.f32 %v2424, 1.442695
    %v2470 = vpow.pop %v2469
    %v2471 = vmul.f32 %v2425, 1.442695
    %v2472 = vpow.pop %v2471
    %v2473 = vmul.f32 %v2426, 1.442695
    %v2474 = vpow.pop %v2473
    %v2475 = vmul.f32 %v2427, 1.442695
    %v2476 = vpow.pop %v2475
    %v2477 = vmul.f32 %v2428, 1.442695
    %v2478 = vpow.pop %v2477
    %v2479 = vadd.f32 %v2430, 1.0
    %v2480 = vadd.f32 %v2432, 1.0
    %v2481 = vadd.f32 %v2434, 1.0
    %v2482 = vadd.f32 %v2436, 1.0
    %v2483 = vadd.f32 %v2438, 1.0
    %v2484 = vadd.f32 %v2440, 1.0
    %v2485 = vadd.f32 %v2442, 1.0
    %v2486 = vadd.f32 %v2444, 1.0
    %v2487 = vadd.f32 %v2446, 1.0
    %v2488 = vadd.f32 %v2448, 1.0
    %v2489 = vadd.f32 %v2450, 1.0
    %v2490 = vadd.f32 %v2452, 1.0
    %v2491 = vadd.f32 %v2454, 1.0
    %v2492 = vadd.f32 %v2456, 1.0
    %v2493 = vadd.f32 %v2458, 1.0
    %v2494 = vadd.f32 %v2460, 1.0
    %v2495 = vadd.f32 %v2462, 1.0
    %v2496 = vadd.f32 %v2464, 1.0
    %v2497 = vadd.f32 %v2466, 1.0
    %v2498 = vadd.f32 %v2468, 1.0
    %v2499 = vadd.f32 %v2470, 1.0
    %v2500 = vadd.f32 %v2472, 1.0
    %v2501 = vadd.f32 %v2474, 1.0
    %v2502 = vadd.f32 %v2476, 1.0
    %v2503 = vadd.f32 %v2478, 1.0
    %v2504 = vrcp.pop %v2479
    %v2505 = vmul.f32 1.0, %v2504
    %v2506 = vrcp.pop %v2480
    %v2507 = vmul.f32 1.0, %v2506
    %v2508 = vrcp.pop %v2481
    %v2509 = vmul.f32 1.0, %v2508
    %v2510 = vrcp.pop %v2482
    %v2511 = vmul.f32 1.0, %v2510
    %v2512 = vrcp.pop %v2483
    %v2513 = vmul.f32 1.0, %v2512
    %v2514 = vrcp.pop %v2484
    %v2515 = vmul.f32 1.0, %v2514
    %v2516 = vrcp.pop %v2485
    %v2517 = vmul.f32 1.0, %v2516
    %v2518 = vrcp.pop %v2486
    %v2519 = vmul.f32 1.0, %v2518
    %v2520 = vrcp.pop %v2487
    %v2521 = vmul.f32 1.0, %v2520
    %v2522 = vrcp.pop %v2488
    %v2523 = vmul.f32 1.0, %v2522
    %v2524 = vrcp.pop %v2489
    %v2525 = vmul.f32 1.0, %v2524
    %v2526 = vrcp.pop %v2490
    %v2527 = vmul.f32 1.0, %v2526
    %v2528 = vrcp.pop %v2491
    %v2529 = vmul.f32 1.0, %v2528
    %v2530 = vrcp.pop %v2492
    %v2531 = vmul.f32 1.0, %v2530
    %v2532 = vrcp.pop %v2493
    %v2533 = vmul.f32 1.0, %v2532
    %v2534 = vrcp.pop %v2494
    %v2535 = vmul.f32 1.0, %v2534
    %v2536 = vrcp.pop %v2495
    %v2537 = vmul.f32 1.0, %v2536
    %v2538 = vrcp.pop %v2496
    %v2539 = vmul.f32 1.0, %v2538
    %v2540 = vrcp.pop %v2497
    %v2541 = vmul.f32 1.0, %v2540
    %v2542 = vrcp.pop %v2498
    %v2543 = vmul.f32 1.0, %v2542
    %v2544 = vrcp.pop %v2499
    %v2545 = vmul.f32 1.0, %v2544
    %v2546 = vrcp.pop %v2500
    %v2547 = vmul.f32 1.0, %v2546
    %v2548 = vrcp.pop %v2501
    %v2549 = vmul.f32 1.0, %v2548
    %v2550 = vrcp.pop %v2502
    %v2551 = vmul.f32 1.0, %v2550
    %v2552 = vrcp.pop %v2503
    %v2553 = vmul.f32 1.0, %v2552
    %v2554 = vmul.f32 %v2303, %v2505
    %v2555 = vmul.f32 %v2306, %v2507
    %v2556 = vmul.f32 %v2311, %v2509
    %v2557 = vmul.f32 %v2314, %v2511
    %v2558 = vmul.f32 %v2319, %v2513
    %v2559 = vmul.f32 %v2322, %v2515
    %v2560 = vmul.f32 %v2327, %v2517
    %v2561 = vmul.f32 %v2330, %v2519
    %v2562 = vmul.f32 %v2335, %v2521
    %v2563 = vmul.f32 %v2338, %v2523
    %v2564 = vmul.f32 %v2343, %v2525
    %v2565 = vmul.f32 %v2346, %v2527
    %v2566 = vmul.f32 %v2351, %v2529
    %v2567 = vmul.f32 %v2354, %v2531
    %v2568 = vmul.f32 %v2359, %v2533
    %v2569 = vmul.f32 %v2362, %v2535
    %v2570 = vmul.f32 %v2367, %v2537
    %v2571 = vmul.f32 %v2370, %v2539
    %v2572 = vmul.f32 %v2375, %v2541
    %v2573 = vmul.f32 %v2378, %v2543
    %v2574 = vmul.f32 %v2383, %v2545
    %v2575 = vmul.f32 %v2386, %v2547
    %v2576 = vmul.f32 %v2391, %v2549
    %v2577 = vmul.f32 %v2394, %v2551
    %v2578 = vmul.f32 %v2399, %v2553
    %v2579 = vadd.f32 %v1764, %v2554
    %v2580 = vadd.f32 %v1765, %v2555
    %v2581 = vadd.f32 %v1766, %v2556
    %v2582 = vadd.f32 %v1767, %v2557
    %v2583 = vadd.f32 %v1768, %v2558
    %v2584 = vadd.f32 %v1769, %v2559
    %v2585 = vadd.f32 %v1770, %v2560
    %v2586 = vadd.f32 %v1771, %v2561
    %v2587 = vadd.f32 %v1772, %v2562
    %v2588 = vadd.f32 %v1773, %v2563
    %v2589 = vadd.f32 %v1774, %v2564
    %v2590 = vadd.f32 %v1775, %v2565
    %v2591 = vadd.f32 %v1776, %v2566
    %v2592 = vadd.f32 %v1777, %v2567
    %v2593 = vadd.f32 %v1778, %v2568
    %v2594 = vadd.f32 %v1779, %v2569
    %v2595 = vadd.f32 %v1780, %v2570
    %v2596 = vadd.f32 %v1781, %v2571
    %v2597 = vadd.f32 %v1782, %v2572
    %v2598 = vadd.f32 %v1783, %v2573
    %v2599 = vadd.f32 %v1784, %v2574
    %v2600 = vadd.f32 %v1785, %v2575
    %v2601 = vadd.f32 %v1786, %v2576
    %v2602 = vadd.f32 %v1787, %v2577
    %v2603 = vadd.f32 %v1788, %v2578
    %2604 = vst [vmem:[#allocation2] sm:$0xff] %v2579
    %2605 = vst [vmem:[#allocation2 + $0x8] sm:$0xff] %v2580
    %2606 = vst [vmem:[#allocation2 + $0x10] sm:$0xff] %v2581
    %2607 = vst [vmem:[#allocation2 + $0x18] sm:$0xff] %v2582
    %2608 = vst [vmem:[#allocation2 + $0x20] sm:$0xff] %v2583
    %2609 = vst [vmem:[#allocation2 + $0x28] sm:$0xff] %v2584
    %2610 = vst [vmem:[#allocation2 + $0x30] sm:$0xff] %v2585
    %2611 = vst [vmem:[#allocation2 + $0x38] sm:$0xff] %v2586
    %2612 = vst [vmem:[#allocation2 + $0x40] sm:$0xff] %v2587
    %2613 = vst [vmem:[#allocation2 + $0x48] sm:$0xff] %v2588
    %2614 = vst [vmem:[#allocation2 + $0x50] sm:$0xff] %v2589
    %2615 = vst [vmem:[#allocation2 + $0x58] sm:$0xff] %v2590
    %2616 = vst [vmem:[#allocation2 + $0x60] sm:$0xff] %v2591
    %2617 = vst [vmem:[#allocation2 + $0x68] sm:$0xff] %v2592
    %2618 = vst [vmem:[#allocation2 + $0x70] sm:$0xff] %v2593
    %2619 = vst [vmem:[#allocation2 + $0x78] sm:$0xff] %v2594
    %2620 = vst [vmem:[#allocation2 + $0x80] sm:$0xff] %v2595
    %2621 = vst [vmem:[#allocation2 + $0x88] sm:$0xff] %v2596
    %2622 = vst [vmem:[#allocation2 + $0x90] sm:$0xff] %v2597
    %2623 = vst [vmem:[#allocation2 + $0x98] sm:$0xff] %v2598
    %2624 = vst [vmem:[#allocation2 + $0xa0] sm:$0xff] %v2599
    %2625 = vst [vmem:[#allocation2 + $0xa8] sm:$0xff] %v2600
    %2626 = vst [vmem:[#allocation2 + $0xb0] sm:$0xff] %v2601
    %2627 = vst [vmem:[#allocation2 + $0xb8] sm:$0xff] %v2602
    %2628 = vst [vmem:[#allocation2 + $0xc0] sm:$0xff] %v2603
    %v2629 = vld [vmem:[%s3] sm:$0xff]
    %v2630 = vld [vmem:[%s3 + $0x8] sm:$0xff]
    %v2631 = vld [vmem:[%s3 + $0x10] sm:$0xff]
    %v2632 = vld [vmem:[%s3 + $0x18] sm:$0xff]
    %v2633 = vld [vmem:[%s3 + $0x20] sm:$0xff]
    %v2634 = vld [vmem:[%s3 + $0x28] sm:$0xff]
    %v2635 = vld [vmem:[%s3 + $0x30] sm:$0xff]
    %v2636 = vld [vmem:[%s3 + $0x38] sm:$0xff]
    %v2637 = vld [vmem:[%s3 + $0x40] sm:$0xff]
    %v2638 = vld [vmem:[%s3 + $0x48] sm:$0xff]
    %v2639 = vld [vmem:[%s3 + $0x50] sm:$0xff]
    %v2640 = vld [vmem:[%s3 + $0x58] sm:$0xff]
    %v2641 = vld [vmem:[%s3 + $0x60] sm:$0xff]
    %v2642 = vld [vmem:[%s3 + $0x68] sm:$0xff]
    %v2643 = vld [vmem:[%s3 + $0x70] sm:$0xff]
    %v2644 = vld [vmem:[%s3 + $0x78] sm:$0xff]
    %v2645 = vld [vmem:[%s3 + $0x80] sm:$0xff]
    %v2646 = vld [vmem:[%s3 + $0x88] sm:$0xff]
    %v2647 = vld [vmem:[%s3 + $0x90] sm:$0xff]
    %v2648 = vld [vmem:[%s3 + $0x98] sm:$0xff]
    %v2649 = vld [vmem:[%s3 + $0xa0] sm:$0xff]
    %v2650 = vld [vmem:[%s3 + $0xa8] sm:$0xff]
    %v2651 = vld [vmem:[%s3 + $0xb0] sm:$0xff]
    %v2652 = vld [vmem:[%s3 + $0xb8] sm:$0xff]
    %v2653 = vld [vmem:[%s3 + $0xc0] sm:$0xff]
    %v2654 = vpack.c.bf16 %v2630, %v2629
    %v2655 = vpack.c.bf16 %v2632, %v2631
    %v2656 = vpack.c.bf16 %v2634, %v2633
    %v2657 = vpack.c.bf16 %v2636, %v2635
    %v2658 = vpack.c.bf16 %v2638, %v2637
    %v2659 = vpack.c.bf16 %v2640, %v2639
    %v2660 = vpack.c.bf16 %v2642, %v2641
    %v2661 = vpack.c.bf16 %v2644, %v2643
    %v2662 = vpack.c.bf16 %v2646, %v2645
    %v2663 = vpack.c.bf16 %v2648, %v2647
    %v2664 = vpack.c.bf16 %v2650, %v2649
    %v2665 = vpack.c.bf16 %v2652, %v2651
    %v2666 = vpack.c.bf16 %v2653, %v2653
    %v2667 = vld [vmem:[%s15] sm:$0xf]
    %vm2668 = vcmask 64512
    %v2670 = vsel %vm2668, %v2654, 0
    %v2673 = vsel %vm2668, %v2655, 0
    %v2676 = vsel %vm2668, %v2656, 0
    %v2679 = vsel %vm2668, %v2657, 0
    %v2682 = vsel %vm2668, %v2658, 0
    %v2685 = vsel %vm2668, %v2659, 0
    %v2688 = vsel %vm2668, %v2660, 0
    %v2691 = vsel %vm2668, %v2661, 0
    %v2694 = vsel %vm2668, %v2662, 0
    %v2697 = vsel %vm2668, %v2663, 0
    %v2700 = vsel %vm2668, %v2664, 0
    %v2703 = vsel %vm2668, %v2665, 0
    %v2706 = vsel %vm2668, %v2666, 0
    %vm2708 = vcmask 1043456
    %v2710 = vsel %vm2708, %v2667, 0
    %2712 = vmatprep.subr.bf16.mxu0 0
    %2713 = vmatpush1.bf16.msra.mxu0 %v2710
    %2714 = vmatprep.subr.bf16.mxu0 0
    %2715 = vmatpush1.bf16.msra.mxu0 0
    %2716 = vmatprep.subr.bf16.mxu0 0
    %2717 = vmatpush1.bf16.msra.mxu0 0
    %2718 = vmatprep.subr.bf16.mxu0 0
    %2719 = vmatpush1.bf16.msra.mxu0 0
    %2720 = vmatprep.subr.bf16.mxu0 0
    %2721 = vmatpush1.bf16.msra.mxu0 0
    %2722 = vmatprep.subr.bf16.mxu0 0
    %2723 = vmatpush1.bf16.msra.mxu0 0
    %2724 = vmatprep.subr.bf16.mxu0 0
    %2725 = vmatpush1.bf16.msra.mxu0 0
    %2726 = vmatprep.subr.bf16.mxu0 0
    %2727 = vmatpush1.bf16.msra.mxu0 0
    %2728 = vmatprep.subr.bf16.mxu0 0
    %2729 = vmatpush1.bf16.msra.mxu0 0
    %2730 = vmatprep.subr.bf16.mxu0 0
    %2731 = vmatpush1.bf16.msra.mxu0 0
    %2732 = vmatprep.subr.bf16.mxu0 0
    %2733 = vmatpush1.bf16.msra.mxu0 0
    %2734 = vmatprep.subr.bf16.mxu0 0
    %2735 = vmatpush1.bf16.msra.mxu0 0
    %2736 = vmatprep.subr.bf16.mxu0 0
    %2737 = vmatpush1.bf16.msra.mxu0 0
    %2738 = vmatprep.subr.bf16.mxu0 0
    %2739 = vmatpush1.bf16.msra.mxu0 0
    %2740 = vmatprep.subr.bf16.mxu0 0
    %2741 = vmatpush1.bf16.msra.mxu0 0
    %2742 = vmatprep.subr.bf16.mxu0 0
    %2743 = vmatpush1.bf16.msra.mxu0 0
    %2744 = vmatprep.mubr.bf16.mxu0 0
    %2745 = vmatmul.mubr.bf16.gmra.mrb[0].mxu0 %v2670
    %v2746 = vpop.f32.mrb[0].mxu0
    %v2747 = vadd.f32 0.0, %v2746
    %v2748 = vpop.f32.mrb[0].mxu0
    %v2749 = vpop.f32.mrb[0].mxu0
    %v2750 = vadd.f32 0.0, %v2749
    %v2751 = vpop.f32.mrb[0].mxu0
    %2752 = vmatprep.mubr.bf16.mxu0 0
    %2753 = vmatmul.mubr.bf16.gmra.mrb[0].mxu0 %v2673
    %v2754 = vpop.f32.mrb[0].mxu0
    %v2755 = vadd.f32 0.0, %v2754
    %v2756 = vpop.f32.mrb[0].mxu0
    %v2757 = vpop.f32.mrb[0].mxu0
    %v2758 = vadd.f32 0.0, %v2757
    %v2759 = vpop.f32.mrb[0].mxu0
    %2760 = vmatprep.mubr.bf16.mxu0 0
    %2761 = vmatmul.mubr.bf16.gmra.mrb[0].mxu0 %v2676
    %v2762 = vpop.f32.mrb[0].mxu0
    %v2763 = vadd.f32 0.0, %v2762
    %v2764 = vpop.f32.mrb[0].mxu0
    %v2765 = vpop.f32.mrb[0].mxu0
    %v2766 = vadd.f32 0.0, %v2765
    %v2767 = vpop.f32.mrb[0].mxu0
    %2768 = vmatprep.mubr.bf16.mxu0 0
    %2769 = vmatmul.mubr.bf16.gmra.mrb[0].mxu0 %v2679
    %v2770 = vpop.f32.mrb[0].mxu0
    %v2771 = vadd.f32 0.0, %v2770
    %v2772 = vpop.f32.mrb[0].mxu0
    %v2773 = vpop.f32.mrb[0].mxu0
    %v2774 = vadd.f32 0.0, %v2773
    %v2775 = vpop.f32.mrb[0].mxu0
    %2776 = vmatprep.mubr.bf16.mxu0 0
    %2777 = vmatmul.mubr.bf16.gmra.mrb[0].mxu0 %v2682
    %v2778 = vpop.f32.mrb[0].mxu0
    %v2779 = vadd.f32 0.0, %v2778
    %v2780 = vpop.f32.mrb[0].mxu0
    %v2781 = vpop.f32.mrb[0].mxu0
    %v2782 = vadd.f32 0.0, %v2781
    %v2783 = vpop.f32.mrb[0].mxu0
    %2784 = vmatprep.mubr.bf16.mxu0 0
    %2785 = vmatmul.mubr.bf16.gmra.mrb[0].mxu0 %v2685
    %v2786 = vpop.f32.mrb[0].mxu0
    %v2787 = vadd.f32 0.0, %v2786
    %v2788 = vpop.f32.mrb[0].mxu0
    %v2789 = vpop.f32.mrb[0].mxu0
    %v2790 = vadd.f32 0.0, %v2789
    %v2791 = vpop.f32.mrb[0].mxu0
    %2792 = vmatprep.mubr.bf16.mxu0 0
    %2793 = vmatmul.mubr.bf16.gmra.mrb[0].mxu0 %v2688
    %v2794 = vpop.f32.mrb[0].mxu0
    %v2795 = vadd.f32 0.0, %v2794
    %v2796 = vpop.f32.mrb[0].mxu0
    %v2797 = vpop.f32.mrb[0].mxu0
    %v2798 = vadd.f32 0.0, %v2797
    %v2799 = vpop.f32.mrb[0].mxu0
    %2800 = vmatprep.mubr.bf16.mxu0 0
    %2801 = vmatmul.mubr.bf16.gmra.mrb[0].mxu0 %v2691
    %v2802 = vpop.f32.mrb[0].mxu0
    %v2803 = vadd.f32 0.0, %v2802
    %v2804 = vpop.f32.mrb[0].mxu0
    %v2805 = vpop.f32.mrb[0].mxu0
    %v2806 = vadd.f32 0.0, %v2805
    %v2807 = vpop.f32.mrb[0].mxu0
    %2808 = vmatprep.mubr.bf16.mxu0 0
    %2809 = vmatmul.mubr.bf16.gmra.mrb[0].mxu0 %v2694
    %v2810 = vpop.f32.mrb[0].mxu0
    %v2811 = vadd.f32 0.0, %v2810
    %v2812 = vpop.f32.mrb[0].mxu0
    %v2813 = vpop.f32.mrb[0].mxu0
    %v2814 = vadd.f32 0.0, %v2813
    %v2815 = vpop.f32.mrb[0].mxu0
    %2816 = vmatprep.mubr.bf16.mxu0 0
    %2817 = vmatmul.mubr.bf16.gmra.mrb[0].mxu0 %v2697
    %v2818 = vpop.f32.mrb[0].mxu0
    %v2819 = vadd.f32 0.0, %v2818
    %v2820 = vpop.f32.mrb[0].mxu0
    %v2821 = vpop.f32.mrb[0].mxu0
    %v2822 = vadd.f32 0.0, %v2821
    %v2823 = vpop.f32.mrb[0].mxu0
    %2824 = vmatprep.mubr.bf16.mxu0 0
    %2825 = vmatmul.mubr.bf16.gmra.mrb[0].mxu0 %v2700
    %v2826 = vpop.f32.mrb[0].mxu0
    %v2827 = vadd.f32 0.0, %v2826
    %v2828 = vpop.f32.mrb[0].mxu0
    %v2829 = vpop.f32.mrb[0].mxu0
    %v2830 = vadd.f32 0.0, %v2829
    %v2831 = vpop.f32.mrb[0].mxu0
    %2832 = vmatprep.mubr.bf16.mxu0 0
    %2833 = vmatmul.mubr.bf16.gmra.mrb[0].mxu0 %v2703
    %v2834 = vpop.f32.mrb[0].mxu0
    %v2835 = vadd.f32 0.0, %v2834
    %v2836 = vpop.f32.mrb[0].mxu0
    %v2837 = vpop.f32.mrb[0].mxu0
    %v2838 = vadd.f32 0.0, %v2837
    %v2839 = vpop.f32.mrb[0].mxu0
    %2840 = vmatprep.mubr.bf16.mxu0 0
    %2841 = vmatmul.mubr.bf16.gmra.mrb[0].mxu0 %v2706
    %v2842 = vpop.f32.mrb[0].mxu0
    %v2843 = vadd.f32 0.0, %v2842
    %v2844 = vpop.f32.mrb[0].mxu0
    %v2845 = vpop.f32.mrb[0].mxu0
    %v2846 = vpop.f32.mrb[0].mxu0
    %2847 = vdwg.mxu0
    %v2848 = vmul.f32 %v2747, %v2579
    %v2849 = vmul.f32 %v2750, %v2580
    %v2850 = vmul.f32 %v2755, %v2581
    %v2851 = vmul.f32 %v2758, %v2582
    %v2852 = vmul.f32 %v2763, %v2583
    %v2853 = vmul.f32 %v2766, %v2584
    %v2854 = vmul.f32 %v2771, %v2585
    %v2855 = vmul.f32 %v2774, %v2586
    %v2856 = vmul.f32 %v2779, %v2587
    %v2857 = vmul.f32 %v2782, %v2588
    %v2858 = vmul.f32 %v2787, %v2589
    %v2859 = vmul.f32 %v2790, %v2590
    %v2860 = vmul.f32 %v2795, %v2591
    %v2861 = vmul.f32 %v2798, %v2592
    %v2862 = vmul.f32 %v2803, %v2593
    %v2863 = vmul.f32 %v2806, %v2594
    %v2864 = vmul.f32 %v2811, %v2595
    %v2865 = vmul.f32 %v2814, %v2596
    %v2866 = vmul.f32 %v2819, %v2597
    %v2867 = vmul.f32 %v2822, %v2598
    %v2868 = vmul.f32 %v2827, %v2599
    %v2869 = vmul.f32 %v2830, %v2600
    %v2870 = vmul.f32 %v2835, %v2601
    %v2871 = vmul.f32 %v2838, %v2602
    %v2872 = vmul.f32 %v2843, %v2603
    %2873 = vst [vmem:[#allocation4] sm:$0xff] %v2848
    %2874 = vst [vmem:[#allocation4 + $0x8] sm:$0xff] %v2849
    %2875 = vst [vmem:[#allocation4 + $0x10] sm:$0xff] %v2850
    %2876 = vst [vmem:[#allocation4 + $0x18] sm:$0xff] %v2851
    %2877 = vst [vmem:[#allocation4 + $0x20] sm:$0xff] %v2852
    %2878 = vst [vmem:[#allocation4 + $0x28] sm:$0xff] %v2853
    %2879 = vst [vmem:[#allocation4 + $0x30] sm:$0xff] %v2854
    %2880 = vst [vmem:[#allocation4 + $0x38] sm:$0xff] %v2855
    %2881 = vst [vmem:[#allocation4 + $0x40] sm:$0xff] %v2856
    %2882 = vst [vmem:[#allocation4 + $0x48] sm:$0xff] %v2857
    %2883 = vst [vmem:[#allocation4 + $0x50] sm:$0xff] %v2858
    %2884 = vst [vmem:[#allocation4 + $0x58] sm:$0xff] %v2859
    %2885 = vst [vmem:[#allocation4 + $0x60] sm:$0xff] %v2860
    %2886 = vst [vmem:[#allocation4 + $0x68] sm:$0xff] %v2861
    %2887 = vst [vmem:[#allocation4 + $0x70] sm:$0xff] %v2862
    %2888 = vst [vmem:[#allocation4 + $0x78] sm:$0xff] %v2863
    %2889 = vst [vmem:[#allocation4 + $0x80] sm:$0xff] %v2864
    %2890 = vst [vmem:[#allocation4 + $0x88] sm:$0xff] %v2865
    %2891 = vst [vmem:[#allocation4 + $0x90] sm:$0xff] %v2866
    %2892 = vst [vmem:[#allocation4 + $0x98] sm:$0xff] %v2867
    %2893 = vst [vmem:[#allocation4 + $0xa0] sm:$0xff] %v2868
    %2894 = vst [vmem:[#allocation4 + $0xa8] sm:$0xff] %v2869
    %2895 = vst [vmem:[#allocation4 + $0xb0] sm:$0xff] %v2870
    %2896 = vst [vmem:[#allocation4 + $0xb8] sm:$0xff] %v2871
    %2897 = vst [vmem:[#allocation4 + $0xc0] sm:$0xff] %v2872
    // Predicated region
    $region66: #{update_e_forward.5} parent=1 // pred_check
      _
    $region67: #{update_e_forward.5} parent=1 // pred_check_branch
      %2899 = sbr.rel (0) target = $region69
    $region68: #{update_e_forward.5} parent=1 // pred_region
      %s2901 = ssub.s32 3200, 3200
      %2902 = vsyncadd [#allocation3], %s2901
      %s2903 = sshll.u32 [#allocation2], 4
      %s2904 = int_to_ptr.vmem [resolvable:$true] %s2903
      %2909 = dma.vmem_to_hbm [thread:$0]  %s2904, 3200, %s16, [#allocation3], 128, 128, 8
    $region69: #{update_e_forward.5} parent=1 // pred_fallthru
      _
    // Predicated region
    $region70: #{update_e_forward.5} parent=1 // pred_check
      _
    $region71: #{update_e_forward.5} parent=1 // pred_check_branch
      %2911 = sbr.rel (0) target = $region73
    $region72: #{update_e_forward.5} parent=1 // pred_region
      %s2913 = ssub.s32 3200, 3200
      %2914 = vsyncadd [#allocation5], %s2913
      %s2915 = sshll.u32 [#allocation4], 4
      %s2916 = int_to_ptr.vmem [resolvable:$true] %s2915
      %2921 = dma.vmem_to_hbm [thread:$0]  %s2916, 3200, %s17, [#allocation5], 128, 128, 8
    $region73: #{update_e_forward.5} parent=1 // pred_fallthru
      _
    // Predicated region
    $region74: #{update_e_forward.5} parent=1 // pred_check
      _
    $region75: #{update_e_forward.5} parent=1 // pred_check_branch
      %2923 = sbr.rel (0) target = $region77
    $region76: #{update_e_forward.5} parent=1 // pred_region
      %2924 = dma.done [#allocation3], 3200
    $region77: #{update_e_forward.5} parent=1 // pred_fallthru
      _
    // Predicated region
    $region78: #{update_e_forward.5} parent=1 // pred_check
      _
    $region79: #{update_e_forward.5} parent=1 // pred_check_branch
      %2926 = sbr.rel (0) target = $region81
    $region80: #{update_e_forward.5} parent=1 // pred_region
      %2927 = dma.done [#allocation5], 3200
    $region81: #{update_e_forward.5} parent=1 // pred_fallthru
      _
    %2928 = vsyncpa [#allocation3], 1
    %2929 = vsyncpa [#allocation5], 1

</llo_original>
